<compile_context>
chip_gen: v5e
topology: v5e:2x2
jax: 0.10.0
libtpu: 0.0.40
codegen_flags: <defaults>
</compile_context>

<pallas_src>
import functools

import numpy as np
import jax
import jax.numpy as jnp
from jax.experimental import pallas as pl
from jax.experimental.pallas import tpu as pltpu


def _round_up(x, m):
    return ((x + m - 1) // m) * m


def _bins(n, m):
    """AdaptiveAvgPool2d bin edges (same convention as torch)."""
    return [(int(np.floor(i * n / m)), int(np.ceil((i + 1) * n / m)))
            for i in range(m)]


def _const_block_spec(block_shape, index_map):
    """BlockSpec for grid-invariant operands; single-buffered when supported."""
    try:
        return pl.BlockSpec(block_shape, index_map,
                            pipeline_mode=pl.Buffered(1))
    except Exception:  # older jax without pipeline_mode / Buffered(1)
        return pl.BlockSpec(block_shape, index_map)


def _cnn_kernel(x_ref, mask_ref, sel_ref,
                w1_ref, b1_ref, w2_ref, b2_ref,
                fw1_ref, fb1_ref, fw2_ref, fb2_ref,
                out_ref,
                xs_ref, p1s_ref, ic2_ref, a2s_ref,
                *, K, Cin, C1, C2, Wp, pad, NL, BT, CL):
    NTW = xs_ref.shape[1]
    D0 = pad * Wp + pad  # flattened offset of pixel (pad, pad) in the padded map

    # ---- stage the input tile; zero ONLY the 128-lane read-slack tail ----
    xs_ref[:, 0:NL] = x_ref[...]
    xs_ref[:, NL:NTW] = jnp.zeros((Cin, NTW - NL), jnp.float32)

    # ---- conv1 on the VPU: contraction K*K*Cin is tiny, so an MXU pass is
    #      badly underfilled and the im2col stores are pure vst overhead.
    #      a1[c, l] = sum_{ky,kx,ci} w1[c, (ky*K+kx)*Cin+ci] * xs[ci, l + ky*Wp+kx]
    w1v = w1_ref[...]                       # (C1, K*K*Cin), f32 (v5e-safe VPU math)
    acc1 = None
    for ky in range(K):
        for kx in range(K):
            off = ky * Wp + kx
            for ci in range(Cin):
                col = (ky * K + kx) * Cin + ci
                term = w1v[:, col:col + 1] * xs_ref[ci:ci + 1, off:off + NL]
                acc1 = term if acc1 is None else acc1 + term
    # bias + ReLU, then kill width-padding / inter-example lanes (mask is 0/1)
    a1 = jnp.maximum(acc1 + b1_ref[...], 0.0) * mask_ref[...]

    # ---- re-pad conv1 output (bf16 MXU operand); only head + slack zeroed ----
    p1s_ref[:, 0:D0] = jnp.zeros((C1, D0), jnp.bfloat16)
    p1s_ref[:, D0:D0 + NL] = a1.astype(jnp.bfloat16)
    p1s_ref[:, D0 + NL:NTW] = jnp.zeros((C1, NTW - D0 - NL), jnp.bfloat16)

    # ---- conv2: lane-chunked bf16 im2col + one MXU matmul per chunk (f32 acc) ----
    for l0 in range(0, NL, CL):
        cw = min(CL, NL - l0)
        for ky in range(K):
            for kx in range(K):
                t = ky * K + kx
                off = ky * Wp + kx
                ic2_ref[t * C1:(t + 1) * C1, 0:cw] = \
                    p1s_ref[:, l0 + off:l0 + off + cw]
        a2c = jnp.dot(w2_ref[...], ic2_ref[:, 0:cw],
                      preferred_element_type=jnp.float32)
        a2s_ref[:, l0:l0 + cw] = jnp.maximum(a2c + b2_ref[...], 0.0)
    a2s_ref[:, NL:NTW] = jnp.zeros((C2, NTW - NL), jnp.float32)

    # ---- 2x2 max pool: elementwise max of 4 shifted views (f32 VPU) ----
    m2 = jnp.maximum(
        jnp.maximum(a2s_ref[:, 0:NL], a2s_ref[:, 1:1 + NL]),
        jnp.maximum(a2s_ref[:, Wp:Wp + NL], a2s_ref[:, Wp + 1:Wp + 1 + NL]))

    # ---- stride-2 selection + AdaptiveAvgPool2d((2,2)) as ONE bf16 matmul
    #      against a 0/1 selection matrix (1/cnt factors are folded into fw1) ----
    feat = jnp.dot(m2.astype(jnp.bfloat16), sel_ref[...],
                   preferred_element_type=jnp.float32)   # (C2, 4*BT), cols (q, b)

    # ---- fc1 (+ReLU): stack quadrants onto sublanes -> contraction 4*C2, N = BT ----
    fv = jnp.concatenate([feat[:, q * BT:(q + 1) * BT] for q in range(4)],
                         axis=0)
    h = jnp.dot(fw1_ref[...], fv.astype(jnp.bfloat16),
                preferred_element_type=jnp.float32)
    h = jnp.maximum(h + fb1_ref[...], 0.0)
    # dropout(p=0.0) / eval mode == identity

    # ---- fc2: dense (NC, BT) block, written once per grid step ----
    logits = jnp.dot(fw2_ref[...], h.astype(jnp.bfloat16),
                     preferred_element_type=jnp.float32) + fb2_ref[...]
    out_ref[0] = logits


def cnn_forward(x_nchw, params, *, kernel_size=3, max_batch_tile=8,
                conv2_lane_chunk=1024, vmem_limit_bytes=None):
    """Pallas forward pass. x_nchw: (B, C_in, H, W) float32 -> (B, num_classes)."""
    conv1_w, conv1_b, conv2_w, conv2_b, fc1_w, fc1_b, fc2_w, fc2_b = params
    B, Cin, H, W = x_nchw.shape
    K = kernel_size
    pad = K // 2
    assert H % 2 == 0 and W % 2 == 0, "max-pool path assumes even H, W"
    assert H >= 4 and W >= 4, "adaptive 2x2 pool needs a >=2x2 pooled map"
    assert conv2_lane_chunk % 128 == 0

    Hp, Wp = H + 2 * pad, W + 2 * pad
    PS = Hp * Wp                        # flattened padded image length
    L = H * Wp                          # conv-output lanes (cols >= W masked)
    max_off = (K - 1) * Wp + (K - 1)    # largest tap shift
    # Per-example lane stride: every tap / pool read of a valid position stays
    # inside the example's own lane block.
    SP = _round_up(max(PS, L + max_off, L + Wp + 1), 128)

    C1 = conv1_w.shape[0]
    C2 = conv2_w.shape[0]
    F1 = fc1_w.shape[0]
    NC = fc2_w.shape[0]

    # Batch tile: large enough to amortize per-step overhead and give the FC
    # matmuls N=BT lanes, but split into >=2 grid steps when possible so the
    # "parallel" batch axis feeds both TensorCores on v7x megacore.
    BT = max(1, min(int(max_batch_tile), (B + 1) // 2))
    num_tiles = (B + BT - 1) // BT
    B_pad = num_tiles * BT
    NL = BT * SP                                      # lanes per batch tile
    NTW = NL + _round_up(max(max_off, Wp + 1), 128)   # scratch width (read slack)
    CL = min(NL, int(conv2_lane_chunk))               # conv2 im2col lane chunk
    Hm, Wm = H // 2, W // 2

    # ---- layout conversion (glue, plain JAX) ----
    xp = jnp.pad(x_nchw.astype(jnp.float32),
                 ((0, B_pad - B), (0, 0), (pad, pad), (pad, pad)))
    xb = jnp.transpose(xp, (1, 0, 2, 3)).reshape(Cin, B_pad, PS)
    xb = jnp.pad(xb, ((0, 0), (0, 0), (0, SP - PS))).reshape(Cin, B_pad * SP)

    # conv1 weights stay f32 (VPU path, v5e has no bf16 VPU); conv2/fc -> bf16
    w1 = jnp.transpose(conv1_w, (0, 2, 3, 1)).reshape(C1, K * K * Cin)
    w1 = w1.astype(jnp.float32)
    b1 = conv1_b.reshape(C1, 1).astype(jnp.float32)
    w2 = jnp.transpose(conv2_w, (0, 2, 3, 1)).reshape(C2, K * K * C1)
    w2 = w2.astype(jnp.bfloat16)
    b2 = conv2_b.reshape(C2, 1).astype(jnp.float32)

    # fc1 columns reordered from torch flatten order (c*4+q) to (q*C2+c), with
    # the adaptive-pool 1/cnt averaging folded in (keeps sel exactly 0/1).
    h_bins, w_bins = _bins(Hm, 2), _bins(Wm, 2)
    cnts = np.array([(h1 - h0) * (w1_ - w0)
                     for (h0, h1) in h_bins for (w0, w1_) in w_bins], np.float32)
    inv_cnt = np.repeat(1.0 / cnts, C2)                       # column order (q, c)
    fw1 = jnp.transpose(fc1_w.reshape(F1, C2, 4), (0, 2, 1)).reshape(F1, 4 * C2)
    fw1 = (fw1.astype(jnp.float32) * jnp.asarray(inv_cnt)[None, :]).astype(jnp.bfloat16)
    fb1 = fc1_b.reshape(F1, 1).astype(jnp.float32)
    fw2 = fc2_w.astype(jnp.bfloat16)
    fb2 = fc2_b.reshape(NC, 1).astype(jnp.float32)

    # validity mask over one tile's lanes (valid conv-output positions only)
    lane = np.arange(NL)
    s = lane % SP
    mask = jnp.asarray(((s < L) & ((s % Wp) < W)).astype(np.float32)[None, :])

    # stride-2 max-pool grid + adaptive 2x2 pooling as a 0/1 selection matrix;
    # columns ordered q*BT + b so quadrant blocks are contiguous lane slices.
    sel_np = np.zeros((NL, 4 * BT), np.float32)
    for b in range(BT):
        for qh, (h0, h1) in enumerate(h_bins):
            for qw, (w0, w1_) in enumerate(w_bins):
                q = qh * 2 + qw
                for i in range(h0, h1):
                    for j in range(w0, w1_):
                        sel_np[b * SP + (2 * i) * Wp + (2 * j), q * BT + b] = 1.0
    sel = jnp.asarray(sel_np, dtype=jnp.bfloat16)

    kernel = functools.partial(_cnn_kernel, K=K, Cin=Cin, C1=C1, C2=C2, Wp=Wp,
                               pad=pad, NL=NL, BT=BT, CL=CL)

    # Advisory cost estimate computed from plain Python ints only.
    flops = B_pad * (2 * K * K * Cin * C1 * H * W
                     + 2 * K * K * C1 * C2 * H * W
                     + 2 * 4 * C2 * F1 + 2 * F1 * NC)
    bytes_accessed = (4 * Cin * B_pad * SP                        # input
                      + 4 * NL + 2 * NL * 4 * BT                  # mask + sel
                      + 4 * (C1 * K * K * Cin + C1 + C2 + F1 + NC)
                      + 2 * (C2 * K * K * C1 + F1 * 4 * C2 + NC * F1)
                      + 4 * B_pad * NC)                           # logits

    const = lambda i: (0, 0)
    in_specs = [
        pl.BlockSpec((Cin, NL), lambda i: (0, i)),     # x tile (default 2-deep pipeline)
        _const_block_spec((1, NL), const),             # validity mask
        _const_block_spec((NL, 4 * BT), const),        # 0/1 pool selection (bf16)
        _const_block_spec((C1, K * K * Cin), const),   # conv1 weights (f32, VPU)
        _const_block_spec((C1, 1), const),             # conv1 bias
        _const_block_spec((C2, K * K * C1), const),    # conv2 weights (bf16)
        _const_block_spec((C2, 1), const),             # conv2 bias
        _const_block_spec((F1, 4 * C2), const),        # fc1 weights (bf16, 1/cnt folded)
        _const_block_spec((F1, 1), const),             # fc1 bias
        _const_block_spec((NC, F1), const),            # fc2 weights (bf16)
        _const_block_spec((NC, 1), const),             # fc2 bias
    ]

    cp_kwargs = dict(dimension_semantics=("parallel",))
    if vmem_limit_bytes is not None:
        cp_kwargs["vmem_limit_bytes"] = int(vmem_limit_bytes)

    out = pl.pallas_call(
        kernel,
        out_shape=jax.ShapeDtypeStruct((num_tiles, NC, BT), jnp.float32),
        grid_spec=pltpu.PrefetchScalarGridSpec(
            num_scalar_prefetch=0,
            grid=(num_tiles,),
            in_specs=in_specs,
            out_specs=pl.BlockSpec((1, NC, BT), lambda i: (i, 0, 0)),
            scratch_shapes=[
                pltpu.VMEM((Cin, NTW), jnp.float32),          # staged input (+slack)
                pltpu.VMEM((C1, NTW), jnp.bfloat16),          # re-padded conv1 out
                pltpu.VMEM((K * K * C1, CL), jnp.bfloat16),   # conv2 im2col (chunk)
                pltpu.VMEM((C2, NTW), jnp.float32),           # conv2 out (+slack)
            ]),
        compiler_params=pltpu.CompilerParams(**cp_kwargs),
        cost_estimate=pl.CostEstimate(flops=int(flops), transcendentals=0,
                                      bytes_accessed=int(bytes_accessed)),
    )(xb, mask, sel, w1, b1, w2, b2, fw1, fb1, fw2, fb2)

    # (num_tiles, NC, BT) -> (B, NC)
    return jnp.transpose(out, (0, 2, 1)).reshape(B_pad, NC)[:B]


def init_params(key, *, num_classes, input_channels, conv1_channels=32,
                conv2_channels=64, fc1_units=128, kernel_size=3):
    """Deterministic synthetic init (torch-style uniform(+-1/sqrt(fan_in)))."""
    ks = jax.random.split(key, 8)
    K = kernel_size

    def u(k, shape, fan_in):
        bound = 1.0 / np.sqrt(fan_in)
        return jax.random.uniform(k, shape, jnp.float32, -bound, bound)

    conv1_w = u(ks[0], (conv1_channels, input_channels, K, K), input_channels * K * K)
    conv1_b = u(ks[1], (conv1_channels,), input_channels * K * K)
    conv2_w = u(ks[2], (conv2_channels, conv1_channels, K, K), conv1_channels * K * K)
    conv2_b = u(ks[3], (conv2_channels,), conv1_channels * K * K)
    fc1_w = u(ks[4], (fc1_units, conv2_channels * 4), conv2_channels * 4)
    fc1_b = u(ks[5], (fc1_units,), conv2_channels * 4)
    fc2_w = u(ks[6], (num_classes, fc1_units), fc1_units)
    fc2_b = u(ks[7], (num_classes,), fc1_units)
    return (conv1_w, conv1_b, conv2_w, conv2_b, fc1_w, fc1_b, fc2_w, fc2_b)


def reference_forward(x, params, *, matmul_dtype=None):
    """Pure-JAX reference matching the PyTorch forward semantics.

    matmul_dtype=jnp.bfloat16 mimics the kernel's bf16 MXU operands (with f32
    accumulation) for a tight apples-to-apples comparison; None = exact f32.
    """
    conv1_w, conv1_b, conv2_w, conv2_b, fc1_w, fc1_b, fc2_w, fc2_b = params
    dn = ('NCHW', 'OIHW', 'NCHW')
    prec = jax.lax.Precision.HIGHEST
    md = matmul_dtype

    def cast(a):
        return a.astype(md) if md is not None else a

    p = conv1_w.shape[-1] // 2
    # conv1 is computed in f32 in the kernel (VPU path) -> keep f32 here too
    y = jax.lax.conv_general_dilated(x, conv1_w, (1, 1), ((p, p), (p, p)),
                                     dimension_numbers=dn, precision=prec)
    y = jnp.maximum(y + conv1_b[None, :, None, None], 0.0)
    y = jax.lax.conv_general_dilated(cast(y), cast(conv2_w), (1, 1),
                                     ((p, p), (p, p)), dimension_numbers=dn,
                                     precision=prec,
                                     preferred_element_type=jnp.float32)
    y = jnp.maximum(y + conv2_b[None, :, None, None], 0.0)
    y = jax.lax.reduce_window(y, -jnp.inf, jax.lax.max,
                              (1, 1, 2, 2), (1, 1, 2, 2), 'VALID')
    if md is not None:
        y = y.astype(md).astype(jnp.float32)   # kernel feeds bf16 m2 to the MXU
    B, C, Hm, Wm = y.shape
    y = jax.lax.reduce_window(y, 0.0, jax.lax.add,
                              (1, 1, Hm // 2, Wm // 2),
                              (1, 1, Hm // 2, Wm // 2), 'VALID')
    y = y / ((Hm // 2) * (Wm // 2))
    y = y.reshape(B, -1)
    y = jnp.maximum(
        jnp.dot(cast(y), cast(fc1_w).T, precision=prec,
                preferred_element_type=jnp.float32) + fc1_b, 0.0)
    return jnp.dot(cast(y), cast(fc2_w).T, precision=prec,
                   preferred_element_type=jnp.float32) + fc2_b


if __name__ == "__main__":
    B, Cin, H, W = 4, 1, 16, 16
    NUM_CLASSES = 10

    key = jax.random.PRNGKey(0)
    kx, kp = jax.random.split(key)
    x = jax.random.normal(kx, (B, Cin, H, W), jnp.float32)
    params = init_params(kp, num_classes=NUM_CLASSES, input_channels=Cin)

    out = jax.jit(cnn_forward)(x, params)
    out = jax.block_until_ready(out)
    assert out.shape == (B, NUM_CLASSES)
    out_np = np.asarray(out)

    # Tight check vs a reference that mimics the kernel's bf16 MXU operands.
    ref_bf16 = np.asarray(reference_forward(x, params, matmul_dtype=jnp.bfloat16))
    if not np.allclose(out_np, ref_bf16, atol=2e-3, rtol=2e-3):
        err = float(np.max(np.abs(out_np - ref_bf16)))
        raise AssertionError(f"mismatch vs bf16-matched reference: max abs err {err}")

    # Loose check vs the exact f32 semantics of the PyTorch module
    # (tolerance reflects bf16 matmul operands with f32 accumulation).
    ref_f32 = np.asarray(reference_forward(x, params))
    if not np.allclose(out_np, ref_f32, atol=2.5e-2, rtol=2.5e-2):
        err = float(np.max(np.abs(out_np - ref_f32)))
        raise AssertionError(f"mismatch vs f32 reference: max abs err {err}")

    print("KERNEL_OK")
</pallas_src>

<mosaic_0001>
module attributes {stable_mosaic.version = 11 : i64} {
  func.func @_cnn_kernel(%arg0: i32, %arg1: memref<1x768xf32, #tpu.memory_space<vmem>>, %arg2: memref<1x768xf32, #tpu.memory_space<vmem>>, %arg3: memref<768x8xbf16, #tpu.memory_space<vmem>>, %arg4: memref<32x9xf32, #tpu.memory_space<vmem>>, %arg5: memref<32x1xf32, #tpu.memory_space<vmem>>, %arg6: memref<64x288xbf16, #tpu.memory_space<vmem>>, %arg7: memref<64x1xf32, #tpu.memory_space<vmem>>, %arg8: memref<128x256xbf16, #tpu.memory_space<vmem>>, %arg9: memref<128x1xf32, #tpu.memory_space<vmem>>, %arg10: memref<10x128xbf16, #tpu.memory_space<vmem>>, %arg11: memref<10x1xf32, #tpu.memory_space<vmem>>, %arg12: memref<1x10x2xf32, #tpu.memory_space<vmem>>, %arg13: memref<1x896xf32, #tpu.memory_space<vmem>>, %arg14: memref<32x896xbf16, #tpu.memory_space<vmem>>, %arg15: memref<288x768xbf16, #tpu.memory_space<vmem>>, %arg16: memref<64x896xf32, #tpu.memory_space<vmem>>) attributes {dimension_semantics = [#tpu.dimension_semantics<parallel>], iteration_bounds = array<i64: 2>, scalar_prefetch = 0 : i64, scratch_operands = 4 : i64, tpu.core_type = #tpu.core_type<tc>, window_params = [{transform_indices = @transform_0, window_bounds = array<i64: 1, 768>}, {pipeline_mode = #tpu.pipeline_mode<synchronous>, transform_indices = @transform_1, window_bounds = array<i64: 1, 768>}, {pipeline_mode = #tpu.pipeline_mode<synchronous>, transform_indices = @transform_2, window_bounds = array<i64: 768, 8>}, {pipeline_mode = #tpu.pipeline_mode<synchronous>, transform_indices = @transform_3, window_bounds = array<i64: 32, 9>}, {pipeline_mode = #tpu.pipeline_mode<synchronous>, transform_indices = @transform_4, window_bounds = array<i64: 32, 1>}, {pipeline_mode = #tpu.pipeline_mode<synchronous>, transform_indices = @transform_5, window_bounds = array<i64: 64, 288>}, {pipeline_mode = #tpu.pipeline_mode<synchronous>, transform_indices = @transform_6, window_bounds = array<i64: 64, 1>}, {pipeline_mode = #tpu.pipeline_mode<synchronous>, transform_indices = @transform_7, window_bounds = array<i64: 128, 256>}, {pipeline_mode = #tpu.pipeline_mode<synchronous>, transform_indices = @transform_8, window_bounds = array<i64: 128, 1>}, {pipeline_mode = #tpu.pipeline_mode<synchronous>, transform_indices = @transform_9, window_bounds = array<i64: 10, 128>}, {pipeline_mode = #tpu.pipeline_mode<synchronous>, transform_indices = @transform_10, window_bounds = array<i64: 10, 1>}, {transform_indices = @transform_11, window_bounds = array<i64: 1, 10, 2>}]} {
    %c0 = arith.constant 0 : index
    %c0_0 = arith.constant 0 : index
    %0 = vector.load %arg1[%c0, %c0_0] : memref<1x768xf32, #tpu.memory_space<vmem>>, vector<1x768xf32>
    %c0_1 = arith.constant 0 : index
    %c0_2 = arith.constant 0 : index
    %1 = vector.load %arg13[%c0_1, %c0_2] : memref<1x896xf32, #tpu.memory_space<vmem>>, vector<1x768xf32>
    tpu.vector_store %arg13[%c0_1, %c0_2], %0 {strides = array<i32>} : memref<1x896xf32, #tpu.memory_space<vmem>>, vector<1x768xf32>,
    %cst = arith.constant 0.000000e+00 : f32
    %2 = vector.broadcast %cst : f32 to vector<1x128xf32>
    %c0_3 = arith.constant 0 : index
    %c768 = arith.constant 768 : index
    %3 = vector.load %arg13[%c0_3, %c768] : memref<1x896xf32, #tpu.memory_space<vmem>>, vector<1x128xf32>
    tpu.vector_store %arg13[%c0_3, %c768], %2 {strides = array<i32>} : memref<1x896xf32, #tpu.memory_space<vmem>>, vector<1x128xf32>,
    %c0_4 = arith.constant 0 : index
    %c0_5 = arith.constant 0 : index
    %4 = vector.load %arg4[%c0_4, %c0_5] : memref<32x9xf32, #tpu.memory_space<vmem>>, vector<32x9xf32>
    %5 = vector.extract_strided_slice %4 {offsets = [0, 0], sizes = [32, 1], strides = [1, 1]} : vector<32x9xf32> to vector<32x1xf32>
    %c0_6 = arith.constant 0 : index
    %c0_7 = arith.constant 0 : index
    %6 = vector.load %arg13[%c0_6, %c0_7] : memref<1x896xf32, #tpu.memory_space<vmem>>, vector<1x768xf32>
    %7 = vector.broadcast %5 : vector<32x1xf32> to vector<32x768xf32>
    %8 = vector.broadcast %6 : vector<1x768xf32> to vector<32x768xf32>
    %9 = arith.mulf %7, %8 : vector<32x768xf32>
    %10 = vector.extract_strided_slice %4 {offsets = [0, 1], sizes = [32, 1], strides = [1, 1]} : vector<32x9xf32> to vector<32x1xf32>
    %c0_8 = arith.constant 0 : index
    %c1 = arith.constant 1 : index
    %11 = vector.load %arg13[%c0_8, %c1] : memref<1x896xf32, #tpu.memory_space<vmem>>, vector<1x768xf32>
    %12 = vector.broadcast %10 : vector<32x1xf32> to vector<32x768xf32>
    %13 = vector.broadcast %11 : vector<1x768xf32> to vector<32x768xf32>
    %14 = arith.mulf %12, %13 : vector<32x768xf32>
    %15 = arith.addf %9, %14 : vector<32x768xf32>
    %16 = vector.extract_strided_slice %4 {offsets = [0, 2], sizes = [32, 1], strides = [1, 1]} : vector<32x9xf32> to vector<32x1xf32>
    %c0_9 = arith.constant 0 : index
    %c2 = arith.constant 2 : index
    %17 = vector.load %arg13[%c0_9, %c2] : memref<1x896xf32, #tpu.memory_space<vmem>>, vector<1x768xf32>
    %18 = vector.broadcast %16 : vector<32x1xf32> to vector<32x768xf32>
    %19 = vector.broadcast %17 : vector<1x768xf32> to vector<32x768xf32>
    %20 = arith.mulf %18, %19 : vector<32x768xf32>
    %21 = arith.addf %15, %20 : vector<32x768xf32>
    %22 = vector.extract_strided_slice %4 {offsets = [0, 3], sizes = [32, 1], strides = [1, 1]} : vector<32x9xf32> to vector<32x1xf32>
    %c0_10 = arith.constant 0 : index
    %c18 = arith.constant 18 : index
    %23 = vector.load %arg13[%c0_10, %c18] : memref<1x896xf32, #tpu.memory_space<vmem>>, vector<1x768xf32>
    %24 = vector.broadcast %22 : vector<32x1xf32> to vector<32x768xf32>
    %25 = vector.broadcast %23 : vector<1x768xf32> to vector<32x768xf32>
    %26 = arith.mulf %24, %25 : vector<32x768xf32>
    %27 = arith.addf %21, %26 : vector<32x768xf32>
    %28 = vector.extract_strided_slice %4 {offsets = [0, 4], sizes = [32, 1], strides = [1, 1]} : vector<32x9xf32> to vector<32x1xf32>
    %c0_11 = arith.constant 0 : index
    %c19 = arith.constant 19 : index
    %29 = vector.load %arg13[%c0_11, %c19] : memref<1x896xf32, #tpu.memory_space<vmem>>, vector<1x768xf32>
    %30 = vector.broadcast %28 : vector<32x1xf32> to vector<32x768xf32>
    %31 = vector.broadcast %29 : vector<1x768xf32> to vector<32x768xf32>
    %32 = arith.mulf %30, %31 : vector<32x768xf32>
    %33 = arith.addf %27, %32 : vector<32x768xf32>
    %34 = vector.extract_strided_slice %4 {offsets = [0, 5], sizes = [32, 1], strides = [1, 1]} : vector<32x9xf32> to vector<32x1xf32>
    %c0_12 = arith.constant 0 : index
    %c20 = arith.constant 20 : index
    %35 = vector.load %arg13[%c0_12, %c20] : memref<1x896xf32, #tpu.memory_space<vmem>>, vector<1x768xf32>
    %36 = vector.broadcast %34 : vector<32x1xf32> to vector<32x768xf32>
    %37 = vector.broadcast %35 : vector<1x768xf32> to vector<32x768xf32>
    %38 = arith.mulf %36, %37 : vector<32x768xf32>
    %39 = arith.addf %33, %38 : vector<32x768xf32>
    %40 = vector.extract_strided_slice %4 {offsets = [0, 6], sizes = [32, 1], strides = [1, 1]} : vector<32x9xf32> to vector<32x1xf32>
    %c0_13 = arith.constant 0 : index
    %c36 = arith.constant 36 : index
    %41 = vector.load %arg13[%c0_13, %c36] : memref<1x896xf32, #tpu.memory_space<vmem>>, vector<1x768xf32>
    %42 = vector.broadcast %40 : vector<32x1xf32> to vector<32x768xf32>
    %43 = vector.broadcast %41 : vector<1x768xf32> to vector<32x768xf32>
    %44 = arith.mulf %42, %43 : vector<32x768xf32>
    %45 = arith.addf %39, %44 : vector<32x768xf32>
    %46 = vector.extract_strided_slice %4 {offsets = [0, 7], sizes = [32, 1], strides = [1, 1]} : vector<32x9xf32> to vector<32x1xf32>
    %c0_14 = arith.constant 0 : index
    %c37 = arith.constant 37 : index
    %47 = vector.load %arg13[%c0_14, %c37] : memref<1x896xf32, #tpu.memory_space<vmem>>, vector<1x768xf32>
    %48 = vector.broadcast %46 : vector<32x1xf32> to vector<32x768xf32>
    %49 = vector.broadcast %47 : vector<1x768xf32> to vector<32x768xf32>
    %50 = arith.mulf %48, %49 : vector<32x768xf32>
    %51 = arith.addf %45, %50 : vector<32x768xf32>
    %52 = vector.extract_strided_slice %4 {offsets = [0, 8], sizes = [32, 1], strides = [1, 1]} : vector<32x9xf32> to vector<32x1xf32>
    %c0_15 = arith.constant 0 : index
    %c38 = arith.constant 38 : index
    %53 = vector.load %arg13[%c0_15, %c38] : memref<1x896xf32, #tpu.memory_space<vmem>>, vector<1x768xf32>
    %54 = vector.broadcast %52 : vector<32x1xf32> to vector<32x768xf32>
    %55 = vector.broadcast %53 : vector<1x768xf32> to vector<32x768xf32>
    %56 = arith.mulf %54, %55 : vector<32x768xf32>
    %57 = arith.addf %51, %56 : vector<32x768xf32>
    %c0_16 = arith.constant 0 : index
    %c0_17 = arith.constant 0 : index
    %58 = vector.load %arg5[%c0_16, %c0_17] : memref<32x1xf32, #tpu.memory_space<vmem>>, vector<32x1xf32>
    %59 = vector.broadcast %58 : vector<32x1xf32> to vector<32x768xf32>
    %60 = arith.addf %57, %59 : vector<32x768xf32>
    %cst_18 = arith.constant 0.000000e+00 : f32
    %61 = vector.broadcast %cst_18 : f32 to vector<32x768xf32>
    %62 = arith.maximumf %60, %61 : vector<32x768xf32>
    %c0_19 = arith.constant 0 : index
    %c0_20 = arith.constant 0 : index
    %63 = vector.load %arg2[%c0_19, %c0_20] : memref<1x768xf32, #tpu.memory_space<vmem>>, vector<1x768xf32>
    %64 = vector.broadcast %63 : vector<1x768xf32> to vector<32x768xf32>
    %65 = arith.mulf %62, %64 : vector<32x768xf32>
    %cst_21 = arith.constant 0.000000e+00 : bf16
    %66 = vector.broadcast %cst_21 : bf16 to vector<32x19xbf16>
    %c0_22 = arith.constant 0 : index
    %c0_23 = arith.constant 0 : index
    %67 = vector.load %arg14[%c0_22, %c0_23] : memref<32x896xbf16, #tpu.memory_space<vmem>>, vector<32x19xbf16>
    tpu.vector_store %arg14[%c0_22, %c0_23], %66 {strides = array<i32>} : memref<32x896xbf16, #tpu.memory_space<vmem>>, vector<32x19xbf16>,
    %68 = arith.truncf %65 : vector<32x768xf32> to vector<32x768xbf16>
    %c0_24 = arith.constant 0 : index
    %c19_25 = arith.constant 19 : index
    %69 = vector.load %arg14[%c0_24, %c19_25] : memref<32x896xbf16, #tpu.memory_space<vmem>>, vector<32x768xbf16>
    tpu.vector_store %arg14[%c0_24, %c19_25], %68 {strides = array<i32>} : memref<32x896xbf16, #tpu.memory_space<vmem>>, vector<32x768xbf16>,
    %cst_26 = arith.constant 0.000000e+00 : bf16
    %70 = vector.broadcast %cst_26 : bf16 to vector<32x109xbf16>
    %c0_27 = arith.constant 0 : index
    %c787 = arith.constant 787 : index
    %71 = vector.load %arg14[%c0_27, %c787] : memref<32x896xbf16, #tpu.memory_space<vmem>>, vector<32x109xbf16>
    tpu.vector_store %arg14[%c0_27, %c787], %70 {strides = array<i32>} : memref<32x896xbf16, #tpu.memory_space<vmem>>, vector<32x109xbf16>,
    %c0_28 = arith.constant 0 : index
    %c0_29 = arith.constant 0 : index
    %72 = vector.load %arg14[%c0_28, %c0_29] : memref<32x896xbf16, #tpu.memory_space<vmem>>, vector<32x768xbf16>
    %c0_30 = arith.constant 0 : index
    %c0_31 = arith.constant 0 : index
    %73 = vector.load %arg15[%c0_30, %c0_31] : memref<288x768xbf16, #tpu.memory_space<vmem>>, vector<32x768xbf16>
    tpu.vector_store %arg15[%c0_30, %c0_31], %72 {strides = array<i32>} : memref<288x768xbf16, #tpu.memory_space<vmem>>, vector<32x768xbf16>,
    %c0_32 = arith.constant 0 : index
    %c1_33 = arith.constant 1 : index
    %74 = vector.load %arg14[%c0_32, %c1_33] : memref<32x896xbf16, #tpu.memory_space<vmem>>, vector<32x768xbf16>
    %c32 = arith.constant 32 : index
    %c0_34 = arith.constant 0 : index
    %75 = vector.load %arg15[%c32, %c0_34] : memref<288x768xbf16, #tpu.memory_space<vmem>>, vector<32x768xbf16>
    tpu.vector_store %arg15[%c32, %c0_34], %74 {strides = array<i32>} : memref<288x768xbf16, #tpu.memory_space<vmem>>, vector<32x768xbf16>,
    %c0_35 = arith.constant 0 : index
    %c2_36 = arith.constant 2 : index
    %76 = vector.load %arg14[%c0_35, %c2_36] : memref<32x896xbf16, #tpu.memory_space<vmem>>, vector<32x768xbf16>
    %c64 = arith.constant 64 : index
    %c0_37 = arith.constant 0 : index
    %77 = vector.load %arg15[%c64, %c0_37] : memref<288x768xbf16, #tpu.memory_space<vmem>>, vector<32x768xbf16>
    tpu.vector_store %arg15[%c64, %c0_37], %76 {strides = array<i32>} : memref<288x768xbf16, #tpu.memory_space<vmem>>, vector<32x768xbf16>,
    %c0_38 = arith.constant 0 : index
    %c18_39 = arith.constant 18 : index
    %78 = vector.load %arg14[%c0_38, %c18_39] : memref<32x896xbf16, #tpu.memory_space<vmem>>, vector<32x768xbf16>
    %c96 = arith.constant 96 : index
    %c0_40 = arith.constant 0 : index
    %79 = vector.load %arg15[%c96, %c0_40] : memref<288x768xbf16, #tpu.memory_space<vmem>>, vector<32x768xbf16>
    tpu.vector_store %arg15[%c96, %c0_40], %78 {strides = array<i32>} : memref<288x768xbf16, #tpu.memory_space<vmem>>, vector<32x768xbf16>,
    %c0_41 = arith.constant 0 : index
    %c19_42 = arith.constant 19 : index
    %80 = vector.load %arg14[%c0_41, %c19_42] : memref<32x896xbf16, #tpu.memory_space<vmem>>, vector<32x768xbf16>
    %c128 = arith.constant 128 : index
    %c0_43 = arith.constant 0 : index
    %81 = vector.load %arg15[%c128, %c0_43] : memref<288x768xbf16, #tpu.memory_space<vmem>>, vector<32x768xbf16>
    tpu.vector_store %arg15[%c128, %c0_43], %80 {strides = array<i32>} : memref<288x768xbf16, #tpu.memory_space<vmem>>, vector<32x768xbf16>,
    %c0_44 = arith.constant 0 : index
    %c20_45 = arith.constant 20 : index
    %82 = vector.load %arg14[%c0_44, %c20_45] : memref<32x896xbf16, #tpu.memory_space<vmem>>, vector<32x768xbf16>
    %c160 = arith.constant 160 : index
    %c0_46 = arith.constant 0 : index
    %83 = vector.load %arg15[%c160, %c0_46] : memref<288x768xbf16, #tpu.memory_space<vmem>>, vector<32x768xbf16>
    tpu.vector_store %arg15[%c160, %c0_46], %82 {strides = array<i32>} : memref<288x768xbf16, #tpu.memory_space<vmem>>, vector<32x768xbf16>,
    %c0_47 = arith.constant 0 : index
    %c36_48 = arith.constant 36 : index
    %84 = vector.load %arg14[%c0_47, %c36_48] : memref<32x896xbf16, #tpu.memory_space<vmem>>, vector<32x768xbf16>
    %c192 = arith.constant 192 : index
    %c0_49 = arith.constant 0 : index
    %85 = vector.load %arg15[%c192, %c0_49] : memref<288x768xbf16, #tpu.memory_space<vmem>>, vector<32x768xbf16>
    tpu.vector_store %arg15[%c192, %c0_49], %84 {strides = array<i32>} : memref<288x768xbf16, #tpu.memory_space<vmem>>, vector<32x768xbf16>,
    %c0_50 = arith.constant 0 : index
    %c37_51 = arith.constant 37 : index
    %86 = vector.load %arg14[%c0_50, %c37_51] : memref<32x896xbf16, #tpu.memory_space<vmem>>, vector<32x768xbf16>
    %c224 = arith.constant 224 : index
    %c0_52 = arith.constant 0 : index
    %87 = vector.load %arg15[%c224, %c0_52] : memref<288x768xbf16, #tpu.memory_space<vmem>>, vector<32x768xbf16>
    tpu.vector_store %arg15[%c224, %c0_52], %86 {strides = array<i32>} : memref<288x768xbf16, #tpu.memory_space<vmem>>, vector<32x768xbf16>,
    %c0_53 = arith.constant 0 : index
    %c38_54 = arith.constant 38 : index
    %88 = vector.load %arg14[%c0_53, %c38_54] : memref<32x896xbf16, #tpu.memory_space<vmem>>, vector<32x768xbf16>
    %c256 = arith.constant 256 : index
    %c0_55 = arith.constant 0 : index
    %89 = vector.load %arg15[%c256, %c0_55] : memref<288x768xbf16, #tpu.memory_space<vmem>>, vector<32x768xbf16>
    tpu.vector_store %arg15[%c256, %c0_55], %88 {strides = array<i32>} : memref<288x768xbf16, #tpu.memory_space<vmem>>, vector<32x768xbf16>,
    %c0_56 = arith.constant 0 : index
    %c0_57 = arith.constant 0 : index
    %90 = vector.load %arg6[%c0_56, %c0_57] : memref<64x288xbf16, #tpu.memory_space<vmem>>, vector<64x288xbf16>
    %c0_58 = arith.constant 0 : index
    %c0_59 = arith.constant 0 : index
    %91 = vector.load %arg15[%c0_58, %c0_59] : memref<288x768xbf16, #tpu.memory_space<vmem>>, vector<288x768xbf16>
    %cst_60 = arith.constant dense<0.000000e+00> : vector<64x768xf32>
    %92 = tpu.matmul %90, %91, %cst_60 {dimension_numbers = #tpu.dot_dimension_numbers<[1], [0], [0], [1], [0, 0, 1, 1], [], []>} : vector<64x288xbf16>, vector<288x768xbf16>, vector<64x768xf32> -> vector<64x768xf32>
    %c0_61 = arith.constant 0 : index
    %c0_62 = arith.constant 0 : index
    %93 = vector.load %arg7[%c0_61, %c0_62] : memref<64x1xf32, #tpu.memory_space<vmem>>, vector<64x1xf32>
    %94 = vector.broadcast %93 : vector<64x1xf32> to vector<64x768xf32>
    %95 = arith.addf %92, %94 : vector<64x768xf32>
    %cst_63 = arith.constant 0.000000e+00 : f32
    %96 = vector.broadcast %cst_63 : f32 to vector<64x768xf32>
    %97 = arith.maximumf %95, %96 : vector<64x768xf32>
    %c0_64 = arith.constant 0 : index
    %c0_65 = arith.constant 0 : index
    %98 = vector.load %arg16[%c0_64, %c0_65] : memref<64x896xf32, #tpu.memory_space<vmem>>, vector<64x768xf32>
    tpu.vector_store %arg16[%c0_64, %c0_65], %97 {strides = array<i32>} : memref<64x896xf32, #tpu.memory_space<vmem>>, vector<64x768xf32>,
    %cst_66 = arith.constant 0.000000e+00 : f32
    %99 = vector.broadcast %cst_66 : f32 to vector<64x128xf32>
    %c0_67 = arith.constant 0 : index
    %c768_68 = arith.constant 768 : index
    %100 = vector.load %arg16[%c0_67, %c768_68] : memref<64x896xf32, #tpu.memory_space<vmem>>, vector<64x128xf32>
    tpu.vector_store %arg16[%c0_67, %c768_68], %99 {strides = array<i32>} : memref<64x896xf32, #tpu.memory_space<vmem>>, vector<64x128xf32>,
    %c0_69 = arith.constant 0 : index
    %c0_70 = arith.constant 0 : index
    %101 = vector.load %arg16[%c0_69, %c0_70] : memref<64x896xf32, #tpu.memory_space<vmem>>, vector<64x768xf32>
    %c0_71 = arith.constant 0 : index
    %c1_72 = arith.constant 1 : index
    %102 = vector.load %arg16[%c0_71, %c1_72] : memref<64x896xf32, #tpu.memory_space<vmem>>, vector<64x768xf32>
    %103 = arith.maximumf %101, %102 : vector<64x768xf32>
    %c0_73 = arith.constant 0 : index
    %c18_74 = arith.constant 18 : index
    %104 = vector.load %arg16[%c0_73, %c18_74] : memref<64x896xf32, #tpu.memory_space<vmem>>, vector<64x768xf32>
    %c0_75 = arith.constant 0 : index
    %c19_76 = arith.constant 19 : index
    %105 = vector.load %arg16[%c0_75, %c19_76] : memref<64x896xf32, #tpu.memory_space<vmem>>, vector<64x768xf32>
    %106 = arith.maximumf %104, %105 : vector<64x768xf32>
    %107 = arith.maximumf %103, %106 : vector<64x768xf32>
    %108 = arith.truncf %107 : vector<64x768xf32> to vector<64x768xbf16>
    %c0_77 = arith.constant 0 : index
    %c0_78 = arith.constant 0 : index
    %109 = vector.load %arg3[%c0_77, %c0_78] : memref<768x8xbf16, #tpu.memory_space<vmem>>, vector<768x8xbf16>
    %cst_79 = arith.constant dense<0.000000e+00> : vector<64x8xf32>
    %110 = tpu.matmul %108, %109, %cst_79 {dimension_numbers = #tpu.dot_dimension_numbers<[1], [0], [0], [1], [0, 0, 1, 1], [], []>} : vector<64x768xbf16>, vector<768x8xbf16>, vector<64x8xf32> -> vector<64x8xf32>
    %111 = vector.extract_strided_slice %110 {offsets = [0, 0], sizes = [64, 2], strides = [1, 1]} : vector<64x8xf32> to vector<64x2xf32>
    %112 = vector.extract_strided_slice %110 {offsets = [0, 2], sizes = [64, 2], strides = [1, 1]} : vector<64x8xf32> to vector<64x2xf32>
    %113 = vector.extract_strided_slice %110 {offsets = [0, 4], sizes = [64, 2], strides = [1, 1]} : vector<64x8xf32> to vector<64x2xf32>
    %114 = vector.extract_strided_slice %110 {offsets = [0, 6], sizes = [64, 2], strides = [1, 1]} : vector<64x8xf32> to vector<64x2xf32>
    %115 = tpu.concatenate %111, %112, %113, %114 in 0 : vector<64x2xf32>, vector<64x2xf32>, vector<64x2xf32>, vector<64x2xf32> -> vector<256x2xf32>
    %c0_80 = arith.constant 0 : index
    %c0_81 = arith.constant 0 : index
    %116 = vector.load %arg8[%c0_80, %c0_81] : memref<128x256xbf16, #tpu.memory_space<vmem>>, vector<128x256xbf16>
    %117 = arith.truncf %115 : vector<256x2xf32> to vector<256x2xbf16>
    %cst_82 = arith.constant dense<0.000000e+00> : vector<128x2xf32>
    %118 = tpu.matmul %116, %117, %cst_82 {dimension_numbers = #tpu.dot_dimension_numbers<[1], [0], [0], [1], [0, 0, 1, 1], [], []>} : vector<128x256xbf16>, vector<256x2xbf16>, vector<128x2xf32> -> vector<128x2xf32>
    %c0_83 = arith.constant 0 : index
    %c0_84 = arith.constant 0 : index
    %119 = vector.load %arg9[%c0_83, %c0_84] : memref<128x1xf32, #tpu.memory_space<vmem>>, vector<128x1xf32>
    %120 = vector.broadcast %119 : vector<128x1xf32> to vector<128x2xf32>
    %121 = arith.addf %118, %120 : vector<128x2xf32>
    %cst_85 = arith.constant 0.000000e+00 : f32
    %122 = vector.broadcast %cst_85 : f32 to vector<128x2xf32>
    %123 = arith.maximumf %121, %122 : vector<128x2xf32>
    %c0_86 = arith.constant 0 : index
    %c0_87 = arith.constant 0 : index
    %124 = vector.load %arg10[%c0_86, %c0_87] : memref<10x128xbf16, #tpu.memory_space<vmem>>, vector<10x128xbf16>
    %125 = arith.truncf %123 : vector<128x2xf32> to vector<128x2xbf16>
    %cst_88 = arith.constant dense<0.000000e+00> : vector<10x2xf32>
    %126 = tpu.matmul %124, %125, %cst_88 {dimension_numbers = #tpu.dot_dimension_numbers<[1], [0], [0], [1], [0, 0, 1, 1], [], []>} : vector<10x128xbf16>, vector<128x2xbf16>, vector<10x2xf32> -> vector<10x2xf32>
    %c0_89 = arith.constant 0 : index
    %c0_90 = arith.constant 0 : index
    %127 = vector.load %arg11[%c0_89, %c0_90] : memref<10x1xf32, #tpu.memory_space<vmem>>, vector<10x1xf32>
    %128 = vector.broadcast %127 : vector<10x1xf32> to vector<10x2xf32>
    %129 = arith.addf %126, %128 : vector<10x2xf32>
    %c0_91 = arith.constant 0 : index
    %c0_92 = arith.constant 0 : index
    %c0_93 = arith.constant 0 : index
    %130 = vector.load %arg12[%c0_91, %c0_92, %c0_93] : memref<1x10x2xf32, #tpu.memory_space<vmem>>, vector<1x10x2xf32>
    %131 = vector.shape_cast %130 : vector<1x10x2xf32> to vector<10x2xf32>
    %132 = vector.shape_cast %129 : vector<10x2xf32> to vector<1x10x2xf32>
    tpu.vector_store %arg12[%c0_91, %c0_92, %c0_93], %132 {strides = array<i32>} : memref<1x10x2xf32, #tpu.memory_space<vmem>>, vector<1x10x2xf32>,
    return
  }
  func.func @transform_0(%arg0: i32) -> (i32, i32) {
    %c0_i32 = arith.constant 0 : i32
    %c0_i32_0 = arith.constant 0 : i32
    return %c0_i32, %arg0 : i32, i32
  }
  func.func @transform_1(%arg0: i32) -> (i32, i32) {
    %c0_i32 = arith.constant 0 : i32
    %c0_i32_0 = arith.constant 0 : i32
    %c0_i32_1 = arith.constant 0 : i32
    return %c0_i32, %c0_i32_0 : i32, i32
  }
  func.func @transform_2(%arg0: i32) -> (i32, i32) {
    %c0_i32 = arith.constant 0 : i32
    %c0_i32_0 = arith.constant 0 : i32
    %c0_i32_1 = arith.constant 0 : i32
    return %c0_i32, %c0_i32_0 : i32, i32
  }
  func.func @transform_3(%arg0: i32) -> (i32, i32) {
    %c0_i32 = arith.constant 0 : i32
    %c0_i32_0 = arith.constant 0 : i32
    %c0_i32_1 = arith.constant 0 : i32
    return %c0_i32, %c0_i32_0 : i32, i32
  }
  func.func @transform_4(%arg0: i32) -> (i32, i32) {
    %c0_i32 = arith.constant 0 : i32
    %c0_i32_0 = arith.constant 0 : i32
    %c0_i32_1 = arith.constant 0 : i32
    return %c0_i32, %c0_i32_0 : i32, i32
  }
  func.func @transform_5(%arg0: i32) -> (i32, i32) {
    %c0_i32 = arith.constant 0 : i32
    %c0_i32_0 = arith.constant 0 : i32
    %c0_i32_1 = arith.constant 0 : i32
    return %c0_i32, %c0_i32_0 : i32, i32
  }
  func.func @transform_6(%arg0: i32) -> (i32, i32) {
    %c0_i32 = arith.constant 0 : i32
    %c0_i32_0 = arith.constant 0 : i32
    %c0_i32_1 = arith.constant 0 : i32
    return %c0_i32, %c0_i32_0 : i32, i32
  }
  func.func @transform_7(%arg0: i32) -> (i32, i32) {
    %c0_i32 = arith.constant 0 : i32
    %c0_i32_0 = arith.constant 0 : i32
    %c0_i32_1 = arith.constant 0 : i32
    return %c0_i32, %c0_i32_0 : i32, i32
  }
  func.func @transform_8(%arg0: i32) -> (i32, i32) {
    %c0_i32 = arith.constant 0 : i32
    %c0_i32_0 = arith.constant 0 : i32
    %c0_i32_1 = arith.constant 0 : i32
    return %c0_i32, %c0_i32_0 : i32, i32
  }
  func.func @transform_9(%arg0: i32) -> (i32, i32) {
    %c0_i32 = arith.constant 0 : i32
    %c0_i32_0 = arith.constant 0 : i32
    %c0_i32_1 = arith.constant 0 : i32
    return %c0_i32, %c0_i32_0 : i32, i32
  }
  func.func @transform_10(%arg0: i32) -> (i32, i32) {
    %c0_i32 = arith.constant 0 : i32
    %c0_i32_0 = arith.constant 0 : i32
    %c0_i32_1 = arith.constant 0 : i32
    return %c0_i32, %c0_i32_0 : i32, i32
  }
  func.func @transform_11(%arg0: i32) -> (i32, i32, i32) {
    %c0_i32 = arith.constant 0 : i32
    %c0_i32_0 = arith.constant 0 : i32
    %c0_i32_1 = arith.constant 0 : i32
    return %arg0, %c0_i32, %c0_i32_0 : i32, i32, i32
  }
}

</mosaic_0001>

<llo_original>
// kernel: cnn_forward.1
$region0: #{cnn_forward.1}
  #allocation0 [shape = 'u32[]', space=smem, size = 0x4, offset = 0x4, fixed_abs, tag = 'smem constant byte address 0x4 - core index']
  #allocation1 [shape = 'u32[72,128]{1,0:T(1,128)}', space=vmem, size = 0x9000, scoped, tag = 'internal scratch']
  #allocation2 [shape = 'f32[1,896]{1,0:T(1,128)}', space=vmem, size = 0xe00, scoped, tag = 'scratch operand']
  #allocation3 [shape = 'bf16[32,896]{1,0:T(8,128)(2,1)}', space=vmem, size = 0xe000, scoped, tag = 'scratch operand']
  #allocation4 [shape = 'bf16[288,768]{1,0:T(8,128)(2,1)}', space=vmem, size = 0x6c000, scoped, tag = 'scratch operand']
  #allocation5 [shape = 'f32[64,896]{1,0:T(8,128)}', space=vmem, size = 0x38000, scoped, tag = 'scratch operand']
  %s0 = inlined_call_operand.vmem [shape: f32[1,1536], index: 0, kind: input, shape index: {}]
  %s1 = inlined_call_operand.vmem [shape: f32[1,768], index: 1, kind: input, shape index: {}]
  %s2 = inlined_call_operand.vmem [shape: bf16[768,8], index: 2, kind: input, shape index: {}]
  %s3 = inlined_call_operand.vmem [shape: f32[32,9], index: 3, kind: input, shape index: {}]
  %s4 = inlined_call_operand.vmem [shape: f32[32,1], index: 4, kind: input, shape index: {}]
  %s5 = inlined_call_operand.vmem [shape: bf16[64,288], index: 5, kind: input, shape index: {}]
  %s6 = inlined_call_operand.vmem [shape: f32[64,1], index: 6, kind: input, shape index: {}]
  %s7 = inlined_call_operand.vmem [shape: bf16[128,256], index: 7, kind: input, shape index: {}]
  %s8 = inlined_call_operand.vmem [shape: f32[128,1], index: 8, kind: input, shape index: {}]
  %s9 = inlined_call_operand.vmem [shape: bf16[10,128], index: 9, kind: input, shape index: {}]
  %s10 = inlined_call_operand.vmem [shape: f32[10,1], index: 10, kind: input, shape index: {}]
  %s11 = inlined_call_operand.vmem [shape: f32[2,10,2], index: 11, kind: output, shape index: {}]
  %s12 = sld [smem:[#allocation0]]
  $region77: #{cnn_forward.1} parent=0
    _
  %s14 = ssub.s32 1, %s12
  %s15 = scalar_select 0, %s14, %s12
  loop: start=0, step=1, limit=4
  $region2: #{cnn_forward.1} parent=0 // loop_pre_header
    _
  $region3: #{cnn_forward.1} parent=0 // loop_header
    %s17 = sphi 0, %s21
    %p18 = scmp.ge.s32.totalorder %s17, 4
    %s27 = sphi 0, %s29
    %s30 = sphi 0, %s27
    %s31 = sphi 0, %s30
    %s47 = sphi 0, %s31
    %s51 = sphi 0, %s51
    %s53 = sphi 0, %s51
    %s54 = sphi 0, %s53
    %s68 = sphi 0, %s54
    %s72 = sphi 0, %s72
    %s74 = sphi 0, %s72
    %s75 = sphi 0, %s74
    %s89 = sphi 0, %s75
    %s93 = sphi 0, %s93
    %s95 = sphi 0, %s93
    %s96 = sphi 0, %s95
    %s110 = sphi 0, %s96
    %s114 = sphi 0, %s114
    %s116 = sphi 0, %s114
    %s117 = sphi 0, %s116
    %s131 = sphi 0, %s117
    %s135 = sphi 0, %s135
    %s137 = sphi 0, %s135
    %s138 = sphi 0, %s137
    %s152 = sphi 0, %s138
    %s156 = sphi 0, %s156
    %s158 = sphi 0, %s156
    %s159 = sphi 0, %s158
    %s173 = sphi 0, %s159
    %s177 = sphi 0, %s177
    %s179 = sphi 0, %s177
    %s180 = sphi 0, %s179
    %s194 = sphi 0, %s180
    %s198 = sphi 0, %s198
    %s200 = sphi 0, %s198
    %s201 = sphi 0, %s200
    %s215 = sphi 0, %s201
    %s219 = sphi 0, %s219
    %s221 = sphi 0, %s219
    %s222 = sphi 0, %s221
    %s236 = sphi 0, %s222
    %s240 = sphi 0, %s240
    %s242 = sphi 0, %s240
    %s243 = sphi 0, %s242
    %s257 = sphi 0, %s243
    %s263 = sphi 0, %s265
    %s266 = sphi 0, %s263
    %s267 = sphi 0, %s266
    %s283 = sphi 0, %s267
  $region4: #{cnn_forward.1} parent=0 // loop_header_branch
    %20 = sbr.rel (%p18) target = $region8
  $region5: #{cnn_forward.1} parent=0 // loop_body
    %s22 = ssub.s32 %s17, 1
    %s23 = ssub.s32 %s17, 2
    %s24 = sadd.s32 %s17, 1
    %s25 = ssub.s32 %s17, %s24
    %p26 = scmp.eq.s32.totalorder %s25, 0
    %s28 = sadd.s32 %s27, 1
    %s29 = scalar_select %p26, %s27, %s28
    %p32 = pneg %p26
    %p33 = scmp.eq.s32.totalorder %s17, 1
    %p34 = por %p32, %p33
    %p35 = scmp.ne.s32.totalorder %s27, %s30
    %p36 = scmp.eq.s32.totalorder %s17, 0
    %p37 = por %p35, %p36
    %p38 = scmp.ne.s32.totalorder %s27, %s30
    %p39 = scmp.eq.s32.totalorder %s22, 1
    %p40 = por %p38, %p39
    %p41 = scmp.ne.s32.totalorder %s30, %s31
    %p42 = scmp.eq.s32.totalorder %s22, 0
    %p43 = por %p41, %p42
    %p44 = scmp.ne.s32.totalorder %s30, %s31
    %p45 = scmp.eq.s32.totalorder %s23, 1
    %p46 = por %p44, %p45
    %p48 = scmp.ne.s32.totalorder %s31, %s47
    %p49 = scmp.eq.s32.totalorder %s23, 0
    %p50 = por %p48, %p49
    %s52 = sadd.s32 %s51, 1
    %p55 = scmp.eq.s32.totalorder %s17, 1
    %p56 = scmp.ne.s32.totalorder %s51, %s53
    %p57 = scmp.eq.s32.totalorder %s17, 0
    %p58 = por %p56, %p57
    %p59 = scmp.ne.s32.totalorder %s51, %s53
    %p60 = scmp.eq.s32.totalorder %s22, 1
    %p61 = por %p59, %p60
    %p62 = scmp.ne.s32.totalorder %s53, %s54
    %p63 = scmp.eq.s32.totalorder %s22, 0
    %p64 = por %p62, %p63
    %p65 = scmp.ne.s32.totalorder %s53, %s54
    %p66 = scmp.eq.s32.totalorder %s23, 1
    %p67 = por %p65, %p66
    %p69 = scmp.ne.s32.totalorder %s54, %s68
    %p70 = scmp.eq.s32.totalorder %s23, 0
    %p71 = por %p69, %p70
    %s73 = sadd.s32 %s72, 1
    %p76 = scmp.eq.s32.totalorder %s17, 1
    %p77 = scmp.ne.s32.totalorder %s72, %s74
    %p78 = scmp.eq.s32.totalorder %s17, 0
    %p79 = por %p77, %p78
    %p80 = scmp.ne.s32.totalorder %s72, %s74
    %p81 = scmp.eq.s32.totalorder %s22, 1
    %p82 = por %p80, %p81
    %p83 = scmp.ne.s32.totalorder %s74, %s75
    %p84 = scmp.eq.s32.totalorder %s22, 0
    %p85 = por %p83, %p84
    %p86 = scmp.ne.s32.totalorder %s74, %s75
    %p87 = scmp.eq.s32.totalorder %s23, 1
    %p88 = por %p86, %p87
    %p90 = scmp.ne.s32.totalorder %s75, %s89
    %p91 = scmp.eq.s32.totalorder %s23, 0
    %p92 = por %p90, %p91
    %s94 = sadd.s32 %s93, 1
    %p97 = scmp.eq.s32.totalorder %s17, 1
    %p98 = scmp.ne.s32.totalorder %s93, %s95
    %p99 = scmp.eq.s32.totalorder %s17, 0
    %p100 = por %p98, %p99
    %p101 = scmp.ne.s32.totalorder %s93, %s95
    %p102 = scmp.eq.s32.totalorder %s22, 1
    %p103 = por %p101, %p102
    %p104 = scmp.ne.s32.totalorder %s95, %s96
    %p105 = scmp.eq.s32.totalorder %s22, 0
    %p106 = por %p104, %p105
    %p107 = scmp.ne.s32.totalorder %s95, %s96
    %p108 = scmp.eq.s32.totalorder %s23, 1
    %p109 = por %p107, %p108
    %p111 = scmp.ne.s32.totalorder %s96, %s110
    %p112 = scmp.eq.s32.totalorder %s23, 0
    %p113 = por %p111, %p112
    %s115 = sadd.s32 %s114, 1
    %p118 = scmp.eq.s32.totalorder %s17, 1
    %p119 = scmp.ne.s32.totalorder %s114, %s116
    %p120 = scmp.eq.s32.totalorder %s17, 0
    %p121 = por %p119, %p120
    %p122 = scmp.ne.s32.totalorder %s114, %s116
    %p123 = scmp.eq.s32.totalorder %s22, 1
    %p124 = por %p122, %p123
    %p125 = scmp.ne.s32.totalorder %s116, %s117
    %p126 = scmp.eq.s32.totalorder %s22, 0
    %p127 = por %p125, %p126
    %p128 = scmp.ne.s32.totalorder %s116, %s117
    %p129 = scmp.eq.s32.totalorder %s23, 1
    %p130 = por %p128, %p129
    %p132 = scmp.ne.s32.totalorder %s117, %s131
    %p133 = scmp.eq.s32.totalorder %s23, 0
    %p134 = por %p132, %p133
    %s136 = sadd.s32 %s135, 1
    %p139 = scmp.eq.s32.totalorder %s17, 1
    %p140 = scmp.ne.s32.totalorder %s135, %s137
    %p141 = scmp.eq.s32.totalorder %s17, 0
    %p142 = por %p140, %p141
    %p143 = scmp.ne.s32.totalorder %s135, %s137
    %p144 = scmp.eq.s32.totalorder %s22, 1
    %p145 = por %p143, %p144
    %p146 = scmp.ne.s32.totalorder %s137, %s138
    %p147 = scmp.eq.s32.totalorder %s22, 0
    %p148 = por %p146, %p147
    %p149 = scmp.ne.s32.totalorder %s137, %s138
    %p150 = scmp.eq.s32.totalorder %s23, 1
    %p151 = por %p149, %p150
    %p153 = scmp.ne.s32.totalorder %s138, %s152
    %p154 = scmp.eq.s32.totalorder %s23, 0
    %p155 = por %p153, %p154
    %s157 = sadd.s32 %s156, 1
    %p160 = scmp.eq.s32.totalorder %s17, 1
    %p161 = scmp.ne.s32.totalorder %s156, %s158
    %p162 = scmp.eq.s32.totalorder %s17, 0
    %p163 = por %p161, %p162
    %p164 = scmp.ne.s32.totalorder %s156, %s158
    %p165 = scmp.eq.s32.totalorder %s22, 1
    %p166 = por %p164, %p165
    %p167 = scmp.ne.s32.totalorder %s158, %s159
    %p168 = scmp.eq.s32.totalorder %s22, 0
    %p169 = por %p167, %p168
    %p170 = scmp.ne.s32.totalorder %s158, %s159
    %p171 = scmp.eq.s32.totalorder %s23, 1
    %p172 = por %p170, %p171
    %p174 = scmp.ne.s32.totalorder %s159, %s173
    %p175 = scmp.eq.s32.totalorder %s23, 0
    %p176 = por %p174, %p175
    %s178 = sadd.s32 %s177, 1
    %p181 = scmp.eq.s32.totalorder %s17, 1
    %p182 = scmp.ne.s32.totalorder %s177, %s179
    %p183 = scmp.eq.s32.totalorder %s17, 0
    %p184 = por %p182, %p183
    %p185 = scmp.ne.s32.totalorder %s177, %s179
    %p186 = scmp.eq.s32.totalorder %s22, 1
    %p187 = por %p185, %p186
    %p188 = scmp.ne.s32.totalorder %s179, %s180
    %p189 = scmp.eq.s32.totalorder %s22, 0
    %p190 = por %p188, %p189
    %p191 = scmp.ne.s32.totalorder %s179, %s180
    %p192 = scmp.eq.s32.totalorder %s23, 1
    %p193 = por %p191, %p192
    %p195 = scmp.ne.s32.totalorder %s180, %s194
    %p196 = scmp.eq.s32.totalorder %s23, 0
    %p197 = por %p195, %p196
    %s199 = sadd.s32 %s198, 1
    %p202 = scmp.eq.s32.totalorder %s17, 1
    %p203 = scmp.ne.s32.totalorder %s198, %s200
    %p204 = scmp.eq.s32.totalorder %s17, 0
    %p205 = por %p203, %p204
    %p206 = scmp.ne.s32.totalorder %s198, %s200
    %p207 = scmp.eq.s32.totalorder %s22, 1
    %p208 = por %p206, %p207
    %p209 = scmp.ne.s32.totalorder %s200, %s201
    %p210 = scmp.eq.s32.totalorder %s22, 0
    %p211 = por %p209, %p210
    %p212 = scmp.ne.s32.totalorder %s200, %s201
    %p213 = scmp.eq.s32.totalorder %s23, 1
    %p214 = por %p212, %p213
    %p216 = scmp.ne.s32.totalorder %s201, %s215
    %p217 = scmp.eq.s32.totalorder %s23, 0
    %p218 = por %p216, %p217
    %s220 = sadd.s32 %s219, 1
    %p223 = scmp.eq.s32.totalorder %s17, 1
    %p224 = scmp.ne.s32.totalorder %s219, %s221
    %p225 = scmp.eq.s32.totalorder %s17, 0
    %p226 = por %p224, %p225
    %p227 = scmp.ne.s32.totalorder %s219, %s221
    %p228 = scmp.eq.s32.totalorder %s22, 1
    %p229 = por %p227, %p228
    %p230 = scmp.ne.s32.totalorder %s221, %s222
    %p231 = scmp.eq.s32.totalorder %s22, 0
    %p232 = por %p230, %p231
    %p233 = scmp.ne.s32.totalorder %s221, %s222
    %p234 = scmp.eq.s32.totalorder %s23, 1
    %p235 = por %p233, %p234
    %p237 = scmp.ne.s32.totalorder %s222, %s236
    %p238 = scmp.eq.s32.totalorder %s23, 0
    %p239 = por %p237, %p238
    %s241 = sadd.s32 %s240, 1
    %p244 = scmp.eq.s32.totalorder %s17, 1
    %p245 = scmp.ne.s32.totalorder %s240, %s242
    %p246 = scmp.eq.s32.totalorder %s17, 0
    %p247 = por %p245, %p246
    %p248 = scmp.ne.s32.totalorder %s240, %s242
    %p249 = scmp.eq.s32.totalorder %s22, 1
    %p250 = por %p248, %p249
    %p251 = scmp.ne.s32.totalorder %s242, %s243
    %p252 = scmp.eq.s32.totalorder %s22, 0
    %p253 = por %p251, %p252
    %p254 = scmp.ne.s32.totalorder %s242, %s243
    %p255 = scmp.eq.s32.totalorder %s23, 1
    %p256 = por %p254, %p255
    %p258 = scmp.ne.s32.totalorder %s243, %s257
    %p259 = scmp.eq.s32.totalorder %s23, 0
    %p260 = por %p258, %p259
    %s261 = ssub.s32 %s17, %s24
    %p262 = scmp.eq.s32.totalorder %s261, 0
    %s264 = sadd.s32 %s263, 1
    %s265 = scalar_select %p262, %s263, %s264
    %p268 = pneg %p262
    %p269 = scmp.eq.s32.totalorder %s17, 1
    %p270 = por %p268, %p269
    %p271 = scmp.ne.s32.totalorder %s263, %s266
    %p272 = scmp.eq.s32.totalorder %s17, 0
    %p273 = por %p271, %p272
    %p274 = scmp.ne.s32.totalorder %s263, %s266
    %p275 = scmp.eq.s32.totalorder %s22, 1
    %p276 = por %p274, %p275
    %p277 = scmp.ne.s32.totalorder %s266, %s267
    %p278 = scmp.eq.s32.totalorder %s22, 0
    %p279 = por %p277, %p278
    %p280 = scmp.ne.s32.totalorder %s266, %s267
    %p281 = scmp.eq.s32.totalorder %s23, 1
    %p282 = por %p280, %p281
    %p284 = scmp.ne.s32.totalorder %s267, %s283
    %p285 = scmp.eq.s32.totalorder %s23, 0
    %p286 = por %p284, %p285
    %p287 = scmp.le.s32.totalorder 1, %s17
    %p288 = scmp.lt.s32.totalorder %s17, 3
    %p289 = pnand %p287, %p288
    %p290 = pneg %p289
    // Predicated region
    $region9: #{cnn_forward.1} parent=5 // pred_check
      _
    $region10: #{cnn_forward.1} parent=5 // pred_check_branch
      %292 = sbr.rel (%p289) target = $region12
    $region11: #{cnn_forward.1} parent=5 // pred_region
      %s293 = ssub.s32 %s17, 1
      // Predicated region
      $region13: #{cnn_forward.1} parent=11 // pred_check
        %p294 = pneg %p64
      $region14: #{cnn_forward.1} parent=11 // pred_check_branch
        %296 = sbr.rel (%p294) target = $region16
      $region15: #{cnn_forward.1} parent=11 // pred_region
        _
      $region16: #{cnn_forward.1} parent=11 // pred_fallthru
        _
      // Predicated region
      $region17: #{cnn_forward.1} parent=11 // pred_check
        %p297 = pneg %p85
      $region18: #{cnn_forward.1} parent=11 // pred_check_branch
        %299 = sbr.rel (%p297) target = $region20
      $region19: #{cnn_forward.1} parent=11 // pred_region
        _
      $region20: #{cnn_forward.1} parent=11 // pred_fallthru
        _
      // Predicated region
      $region21: #{cnn_forward.1} parent=11 // pred_check
        %p300 = pneg %p106
      $region22: #{cnn_forward.1} parent=11 // pred_check_branch
        %302 = sbr.rel (%p300) target = $region24
      $region23: #{cnn_forward.1} parent=11 // pred_region
        _
      $region24: #{cnn_forward.1} parent=11 // pred_fallthru
        _
      // Predicated region
      $region25: #{cnn_forward.1} parent=11 // pred_check
        %p303 = pneg %p127
      $region26: #{cnn_forward.1} parent=11 // pred_check_branch
        %305 = sbr.rel (%p303) target = $region28
      $region27: #{cnn_forward.1} parent=11 // pred_region
        _
      $region28: #{cnn_forward.1} parent=11 // pred_fallthru
        _
      // Predicated region
      $region29: #{cnn_forward.1} parent=11 // pred_check
        %p306 = pneg %p148
      $region30: #{cnn_forward.1} parent=11 // pred_check_branch
        %308 = sbr.rel (%p306) target = $region32
      $region31: #{cnn_forward.1} parent=11 // pred_region
        _
      $region32: #{cnn_forward.1} parent=11 // pred_fallthru
        _
      // Predicated region
      $region33: #{cnn_forward.1} parent=11 // pred_check
        %p309 = pneg %p169
      $region34: #{cnn_forward.1} parent=11 // pred_check_branch
        %311 = sbr.rel (%p309) target = $region36
      $region35: #{cnn_forward.1} parent=11 // pred_region
        _
      $region36: #{cnn_forward.1} parent=11 // pred_fallthru
        _
      // Predicated region
      $region37: #{cnn_forward.1} parent=11 // pred_check
        %p312 = pneg %p190
      $region38: #{cnn_forward.1} parent=11 // pred_check_branch
        %314 = sbr.rel (%p312) target = $region40
      $region39: #{cnn_forward.1} parent=11 // pred_region
        _
      $region40: #{cnn_forward.1} parent=11 // pred_fallthru
        _
      // Predicated region
      $region41: #{cnn_forward.1} parent=11 // pred_check
        %p315 = pneg %p211
      $region42: #{cnn_forward.1} parent=11 // pred_check_branch
        %317 = sbr.rel (%p315) target = $region44
      $region43: #{cnn_forward.1} parent=11 // pred_region
        _
      $region44: #{cnn_forward.1} parent=11 // pred_fallthru
        _
      // Predicated region
      $region45: #{cnn_forward.1} parent=11 // pred_check
        %p318 = pneg %p232
      $region46: #{cnn_forward.1} parent=11 // pred_check_branch
        %320 = sbr.rel (%p318) target = $region48
      $region47: #{cnn_forward.1} parent=11 // pred_region
        _
      $region48: #{cnn_forward.1} parent=11 // pred_fallthru
        _
      // Predicated region
      $region49: #{cnn_forward.1} parent=11 // pred_check
        %p321 = pneg %p253
      $region50: #{cnn_forward.1} parent=11 // pred_check_branch
        %323 = sbr.rel (%p321) target = $region52
      $region51: #{cnn_forward.1} parent=11 // pred_region
        _
      $region52: #{cnn_forward.1} parent=11 // pred_fallthru
        _
    $region12: #{cnn_forward.1} parent=5 // pred_fallthru
      _
    %p324 = scmp.lt.s32.totalorder %s17, 2
    // Predicated region
    $region53: #{cnn_forward.1} parent=5 // pred_check
      %p325 = pneg %p324
    $region54: #{cnn_forward.1} parent=5 // pred_check_branch
      %327 = sbr.rel (%p325) target = $region56
    $region55: #{cnn_forward.1} parent=5 // pred_region
      // Predicated region
      $region57: #{cnn_forward.1} parent=55 // pred_check
        %p328 = pneg %p37
      $region58: #{cnn_forward.1} parent=55 // pred_check_branch
        %330 = sbr.rel (%p328) target = $region60
      $region59: #{cnn_forward.1} parent=55 // pred_region
        %s331 = smul.u32 6, %s17
        %p332 = scmp.lt.s32.totalorder %s331, 11
        %s333 = scalar_select %p332, %s331, 11
        %s334 = scalar_lea.vmem %s0, %s333
        %s335 = smul.u32 6, %s17
      $region60: #{cnn_forward.1} parent=55 // pred_fallthru
        _
    $region56: #{cnn_forward.1} parent=5 // pred_fallthru
      _
    %p336 = scmp.le.s32.totalorder 1, %s17
    %p337 = scmp.lt.s32.totalorder %s17, 3
    %p338 = pnand %p336, %p337
    %p339 = pneg %p338
    // Predicated region
    $region61: #{cnn_forward.1} parent=5 // pred_check
      _
    $region62: #{cnn_forward.1} parent=5 // pred_check_branch
      %341 = sbr.rel (%p338) target = $region64
    $region63: #{cnn_forward.1} parent=5 // pred_region
      %s342 = ssub.s32 %s17, 1
      %s343 = smul.u32 6, %s22
      %p344 = scmp.lt.s32.totalorder %s343, 11
      %s345 = scalar_select %p344, %s343, 11
      %s346 = scalar_lea.vmem %s0, %s345
      %p347 = pneg %p43
      %p348 = pneg %p40
      %p349 = pneg %p64
      %p350 = pneg %p61
      %p351 = pneg %p85
      %p352 = pneg %p82
      %p353 = pneg %p106
      %p354 = pneg %p103
      %p355 = pneg %p127
      %p356 = pneg %p124
      %p357 = pneg %p148
      %p358 = pneg %p145
      %p359 = pneg %p169
      %p360 = pneg %p166
      %p361 = pneg %p190
      %p362 = pneg %p187
      %p363 = pneg %p211
      %p364 = pneg %p208
      %p365 = pneg %p232
      %p366 = pneg %p229
      %p367 = pneg %p253
      %p368 = pneg %p250
      %p369 = pneg %p279
      %p370 = pneg %p276
      %p371 = scmp.lt.s32.totalorder %s22, 1
      %s372 = scalar_select %p371, %s22, 1
      %s373 = smul.addr %s372, 2
      %s374 = smul.addr %s373, 8
      %s375 = scalar_lea.vmem %s11, %s374
      %s376 = smul.u32 6, %s22
      %p377 = scmp.lt.s32.totalorder %s376, 11
      %s378 = scalar_select %p377, %s376, 11
      %s379 = scalar_lea.vmem %s0, %s378
      %s380 = smul.u32 6, %s22
      %p381 = scmp.lt.s32.totalorder %s22, 1
      %s382 = scalar_select %p381, %s22, 1
      %s383 = smul.addr %s382, 2
      %s384 = smul.addr %s383, 8
      %s385 = scalar_lea.vmem %s11, %s384
      %v387 = vld [vmem:[%s379] sm:$0x3f]
      %v388 = vlaneseq
      %vm389 = vcmp.ge.s32.totalorder %v388, 0
      %vm390 = vcmp.lt.s32.totalorder %v388, 768
      %vm391 = vmand %vm389, %vm390
      %392 = vst.msk [vmem:[#allocation2] sm:$0x3f] %vm391, %v387
      %vm393 = vcmp.lt.s32.totalorder %v388, 128
      %vm394 = vmand %vm389, %vm393
      %395 = vst.msk [vmem:[#allocation2 + $0x6] sm:$0x1] %vm394, 0.0
      %v396 = vld [vmem:[%s3] sm:$0xff]
      %v397 = vld [vmem:[%s3 + $0x8] sm:$0xff]
      %v398 = vld [vmem:[%s3 + $0x10] sm:$0xff]
      %v399 = vld [vmem:[%s3 + $0x18] sm:$0xff]
      %v400 = vld [vmem:[#allocation2] sm:$0x3f]
      %402 = vset.pattern.permute.xlu0 0
      %403 = vperm.xlu0 %402, %v396
      %v404 = vpop.permute.xlu0 %403
      %407 = vset.pattern.permute.xlu0 0
      %408 = vperm.xlu0 %407, %v397
      %v409 = vpop.permute.xlu0 %408
      %412 = vset.pattern.permute.xlu0 0
      %413 = vperm.xlu0 %412, %v398
      %v414 = vpop.permute.xlu0 %413
      %417 = vset.pattern.permute.xlu0 0
      %418 = vperm.xlu0 %417, %v399
      %v419 = vpop.permute.xlu0 %418
      %v422 = vperm.slane %v400, 0
      %v423 = vperm.slane %v400, 1
      %v424 = vperm.slane %v400, 2
      %v425 = vperm.slane %v400, 3
      %v426 = vperm.slane %v400, 4
      %v427 = vperm.slane %v400, 5
      %v434 = vmul.f32 %v404, %v422
      %v435 = vmul.f32 %v404, %v423
      %v436 = vmul.f32 %v404, %v424
      %v437 = vmul.f32 %v404, %v425
      %v438 = vmul.f32 %v404, %v426
      %v439 = vmul.f32 %v404, %v427
      %v440 = vmul.f32 %v409, %v422
      %v441 = vmul.f32 %v409, %v423
      %v442 = vmul.f32 %v409, %v424
      %v443 = vmul.f32 %v409, %v425
      %v444 = vmul.f32 %v409, %v426
      %v445 = vmul.f32 %v409, %v427
      %v446 = vmul.f32 %v414, %v422
      %v447 = vmul.f32 %v414, %v423
      %v448 = vmul.f32 %v414, %v424
      %v449 = vmul.f32 %v414, %v425
      %v450 = vmul.f32 %v414, %v426
      %v451 = vmul.f32 %v414, %v427
      %v452 = vmul.f32 %v419, %v422
      %v453 = vmul.f32 %v419, %v423
      %v454 = vmul.f32 %v419, %v424
      %v455 = vmul.f32 %v419, %v425
      %v456 = vmul.f32 %v419, %v426
      %v457 = vmul.f32 %v419, %v427
      %v458 = vld [vmem:[#allocation2] sm:$0x7f]
      %459 = vset.pattern.permute.xlu0 1
      %460 = vperm.xlu0 %459, %v396
      %v461 = vpop.permute.xlu0 %460
      %463 = vset.pattern.permute.xlu0 1
      %464 = vperm.xlu0 %463, %v397
      %v465 = vpop.permute.xlu0 %464
      %467 = vset.pattern.permute.xlu0 1
      %468 = vperm.xlu0 %467, %v398
      %v469 = vpop.permute.xlu0 %468
      %471 = vset.pattern.permute.xlu0 1
      %472 = vperm.xlu0 %471, %v399
      %v473 = vpop.permute.xlu0 %472
      %v476 = vperm.slane %v458, 0
      %v477 = vperm.slane %v458, 1
      %v478 = vperm.slane %v458, 2
      %v479 = vperm.slane %v458, 3
      %v480 = vperm.slane %v458, 4
      %v481 = vperm.slane %v458, 5
      %v482 = vperm.slane %v458, 6
      %v490 = vmul.f32 %v461, %v476
      %v491 = vmul.f32 %v461, %v477
      %v492 = vmul.f32 %v461, %v478
      %v493 = vmul.f32 %v461, %v479
      %v494 = vmul.f32 %v461, %v480
      %v495 = vmul.f32 %v461, %v481
      %v496 = vmul.f32 %v461, %v482
      %v497 = vmul.f32 %v465, %v476
      %v498 = vmul.f32 %v465, %v477
      %v499 = vmul.f32 %v465, %v478
      %v500 = vmul.f32 %v465, %v479
      %v501 = vmul.f32 %v465, %v480
      %v502 = vmul.f32 %v465, %v481
      %v503 = vmul.f32 %v465, %v482
      %v504 = vmul.f32 %v469, %v476
      %v505 = vmul.f32 %v469, %v477
      %v506 = vmul.f32 %v469, %v478
      %v507 = vmul.f32 %v469, %v479
      %v508 = vmul.f32 %v469, %v480
      %v509 = vmul.f32 %v469, %v481
      %v510 = vmul.f32 %v469, %v482
      %v511 = vmul.f32 %v473, %v476
      %v512 = vmul.f32 %v473, %v477
      %v513 = vmul.f32 %v473, %v478
      %v514 = vmul.f32 %v473, %v479
      %v515 = vmul.f32 %v473, %v480
      %v516 = vmul.f32 %v473, %v481
      %v517 = vmul.f32 %v473, %v482
      %546 = vrot.lane.b32.xlu0 %v490, 127
      %v547 = vpop.permute.xlu0 %546
      %548 = vrot.lane.b32.xlu0 %v491, 127
      %v549 = vpop.permute.xlu0 %548
      %550 = vrot.lane.b32.xlu0 %v492, 127
      %v551 = vpop.permute.xlu0 %550
      %552 = vrot.lane.b32.xlu0 %v493, 127
      %v553 = vpop.permute.xlu0 %552
      %554 = vrot.lane.b32.xlu0 %v494, 127
      %v555 = vpop.permute.xlu0 %554
      %556 = vrot.lane.b32.xlu0 %v495, 127
      %v557 = vpop.permute.xlu0 %556
      %558 = vrot.lane.b32.xlu0 %v496, 127
      %v559 = vpop.permute.xlu0 %558
      %560 = vrot.lane.b32.xlu0 %v497, 127
      %v561 = vpop.permute.xlu0 %560
      %562 = vrot.lane.b32.xlu0 %v498, 127
      %v563 = vpop.permute.xlu0 %562
      %564 = vrot.lane.b32.xlu0 %v499, 127
      %v565 = vpop.permute.xlu0 %564
      %566 = vrot.lane.b32.xlu0 %v500, 127
      %v567 = vpop.permute.xlu0 %566
      %568 = vrot.lane.b32.xlu0 %v501, 127
      %v569 = vpop.permute.xlu0 %568
      %570 = vrot.lane.b32.xlu0 %v502, 127
      %v571 = vpop.permute.xlu0 %570
      %572 = vrot.lane.b32.xlu0 %v503, 127
      %v573 = vpop.permute.xlu0 %572
      %574 = vrot.lane.b32.xlu0 %v504, 127
      %v575 = vpop.permute.xlu0 %574
      %576 = vrot.lane.b32.xlu0 %v505, 127
      %v577 = vpop.permute.xlu0 %576
      %578 = vrot.lane.b32.xlu0 %v506, 127
      %v579 = vpop.permute.xlu0 %578
      %580 = vrot.lane.b32.xlu0 %v507, 127
      %v581 = vpop.permute.xlu0 %580
      %582 = vrot.lane.b32.xlu0 %v508, 127
      %v583 = vpop.permute.xlu0 %582
      %584 = vrot.lane.b32.xlu0 %v509, 127
      %v585 = vpop.permute.xlu0 %584
      %586 = vrot.lane.b32.xlu0 %v510, 127
      %v587 = vpop.permute.xlu0 %586
      %588 = vrot.lane.b32.xlu0 %v511, 127
      %v589 = vpop.permute.xlu0 %588
      %590 = vrot.lane.b32.xlu0 %v512, 127
      %v591 = vpop.permute.xlu0 %590
      %592 = vrot.lane.b32.xlu0 %v513, 127
      %v593 = vpop.permute.xlu0 %592
      %594 = vrot.lane.b32.xlu0 %v514, 127
      %v595 = vpop.permute.xlu0 %594
      %596 = vrot.lane.b32.xlu0 %v515, 127
      %v597 = vpop.permute.xlu0 %596
      %598 = vrot.lane.b32.xlu0 %v516, 127
      %v599 = vpop.permute.xlu0 %598
      %600 = vrot.lane.b32.xlu0 %v517, 127
      %v601 = vpop.permute.xlu0 %600
      %vm602 = vcmask 1039360
      %v603 = vsel %vm602, %v547, %v549
      %v604 = vsel %vm602, %v549, %v551
      %v605 = vsel %vm602, %v551, %v553
      %v606 = vsel %vm602, %v553, %v555
      %v607 = vsel %vm602, %v555, %v557
      %v608 = vsel %vm602, %v557, %v559
      %v609 = vsel %vm602, %v561, %v563
      %v610 = vsel %vm602, %v563, %v565
      %v611 = vsel %vm602, %v565, %v567
      %v612 = vsel %vm602, %v567, %v569
      %v613 = vsel %vm602, %v569, %v571
      %v614 = vsel %vm602, %v571, %v573
      %v615 = vsel %vm602, %v575, %v577
      %v616 = vsel %vm602, %v577, %v579
      %v617 = vsel %vm602, %v579, %v581
      %v618 = vsel %vm602, %v581, %v583
      %v619 = vsel %vm602, %v583, %v585
      %v620 = vsel %vm602, %v585, %v587
      %v621 = vsel %vm602, %v589, %v591
      %v622 = vsel %vm602, %v591, %v593
      %v623 = vsel %vm602, %v593, %v595
      %v624 = vsel %vm602, %v595, %v597
      %v625 = vsel %vm602, %v597, %v599
      %v626 = vsel %vm602, %v599, %v601
      %v651 = vadd.f32 %v434, %v603
      %v652 = vadd.f32 %v435, %v604
      %v653 = vadd.f32 %v436, %v605
      %v654 = vadd.f32 %v437, %v606
      %v655 = vadd.f32 %v438, %v607
      %v656 = vadd.f32 %v439, %v608
      %v657 = vadd.f32 %v440, %v609
      %v658 = vadd.f32 %v441, %v610
      %v659 = vadd.f32 %v442, %v611
      %v660 = vadd.f32 %v443, %v612
      %v661 = vadd.f32 %v444, %v613
      %v662 = vadd.f32 %v445, %v614
      %v663 = vadd.f32 %v446, %v615
      %v664 = vadd.f32 %v447, %v616
      %v665 = vadd.f32 %v448, %v617
      %v666 = vadd.f32 %v449, %v618
      %v667 = vadd.f32 %v450, %v619
      %v668 = vadd.f32 %v451, %v620
      %v669 = vadd.f32 %v452, %v621
      %v670 = vadd.f32 %v453, %v622
      %v671 = vadd.f32 %v454, %v623
      %v672 = vadd.f32 %v455, %v624
      %v673 = vadd.f32 %v456, %v625
      %v674 = vadd.f32 %v457, %v626
      %675 = vset.pattern.permute.xlu0 2
      %676 = vperm.xlu0 %675, %v396
      %v677 = vpop.permute.xlu0 %676
      %679 = vset.pattern.permute.xlu0 2
      %680 = vperm.xlu0 %679, %v397
      %v681 = vpop.permute.xlu0 %680
      %683 = vset.pattern.permute.xlu0 2
      %684 = vperm.xlu0 %683, %v398
      %v685 = vpop.permute.xlu0 %684
      %687 = vset.pattern.permute.xlu0 2
      %688 = vperm.xlu0 %687, %v399
      %v689 = vpop.permute.xlu0 %688
      %v691 = vmul.f32 %v677, %v476
      %v692 = vmul.f32 %v677, %v477
      %v693 = vmul.f32 %v677, %v478
      %v694 = vmul.f32 %v677, %v479
      %v695 = vmul.f32 %v677, %v480
      %v696 = vmul.f32 %v677, %v481
      %v697 = vmul.f32 %v677, %v482
      %v698 = vmul.f32 %v681, %v476
      %v699 = vmul.f32 %v681, %v477
      %v700 = vmul.f32 %v681, %v478
      %v701 = vmul.f32 %v681, %v479
      %v702 = vmul.f32 %v681, %v480
      %v703 = vmul.f32 %v681, %v481
      %v704 = vmul.f32 %v681, %v482
      %v705 = vmul.f32 %v685, %v476
      %v706 = vmul.f32 %v685, %v477
      %v707 = vmul.f32 %v685, %v478
      %v708 = vmul.f32 %v685, %v479
      %v709 = vmul.f32 %v685, %v480
      %v710 = vmul.f32 %v685, %v481
      %v711 = vmul.f32 %v685, %v482
      %v712 = vmul.f32 %v689, %v476
      %v713 = vmul.f32 %v689, %v477
      %v714 = vmul.f32 %v689, %v478
      %v715 = vmul.f32 %v689, %v479
      %v716 = vmul.f32 %v689, %v480
      %v717 = vmul.f32 %v689, %v481
      %v718 = vmul.f32 %v689, %v482
      %747 = vrot.lane.b32.xlu0 %v691, 126
      %v748 = vpop.permute.xlu0 %747
      %749 = vrot.lane.b32.xlu0 %v692, 126
      %v750 = vpop.permute.xlu0 %749
      %751 = vrot.lane.b32.xlu0 %v693, 126
      %v752 = vpop.permute.xlu0 %751
      %753 = vrot.lane.b32.xlu0 %v694, 126
      %v754 = vpop.permute.xlu0 %753
      %755 = vrot.lane.b32.xlu0 %v695, 126
      %v756 = vpop.permute.xlu0 %755
      %757 = vrot.lane.b32.xlu0 %v696, 126
      %v758 = vpop.permute.xlu0 %757
      %759 = vrot.lane.b32.xlu0 %v697, 126
      %v760 = vpop.permute.xlu0 %759
      %761 = vrot.lane.b32.xlu0 %v698, 126
      %v762 = vpop.permute.xlu0 %761
      %763 = vrot.lane.b32.xlu0 %v699, 126
      %v764 = vpop.permute.xlu0 %763
      %765 = vrot.lane.b32.xlu0 %v700, 126
      %v766 = vpop.permute.xlu0 %765
      %767 = vrot.lane.b32.xlu0 %v701, 126
      %v768 = vpop.permute.xlu0 %767
      %769 = vrot.lane.b32.xlu0 %v702, 126
      %v770 = vpop.permute.xlu0 %769
      %771 = vrot.lane.b32.xlu0 %v703, 126
      %v772 = vpop.permute.xlu0 %771
      %773 = vrot.lane.b32.xlu0 %v704, 126
      %v774 = vpop.permute.xlu0 %773
      %775 = vrot.lane.b32.xlu0 %v705, 126
      %v776 = vpop.permute.xlu0 %775
      %777 = vrot.lane.b32.xlu0 %v706, 126
      %v778 = vpop.permute.xlu0 %777
      %779 = vrot.lane.b32.xlu0 %v707, 126
      %v780 = vpop.permute.xlu0 %779
      %781 = vrot.lane.b32.xlu0 %v708, 126
      %v782 = vpop.permute.xlu0 %781
      %783 = vrot.lane.b32.xlu0 %v709, 126
      %v784 = vpop.permute.xlu0 %783
      %785 = vrot.lane.b32.xlu0 %v710, 126
      %v786 = vpop.permute.xlu0 %785
      %787 = vrot.lane.b32.xlu0 %v711, 126
      %v788 = vpop.permute.xlu0 %787
      %789 = vrot.lane.b32.xlu0 %v712, 126
      %v790 = vpop.permute.xlu0 %789
      %791 = vrot.lane.b32.xlu0 %v713, 126
      %v792 = vpop.permute.xlu0 %791
      %793 = vrot.lane.b32.xlu0 %v714, 126
      %v794 = vpop.permute.xlu0 %793
      %795 = vrot.lane.b32.xlu0 %v715, 126
      %v796 = vpop.permute.xlu0 %795
      %797 = vrot.lane.b32.xlu0 %v716, 126
      %v798 = vpop.permute.xlu0 %797
      %799 = vrot.lane.b32.xlu0 %v717, 126
      %v800 = vpop.permute.xlu0 %799
      %801 = vrot.lane.b32.xlu0 %v718, 126
      %v802 = vpop.permute.xlu0 %801
      %vm803 = vcmask 1031168
      %v804 = vsel %vm803, %v748, %v750
      %v805 = vsel %vm803, %v750, %v752
      %v806 = vsel %vm803, %v752, %v754
      %v807 = vsel %vm803, %v754, %v756
      %v808 = vsel %vm803, %v756, %v758
      %v809 = vsel %vm803, %v758, %v760
      %v810 = vsel %vm803, %v762, %v764
      %v811 = vsel %vm803, %v764, %v766
      %v812 = vsel %vm803, %v766, %v768
      %v813 = vsel %vm803, %v768, %v770
      %v814 = vsel %vm803, %v770, %v772
      %v815 = vsel %vm803, %v772, %v774
      %v816 = vsel %vm803, %v776, %v778
      %v817 = vsel %vm803, %v778, %v780
      %v818 = vsel %vm803, %v780, %v782
      %v819 = vsel %vm803, %v782, %v784
      %v820 = vsel %vm803, %v784, %v786
      %v821 = vsel %vm803, %v786, %v788
      %v822 = vsel %vm803, %v790, %v792
      %v823 = vsel %vm803, %v792, %v794
      %v824 = vsel %vm803, %v794, %v796
      %v825 = vsel %vm803, %v796, %v798
      %v826 = vsel %vm803, %v798, %v800
      %v827 = vsel %vm803, %v800, %v802
      %v852 = vadd.f32 %v651, %v804
      %v853 = vadd.f32 %v652, %v805
      %v854 = vadd.f32 %v653, %v806
      %v855 = vadd.f32 %v654, %v807
      %v856 = vadd.f32 %v655, %v808
      %v857 = vadd.f32 %v656, %v809
      %v858 = vadd.f32 %v657, %v810
      %v859 = vadd.f32 %v658, %v811
      %v860 = vadd.f32 %v659, %v812
      %v861 = vadd.f32 %v660, %v813
      %v862 = vadd.f32 %v661, %v814
      %v863 = vadd.f32 %v662, %v815
      %v864 = vadd.f32 %v663, %v816
      %v865 = vadd.f32 %v664, %v817
      %v866 = vadd.f32 %v665, %v818
      %v867 = vadd.f32 %v666, %v819
      %v868 = vadd.f32 %v667, %v820
      %v869 = vadd.f32 %v668, %v821
      %v870 = vadd.f32 %v669, %v822
      %v871 = vadd.f32 %v670, %v823
      %v872 = vadd.f32 %v671, %v824
      %v873 = vadd.f32 %v672, %v825
      %v874 = vadd.f32 %v673, %v826
      %v875 = vadd.f32 %v674, %v827
      %876 = vset.pattern.permute.xlu0 3
      %877 = vperm.xlu0 %876, %v396
      %v878 = vpop.permute.xlu0 %877
      %880 = vset.pattern.permute.xlu0 3
      %881 = vperm.xlu0 %880, %v397
      %v882 = vpop.permute.xlu0 %881
      %884 = vset.pattern.permute.xlu0 3
      %885 = vperm.xlu0 %884, %v398
      %v886 = vpop.permute.xlu0 %885
      %888 = vset.pattern.permute.xlu0 3
      %889 = vperm.xlu0 %888, %v399
      %v890 = vpop.permute.xlu0 %889
      %v892 = vmul.f32 %v878, %v476
      %v893 = vmul.f32 %v878, %v477
      %v894 = vmul.f32 %v878, %v478
      %v895 = vmul.f32 %v878, %v479
      %v896 = vmul.f32 %v878, %v480
      %v897 = vmul.f32 %v878, %v481
      %v898 = vmul.f32 %v878, %v482
      %v899 = vmul.f32 %v882, %v476
      %v900 = vmul.f32 %v882, %v477
      %v901 = vmul.f32 %v882, %v478
      %v902 = vmul.f32 %v882, %v479
      %v903 = vmul.f32 %v882, %v480
      %v904 = vmul.f32 %v882, %v481
      %v905 = vmul.f32 %v882, %v482
      %v906 = vmul.f32 %v886, %v476
      %v907 = vmul.f32 %v886, %v477
      %v908 = vmul.f32 %v886, %v478
      %v909 = vmul.f32 %v886, %v479
      %v910 = vmul.f32 %v886, %v480
      %v911 = vmul.f32 %v886, %v481
      %v912 = vmul.f32 %v886, %v482
      %v913 = vmul.f32 %v890, %v476
      %v914 = vmul.f32 %v890, %v477
      %v915 = vmul.f32 %v890, %v478
      %v916 = vmul.f32 %v890, %v479
      %v917 = vmul.f32 %v890, %v480
      %v918 = vmul.f32 %v890, %v481
      %v919 = vmul.f32 %v890, %v482
      %948 = vrot.lane.b32.xlu0 %v892, 110
      %v949 = vpop.permute.xlu0 %948
      %950 = vrot.lane.b32.xlu0 %v893, 110
      %v951 = vpop.permute.xlu0 %950
      %952 = vrot.lane.b32.xlu0 %v894, 110
      %v953 = vpop.permute.xlu0 %952
      %954 = vrot.lane.b32.xlu0 %v895, 110
      %v955 = vpop.permute.xlu0 %954
      %956 = vrot.lane.b32.xlu0 %v896, 110
      %v957 = vpop.permute.xlu0 %956
      %958 = vrot.lane.b32.xlu0 %v897, 110
      %v959 = vpop.permute.xlu0 %958
      %960 = vrot.lane.b32.xlu0 %v898, 110
      %v961 = vpop.permute.xlu0 %960
      %962 = vrot.lane.b32.xlu0 %v899, 110
      %v963 = vpop.permute.xlu0 %962
      %964 = vrot.lane.b32.xlu0 %v900, 110
      %v965 = vpop.permute.xlu0 %964
      %966 = vrot.lane.b32.xlu0 %v901, 110
      %v967 = vpop.permute.xlu0 %966
      %968 = vrot.lane.b32.xlu0 %v902, 110
      %v969 = vpop.permute.xlu0 %968
      %970 = vrot.lane.b32.xlu0 %v903, 110
      %v971 = vpop.permute.xlu0 %970
      %972 = vrot.lane.b32.xlu0 %v904, 110
      %v973 = vpop.permute.xlu0 %972
      %974 = vrot.lane.b32.xlu0 %v905, 110
      %v975 = vpop.permute.xlu0 %974
      %976 = vrot.lane.b32.xlu0 %v906, 110
      %v977 = vpop.permute.xlu0 %976
      %978 = vrot.lane.b32.xlu0 %v907, 110
      %v979 = vpop.permute.xlu0 %978
      %980 = vrot.lane.b32.xlu0 %v908, 110
      %v981 = vpop.permute.xlu0 %980
      %982 = vrot.lane.b32.xlu0 %v909, 110
      %v983 = vpop.permute.xlu0 %982
      %984 = vrot.lane.b32.xlu0 %v910, 110
      %v985 = vpop.permute.xlu0 %984
      %986 = vrot.lane.b32.xlu0 %v911, 110
      %v987 = vpop.permute.xlu0 %986
      %988 = vrot.lane.b32.xlu0 %v912, 110
      %v989 = vpop.permute.xlu0 %988
      %990 = vrot.lane.b32.xlu0 %v913, 110
      %v991 = vpop.permute.xlu0 %990
      %992 = vrot.lane.b32.xlu0 %v914, 110
      %v993 = vpop.permute.xlu0 %992
      %994 = vrot.lane.b32.xlu0 %v915, 110
      %v995 = vpop.permute.xlu0 %994
      %996 = vrot.lane.b32.xlu0 %v916, 110
      %v997 = vpop.permute.xlu0 %996
      %998 = vrot.lane.b32.xlu0 %v917, 110
      %v999 = vpop.permute.xlu0 %998
      %1000 = vrot.lane.b32.xlu0 %v918, 110
      %v1001 = vpop.permute.xlu0 %1000
      %1002 = vrot.lane.b32.xlu0 %v919, 110
      %v1003 = vpop.permute.xlu0 %1002
      %vm1004 = vcmask 900096
      %v1005 = vsel %vm1004, %v949, %v951
      %v1006 = vsel %vm1004, %v951, %v953
      %v1007 = vsel %vm1004, %v953, %v955
      %v1008 = vsel %vm1004, %v955, %v957
      %v1009 = vsel %vm1004, %v957, %v959
      %v1010 = vsel %vm1004, %v959, %v961
      %v1011 = vsel %vm1004, %v963, %v965
      %v1012 = vsel %vm1004, %v965, %v967
      %v1013 = vsel %vm1004, %v967, %v969
      %v1014 = vsel %vm1004, %v969, %v971
      %v1015 = vsel %vm1004, %v971, %v973
      %v1016 = vsel %vm1004, %v973, %v975
      %v1017 = vsel %vm1004, %v977, %v979
      %v1018 = vsel %vm1004, %v979, %v981
      %v1019 = vsel %vm1004, %v981, %v983
      %v1020 = vsel %vm1004, %v983, %v985
      %v1021 = vsel %vm1004, %v985, %v987
      %v1022 = vsel %vm1004, %v987, %v989
      %v1023 = vsel %vm1004, %v991, %v993
      %v1024 = vsel %vm1004, %v993, %v995
      %v1025 = vsel %vm1004, %v995, %v997
      %v1026 = vsel %vm1004, %v997, %v999
      %v1027 = vsel %vm1004, %v999, %v1001
      %v1028 = vsel %vm1004, %v1001, %v1003
      %v1053 = vadd.f32 %v852, %v1005
      %v1054 = vadd.f32 %v853, %v1006
      %v1055 = vadd.f32 %v854, %v1007
      %v1056 = vadd.f32 %v855, %v1008
      %v1057 = vadd.f32 %v856, %v1009
      %v1058 = vadd.f32 %v857, %v1010
      %v1059 = vadd.f32 %v858, %v1011
      %v1060 = vadd.f32 %v859, %v1012
      %v1061 = vadd.f32 %v860, %v1013
      %v1062 = vadd.f32 %v861, %v1014
      %v1063 = vadd.f32 %v862, %v1015
      %v1064 = vadd.f32 %v863, %v1016
      %v1065 = vadd.f32 %v864, %v1017
      %v1066 = vadd.f32 %v865, %v1018
      %v1067 = vadd.f32 %v866, %v1019
      %v1068 = vadd.f32 %v867, %v1020
      %v1069 = vadd.f32 %v868, %v1021
      %v1070 = vadd.f32 %v869, %v1022
      %v1071 = vadd.f32 %v870, %v1023
      %v1072 = vadd.f32 %v871, %v1024
      %v1073 = vadd.f32 %v872, %v1025
      %v1074 = vadd.f32 %v873, %v1026
      %v1075 = vadd.f32 %v874, %v1027
      %v1076 = vadd.f32 %v875, %v1028
      %1077 = vset.pattern.permute.xlu0 4
      %1078 = vperm.xlu0 %1077, %v396
      %v1079 = vpop.permute.xlu0 %1078
      %1081 = vset.pattern.permute.xlu0 4
      %1082 = vperm.xlu0 %1081, %v397
      %v1083 = vpop.permute.xlu0 %1082
      %1085 = vset.pattern.permute.xlu0 4
      %1086 = vperm.xlu0 %1085, %v398
      %v1087 = vpop.permute.xlu0 %1086
      %1089 = vset.pattern.permute.xlu0 4
      %1090 = vperm.xlu0 %1089, %v399
      %v1091 = vpop.permute.xlu0 %1090
      %v1093 = vmul.f32 %v1079, %v476
      %v1094 = vmul.f32 %v1079, %v477
      %v1095 = vmul.f32 %v1079, %v478
      %v1096 = vmul.f32 %v1079, %v479
      %v1097 = vmul.f32 %v1079, %v480
      %v1098 = vmul.f32 %v1079, %v481
      %v1099 = vmul.f32 %v1079, %v482
      %v1100 = vmul.f32 %v1083, %v476
      %v1101 = vmul.f32 %v1083, %v477
      %v1102 = vmul.f32 %v1083, %v478
      %v1103 = vmul.f32 %v1083, %v479
      %v1104 = vmul.f32 %v1083, %v480
      %v1105 = vmul.f32 %v1083, %v481
      %v1106 = vmul.f32 %v1083, %v482
      %v1107 = vmul.f32 %v1087, %v476
      %v1108 = vmul.f32 %v1087, %v477
      %v1109 = vmul.f32 %v1087, %v478
      %v1110 = vmul.f32 %v1087, %v479
      %v1111 = vmul.f32 %v1087, %v480
      %v1112 = vmul.f32 %v1087, %v481
      %v1113 = vmul.f32 %v1087, %v482
      %v1114 = vmul.f32 %v1091, %v476
      %v1115 = vmul.f32 %v1091, %v477
      %v1116 = vmul.f32 %v1091, %v478
      %v1117 = vmul.f32 %v1091, %v479
      %v1118 = vmul.f32 %v1091, %v480
      %v1119 = vmul.f32 %v1091, %v481
      %v1120 = vmul.f32 %v1091, %v482
      %1149 = vrot.lane.b32.xlu0 %v1093, 109
      %v1150 = vpop.permute.xlu0 %1149
      %1151 = vrot.lane.b32.xlu0 %v1094, 109
      %v1152 = vpop.permute.xlu0 %1151
      %1153 = vrot.lane.b32.xlu0 %v1095, 109
      %v1154 = vpop.permute.xlu0 %1153
      %1155 = vrot.lane.b32.xlu0 %v1096, 109
      %v1156 = vpop.permute.xlu0 %1155
      %1157 = vrot.lane.b32.xlu0 %v1097, 109
      %v1158 = vpop.permute.xlu0 %1157
      %1159 = vrot.lane.b32.xlu0 %v1098, 109
      %v1160 = vpop.permute.xlu0 %1159
      %1161 = vrot.lane.b32.xlu0 %v1099, 109
      %v1162 = vpop.permute.xlu0 %1161
      %1163 = vrot.lane.b32.xlu0 %v1100, 109
      %v1164 = vpop.permute.xlu0 %1163
      %1165 = vrot.lane.b32.xlu0 %v1101, 109
      %v1166 = vpop.permute.xlu0 %1165
      %1167 = vrot.lane.b32.xlu0 %v1102, 109
      %v1168 = vpop.permute.xlu0 %1167
      %1169 = vrot.lane.b32.xlu0 %v1103, 109
      %v1170 = vpop.permute.xlu0 %1169
      %1171 = vrot.lane.b32.xlu0 %v1104, 109
      %v1172 = vpop.permute.xlu0 %1171
      %1173 = vrot.lane.b32.xlu0 %v1105, 109
      %v1174 = vpop.permute.xlu0 %1173
      %1175 = vrot.lane.b32.xlu0 %v1106, 109
      %v1176 = vpop.permute.xlu0 %1175
      %1177 = vrot.lane.b32.xlu0 %v1107, 109
      %v1178 = vpop.permute.xlu0 %1177
      %1179 = vrot.lane.b32.xlu0 %v1108, 109
      %v1180 = vpop.permute.xlu0 %1179
      %1181 = vrot.lane.b32.xlu0 %v1109, 109
      %v1182 = vpop.permute.xlu0 %1181
      %1183 = vrot.lane.b32.xlu0 %v1110, 109
      %v1184 = vpop.permute.xlu0 %1183
      %1185 = vrot.lane.b32.xlu0 %v1111, 109
      %v1186 = vpop.permute.xlu0 %1185
      %1187 = vrot.lane.b32.xlu0 %v1112, 109
      %v1188 = vpop.permute.xlu0 %1187
      %1189 = vrot.lane.b32.xlu0 %v1113, 109
      %v1190 = vpop.permute.xlu0 %1189
      %1191 = vrot.lane.b32.xlu0 %v1114, 109
      %v1192 = vpop.permute.xlu0 %1191
      %1193 = vrot.lane.b32.xlu0 %v1115, 109
      %v1194 = vpop.permute.xlu0 %1193
      %1195 = vrot.lane.b32.xlu0 %v1116, 109
      %v1196 = vpop.permute.xlu0 %1195
      %1197 = vrot.lane.b32.xlu0 %v1117, 109
      %v1198 = vpop.permute.xlu0 %1197
      %1199 = vrot.lane.b32.xlu0 %v1118, 109
      %v1200 = vpop.permute.xlu0 %1199
      %1201 = vrot.lane.b32.xlu0 %v1119, 109
      %v1202 = vpop.permute.xlu0 %1201
      %1203 = vrot.lane.b32.xlu0 %v1120, 109
      %v1204 = vpop.permute.xlu0 %1203
      %vm1205 = vcmask 891904
      %v1206 = vsel %vm1205, %v1150, %v1152
      %v1207 = vsel %vm1205, %v1152, %v1154
      %v1208 = vsel %vm1205, %v1154, %v1156
      %v1209 = vsel %vm1205, %v1156, %v1158
      %v1210 = vsel %vm1205, %v1158, %v1160
      %v1211 = vsel %vm1205, %v1160, %v1162
      %v1212 = vsel %vm1205, %v1164, %v1166
      %v1213 = vsel %vm1205, %v1166, %v1168
      %v1214 = vsel %vm1205, %v1168, %v1170
      %v1215 = vsel %vm1205, %v1170, %v1172
      %v1216 = vsel %vm1205, %v1172, %v1174
      %v1217 = vsel %vm1205, %v1174, %v1176
      %v1218 = vsel %vm1205, %v1178, %v1180
      %v1219 = vsel %vm1205, %v1180, %v1182
      %v1220 = vsel %vm1205, %v1182, %v1184
      %v1221 = vsel %vm1205, %v1184, %v1186
      %v1222 = vsel %vm1205, %v1186, %v1188
      %v1223 = vsel %vm1205, %v1188, %v1190
      %v1224 = vsel %vm1205, %v1192, %v1194
      %v1225 = vsel %vm1205, %v1194, %v1196
      %v1226 = vsel %vm1205, %v1196, %v1198
      %v1227 = vsel %vm1205, %v1198, %v1200
      %v1228 = vsel %vm1205, %v1200, %v1202
      %v1229 = vsel %vm1205, %v1202, %v1204
      %v1254 = vadd.f32 %v1053, %v1206
      %v1255 = vadd.f32 %v1054, %v1207
      %v1256 = vadd.f32 %v1055, %v1208
      %v1257 = vadd.f32 %v1056, %v1209
      %v1258 = vadd.f32 %v1057, %v1210
      %v1259 = vadd.f32 %v1058, %v1211
      %v1260 = vadd.f32 %v1059, %v1212
      %v1261 = vadd.f32 %v1060, %v1213
      %v1262 = vadd.f32 %v1061, %v1214
      %v1263 = vadd.f32 %v1062, %v1215
      %v1264 = vadd.f32 %v1063, %v1216
      %v1265 = vadd.f32 %v1064, %v1217
      %v1266 = vadd.f32 %v1065, %v1218
      %v1267 = vadd.f32 %v1066, %v1219
      %v1268 = vadd.f32 %v1067, %v1220
      %v1269 = vadd.f32 %v1068, %v1221
      %v1270 = vadd.f32 %v1069, %v1222
      %v1271 = vadd.f32 %v1070, %v1223
      %v1272 = vadd.f32 %v1071, %v1224
      %v1273 = vadd.f32 %v1072, %v1225
      %v1274 = vadd.f32 %v1073, %v1226
      %v1275 = vadd.f32 %v1074, %v1227
      %v1276 = vadd.f32 %v1075, %v1228
      %v1277 = vadd.f32 %v1076, %v1229
      %1278 = vset.pattern.permute.xlu0 5
      %1279 = vperm.xlu0 %1278, %v396
      %v1280 = vpop.permute.xlu0 %1279
      %1282 = vset.pattern.permute.xlu0 5
      %1283 = vperm.xlu0 %1282, %v397
      %v1284 = vpop.permute.xlu0 %1283
      %1286 = vset.pattern.permute.xlu0 5
      %1287 = vperm.xlu0 %1286, %v398
      %v1288 = vpop.permute.xlu0 %1287
      %1290 = vset.pattern.permute.xlu0 5
      %1291 = vperm.xlu0 %1290, %v399
      %v1292 = vpop.permute.xlu0 %1291
      %v1294 = vmul.f32 %v1280, %v476
      %v1295 = vmul.f32 %v1280, %v477
      %v1296 = vmul.f32 %v1280, %v478
      %v1297 = vmul.f32 %v1280, %v479
      %v1298 = vmul.f32 %v1280, %v480
      %v1299 = vmul.f32 %v1280, %v481
      %v1300 = vmul.f32 %v1280, %v482
      %v1301 = vmul.f32 %v1284, %v476
      %v1302 = vmul.f32 %v1284, %v477
      %v1303 = vmul.f32 %v1284, %v478
      %v1304 = vmul.f32 %v1284, %v479
      %v1305 = vmul.f32 %v1284, %v480
      %v1306 = vmul.f32 %v1284, %v481
      %v1307 = vmul.f32 %v1284, %v482
      %v1308 = vmul.f32 %v1288, %v476
      %v1309 = vmul.f32 %v1288, %v477
      %v1310 = vmul.f32 %v1288, %v478
      %v1311 = vmul.f32 %v1288, %v479
      %v1312 = vmul.f32 %v1288, %v480
      %v1313 = vmul.f32 %v1288, %v481
      %v1314 = vmul.f32 %v1288, %v482
      %v1315 = vmul.f32 %v1292, %v476
      %v1316 = vmul.f32 %v1292, %v477
      %v1317 = vmul.f32 %v1292, %v478
      %v1318 = vmul.f32 %v1292, %v479
      %v1319 = vmul.f32 %v1292, %v480
      %v1320 = vmul.f32 %v1292, %v481
      %v1321 = vmul.f32 %v1292, %v482
      %1350 = vrot.lane.b32.xlu0 %v1294, 108
      %v1351 = vpop.permute.xlu0 %1350
      %1352 = vrot.lane.b32.xlu0 %v1295, 108
      %v1353 = vpop.permute.xlu0 %1352
      %1354 = vrot.lane.b32.xlu0 %v1296, 108
      %v1355 = vpop.permute.xlu0 %1354
      %1356 = vrot.lane.b32.xlu0 %v1297, 108
      %v1357 = vpop.permute.xlu0 %1356
      %1358 = vrot.lane.b32.xlu0 %v1298, 108
      %v1359 = vpop.permute.xlu0 %1358
      %1360 = vrot.lane.b32.xlu0 %v1299, 108
      %v1361 = vpop.permute.xlu0 %1360
      %1362 = vrot.lane.b32.xlu0 %v1300, 108
      %v1363 = vpop.permute.xlu0 %1362
      %1364 = vrot.lane.b32.xlu0 %v1301, 108
      %v1365 = vpop.permute.xlu0 %1364
      %1366 = vrot.lane.b32.xlu0 %v1302, 108
      %v1367 = vpop.permute.xlu0 %1366
      %1368 = vrot.lane.b32.xlu0 %v1303, 108
      %v1369 = vpop.permute.xlu0 %1368
      %1370 = vrot.lane.b32.xlu0 %v1304, 108
      %v1371 = vpop.permute.xlu0 %1370
      %1372 = vrot.lane.b32.xlu0 %v1305, 108
      %v1373 = vpop.permute.xlu0 %1372
      %1374 = vrot.lane.b32.xlu0 %v1306, 108
      %v1375 = vpop.permute.xlu0 %1374
      %1376 = vrot.lane.b32.xlu0 %v1307, 108
      %v1377 = vpop.permute.xlu0 %1376
      %1378 = vrot.lane.b32.xlu0 %v1308, 108
      %v1379 = vpop.permute.xlu0 %1378
      %1380 = vrot.lane.b32.xlu0 %v1309, 108
      %v1381 = vpop.permute.xlu0 %1380
      %1382 = vrot.lane.b32.xlu0 %v1310, 108
      %v1383 = vpop.permute.xlu0 %1382
      %1384 = vrot.lane.b32.xlu0 %v1311, 108
      %v1385 = vpop.permute.xlu0 %1384
      %1386 = vrot.lane.b32.xlu0 %v1312, 108
      %v1387 = vpop.permute.xlu0 %1386
      %1388 = vrot.lane.b32.xlu0 %v1313, 108
      %v1389 = vpop.permute.xlu0 %1388
      %1390 = vrot.lane.b32.xlu0 %v1314, 108
      %v1391 = vpop.permute.xlu0 %1390
      %1392 = vrot.lane.b32.xlu0 %v1315, 108
      %v1393 = vpop.permute.xlu0 %1392
      %1394 = vrot.lane.b32.xlu0 %v1316, 108
      %v1395 = vpop.permute.xlu0 %1394
      %1396 = vrot.lane.b32.xlu0 %v1317, 108
      %v1397 = vpop.permute.xlu0 %1396
      %1398 = vrot.lane.b32.xlu0 %v1318, 108
      %v1399 = vpop.permute.xlu0 %1398
      %1400 = vrot.lane.b32.xlu0 %v1319, 108
      %v1401 = vpop.permute.xlu0 %1400
      %1402 = vrot.lane.b32.xlu0 %v1320, 108
      %v1403 = vpop.permute.xlu0 %1402
      %1404 = vrot.lane.b32.xlu0 %v1321, 108
      %v1405 = vpop.permute.xlu0 %1404
      %vm1406 = vcmask 883712
      %v1407 = vsel %vm1406, %v1351, %v1353
      %v1408 = vsel %vm1406, %v1353, %v1355
      %v1409 = vsel %vm1406, %v1355, %v1357
      %v1410 = vsel %vm1406, %v1357, %v1359
      %v1411 = vsel %vm1406, %v1359, %v1361
      %v1412 = vsel %vm1406, %v1361, %v1363
      %v1413 = vsel %vm1406, %v1365, %v1367
      %v1414 = vsel %vm1406, %v1367, %v1369
      %v1415 = vsel %vm1406, %v1369, %v1371
      %v1416 = vsel %vm1406, %v1371, %v1373
      %v1417 = vsel %vm1406, %v1373, %v1375
      %v1418 = vsel %vm1406, %v1375, %v1377
      %v1419 = vsel %vm1406, %v1379, %v1381
      %v1420 = vsel %vm1406, %v1381, %v1383
      %v1421 = vsel %vm1406, %v1383, %v1385
      %v1422 = vsel %vm1406, %v1385, %v1387
      %v1423 = vsel %vm1406, %v1387, %v1389
      %v1424 = vsel %vm1406, %v1389, %v1391
      %v1425 = vsel %vm1406, %v1393, %v1395
      %v1426 = vsel %vm1406, %v1395, %v1397
      %v1427 = vsel %vm1406, %v1397, %v1399
      %v1428 = vsel %vm1406, %v1399, %v1401
      %v1429 = vsel %vm1406, %v1401, %v1403
      %v1430 = vsel %vm1406, %v1403, %v1405
      %v1455 = vadd.f32 %v1254, %v1407
      %v1456 = vadd.f32 %v1255, %v1408
      %v1457 = vadd.f32 %v1256, %v1409
      %v1458 = vadd.f32 %v1257, %v1410
      %v1459 = vadd.f32 %v1258, %v1411
      %v1460 = vadd.f32 %v1259, %v1412
      %v1461 = vadd.f32 %v1260, %v1413
      %v1462 = vadd.f32 %v1261, %v1414
      %v1463 = vadd.f32 %v1262, %v1415
      %v1464 = vadd.f32 %v1263, %v1416
      %v1465 = vadd.f32 %v1264, %v1417
      %v1466 = vadd.f32 %v1265, %v1418
      %v1467 = vadd.f32 %v1266, %v1419
      %v1468 = vadd.f32 %v1267, %v1420
      %v1469 = vadd.f32 %v1268, %v1421
      %v1470 = vadd.f32 %v1269, %v1422
      %v1471 = vadd.f32 %v1270, %v1423
      %v1472 = vadd.f32 %v1271, %v1424
      %v1473 = vadd.f32 %v1272, %v1425
      %v1474 = vadd.f32 %v1273, %v1426
      %v1475 = vadd.f32 %v1274, %v1427
      %v1476 = vadd.f32 %v1275, %v1428
      %v1477 = vadd.f32 %v1276, %v1429
      %v1478 = vadd.f32 %v1277, %v1430
      %1479 = vset.pattern.permute.xlu0 6
      %1480 = vperm.xlu0 %1479, %v396
      %v1481 = vpop.permute.xlu0 %1480
      %1483 = vset.pattern.permute.xlu0 6
      %1484 = vperm.xlu0 %1483, %v397
      %v1485 = vpop.permute.xlu0 %1484
      %1487 = vset.pattern.permute.xlu0 6
      %1488 = vperm.xlu0 %1487, %v398
      %v1489 = vpop.permute.xlu0 %1488
      %1491 = vset.pattern.permute.xlu0 6
      %1492 = vperm.xlu0 %1491, %v399
      %v1493 = vpop.permute.xlu0 %1492
      %v1495 = vmul.f32 %v1481, %v476
      %v1496 = vmul.f32 %v1481, %v477
      %v1497 = vmul.f32 %v1481, %v478
      %v1498 = vmul.f32 %v1481, %v479
      %v1499 = vmul.f32 %v1481, %v480
      %v1500 = vmul.f32 %v1481, %v481
      %v1501 = vmul.f32 %v1481, %v482
      %v1502 = vmul.f32 %v1485, %v476
      %v1503 = vmul.f32 %v1485, %v477
      %v1504 = vmul.f32 %v1485, %v478
      %v1505 = vmul.f32 %v1485, %v479
      %v1506 = vmul.f32 %v1485, %v480
      %v1507 = vmul.f32 %v1485, %v481
      %v1508 = vmul.f32 %v1485, %v482
      %v1509 = vmul.f32 %v1489, %v476
      %v1510 = vmul.f32 %v1489, %v477
      %v1511 = vmul.f32 %v1489, %v478
      %v1512 = vmul.f32 %v1489, %v479
      %v1513 = vmul.f32 %v1489, %v480
      %v1514 = vmul.f32 %v1489, %v481
      %v1515 = vmul.f32 %v1489, %v482
      %v1516 = vmul.f32 %v1493, %v476
      %v1517 = vmul.f32 %v1493, %v477
      %v1518 = vmul.f32 %v1493, %v478
      %v1519 = vmul.f32 %v1493, %v479
      %v1520 = vmul.f32 %v1493, %v480
      %v1521 = vmul.f32 %v1493, %v481
      %v1522 = vmul.f32 %v1493, %v482
      %1551 = vrot.lane.b32.xlu0 %v1495, 92
      %v1552 = vpop.permute.xlu0 %1551
      %1553 = vrot.lane.b32.xlu0 %v1496, 92
      %v1554 = vpop.permute.xlu0 %1553
      %1555 = vrot.lane.b32.xlu0 %v1497, 92
      %v1556 = vpop.permute.xlu0 %1555
      %1557 = vrot.lane.b32.xlu0 %v1498, 92
      %v1558 = vpop.permute.xlu0 %1557
      %1559 = vrot.lane.b32.xlu0 %v1499, 92
      %v1560 = vpop.permute.xlu0 %1559
      %1561 = vrot.lane.b32.xlu0 %v1500, 92
      %v1562 = vpop.permute.xlu0 %1561
      %1563 = vrot.lane.b32.xlu0 %v1501, 92
      %v1564 = vpop.permute.xlu0 %1563
      %1565 = vrot.lane.b32.xlu0 %v1502, 92
      %v1566 = vpop.permute.xlu0 %1565
      %1567 = vrot.lane.b32.xlu0 %v1503, 92
      %v1568 = vpop.permute.xlu0 %1567
      %1569 = vrot.lane.b32.xlu0 %v1504, 92
      %v1570 = vpop.permute.xlu0 %1569
      %1571 = vrot.lane.b32.xlu0 %v1505, 92
      %v1572 = vpop.permute.xlu0 %1571
      %1573 = vrot.lane.b32.xlu0 %v1506, 92
      %v1574 = vpop.permute.xlu0 %1573
      %1575 = vrot.lane.b32.xlu0 %v1507, 92
      %v1576 = vpop.permute.xlu0 %1575
      %1577 = vrot.lane.b32.xlu0 %v1508, 92
      %v1578 = vpop.permute.xlu0 %1577
      %1579 = vrot.lane.b32.xlu0 %v1509, 92
      %v1580 = vpop.permute.xlu0 %1579
      %1581 = vrot.lane.b32.xlu0 %v1510, 92
      %v1582 = vpop.permute.xlu0 %1581
      %1583 = vrot.lane.b32.xlu0 %v1511, 92
      %v1584 = vpop.permute.xlu0 %1583
      %1585 = vrot.lane.b32.xlu0 %v1512, 92
      %v1586 = vpop.permute.xlu0 %1585
      %1587 = vrot.lane.b32.xlu0 %v1513, 92
      %v1588 = vpop.permute.xlu0 %1587
      %1589 = vrot.lane.b32.xlu0 %v1514, 92
      %v1590 = vpop.permute.xlu0 %1589
      %1591 = vrot.lane.b32.xlu0 %v1515, 92
      %v1592 = vpop.permute.xlu0 %1591
      %1593 = vrot.lane.b32.xlu0 %v1516, 92
      %v1594 = vpop.permute.xlu0 %1593
      %1595 = vrot.lane.b32.xlu0 %v1517, 92
      %v1596 = vpop.permute.xlu0 %1595
      %1597 = vrot.lane.b32.xlu0 %v1518, 92
      %v1598 = vpop.permute.xlu0 %1597
      %1599 = vrot.lane.b32.xlu0 %v1519, 92
      %v1600 = vpop.permute.xlu0 %1599
      %1601 = vrot.lane.b32.xlu0 %v1520, 92
      %v1602 = vpop.permute.xlu0 %1601
      %1603 = vrot.lane.b32.xlu0 %v1521, 92
      %v1604 = vpop.permute.xlu0 %1603
      %1605 = vrot.lane.b32.xlu0 %v1522, 92
      %v1606 = vpop.permute.xlu0 %1605
      %vm1607 = vcmask 752640
      %v1608 = vsel %vm1607, %v1552, %v1554
      %v1609 = vsel %vm1607, %v1554, %v1556
      %v1610 = vsel %vm1607, %v1556, %v1558
      %v1611 = vsel %vm1607, %v1558, %v1560
      %v1612 = vsel %vm1607, %v1560, %v1562
      %v1613 = vsel %vm1607, %v1562, %v1564
      %v1614 = vsel %vm1607, %v1566, %v1568
      %v1615 = vsel %vm1607, %v1568, %v1570
      %v1616 = vsel %vm1607, %v1570, %v1572
      %v1617 = vsel %vm1607, %v1572, %v1574
      %v1618 = vsel %vm1607, %v1574, %v1576
      %v1619 = vsel %vm1607, %v1576, %v1578
      %v1620 = vsel %vm1607, %v1580, %v1582
      %v1621 = vsel %vm1607, %v1582, %v1584
      %v1622 = vsel %vm1607, %v1584, %v1586
      %v1623 = vsel %vm1607, %v1586, %v1588
      %v1624 = vsel %vm1607, %v1588, %v1590
      %v1625 = vsel %vm1607, %v1590, %v1592
      %v1626 = vsel %vm1607, %v1594, %v1596
      %v1627 = vsel %vm1607, %v1596, %v1598
      %v1628 = vsel %vm1607, %v1598, %v1600
      %v1629 = vsel %vm1607, %v1600, %v1602
      %v1630 = vsel %vm1607, %v1602, %v1604
      %v1631 = vsel %vm1607, %v1604, %v1606
      %v1656 = vadd.f32 %v1455, %v1608
      %v1657 = vadd.f32 %v1456, %v1609
      %v1658 = vadd.f32 %v1457, %v1610
      %v1659 = vadd.f32 %v1458, %v1611
      %v1660 = vadd.f32 %v1459, %v1612
      %v1661 = vadd.f32 %v1460, %v1613
      %v1662 = vadd.f32 %v1461, %v1614
      %v1663 = vadd.f32 %v1462, %v1615
      %v1664 = vadd.f32 %v1463, %v1616
      %v1665 = vadd.f32 %v1464, %v1617
      %v1666 = vadd.f32 %v1465, %v1618
      %v1667 = vadd.f32 %v1466, %v1619
      %v1668 = vadd.f32 %v1467, %v1620
      %v1669 = vadd.f32 %v1468, %v1621
      %v1670 = vadd.f32 %v1469, %v1622
      %v1671 = vadd.f32 %v1470, %v1623
      %v1672 = vadd.f32 %v1471, %v1624
      %v1673 = vadd.f32 %v1472, %v1625
      %v1674 = vadd.f32 %v1473, %v1626
      %v1675 = vadd.f32 %v1474, %v1627
      %v1676 = vadd.f32 %v1475, %v1628
      %v1677 = vadd.f32 %v1476, %v1629
      %v1678 = vadd.f32 %v1477, %v1630
      %v1679 = vadd.f32 %v1478, %v1631
      %1680 = vset.pattern.permute.xlu0 7
      %1681 = vperm.xlu0 %1680, %v396
      %v1682 = vpop.permute.xlu0 %1681
      %1684 = vset.pattern.permute.xlu0 7
      %1685 = vperm.xlu0 %1684, %v397
      %v1686 = vpop.permute.xlu0 %1685
      %1688 = vset.pattern.permute.xlu0 7
      %1689 = vperm.xlu0 %1688, %v398
      %v1690 = vpop.permute.xlu0 %1689
      %1692 = vset.pattern.permute.xlu0 7
      %1693 = vperm.xlu0 %1692, %v399
      %v1694 = vpop.permute.xlu0 %1693
      %v1696 = vmul.f32 %v1682, %v476
      %v1697 = vmul.f32 %v1682, %v477
      %v1698 = vmul.f32 %v1682, %v478
      %v1699 = vmul.f32 %v1682, %v479
      %v1700 = vmul.f32 %v1682, %v480
      %v1701 = vmul.f32 %v1682, %v481
      %v1702 = vmul.f32 %v1682, %v482
      %v1703 = vmul.f32 %v1686, %v476
      %v1704 = vmul.f32 %v1686, %v477
      %v1705 = vmul.f32 %v1686, %v478
      %v1706 = vmul.f32 %v1686, %v479
      %v1707 = vmul.f32 %v1686, %v480
      %v1708 = vmul.f32 %v1686, %v481
      %v1709 = vmul.f32 %v1686, %v482
      %v1710 = vmul.f32 %v1690, %v476
      %v1711 = vmul.f32 %v1690, %v477
      %v1712 = vmul.f32 %v1690, %v478
      %v1713 = vmul.f32 %v1690, %v479
      %v1714 = vmul.f32 %v1690, %v480
      %v1715 = vmul.f32 %v1690, %v481
      %v1716 = vmul.f32 %v1690, %v482
      %v1717 = vmul.f32 %v1694, %v476
      %v1718 = vmul.f32 %v1694, %v477
      %v1719 = vmul.f32 %v1694, %v478
      %v1720 = vmul.f32 %v1694, %v479
      %v1721 = vmul.f32 %v1694, %v480
      %v1722 = vmul.f32 %v1694, %v481
      %v1723 = vmul.f32 %v1694, %v482
      %1752 = vrot.lane.b32.xlu0 %v1696, 91
      %v1753 = vpop.permute.xlu0 %1752
      %1754 = vrot.lane.b32.xlu0 %v1697, 91
      %v1755 = vpop.permute.xlu0 %1754
      %1756 = vrot.lane.b32.xlu0 %v1698, 91
      %v1757 = vpop.permute.xlu0 %1756
      %1758 = vrot.lane.b32.xlu0 %v1699, 91
      %v1759 = vpop.permute.xlu0 %1758
      %1760 = vrot.lane.b32.xlu0 %v1700, 91
      %v1761 = vpop.permute.xlu0 %1760
      %1762 = vrot.lane.b32.xlu0 %v1701, 91
      %v1763 = vpop.permute.xlu0 %1762
      %1764 = vrot.lane.b32.xlu0 %v1702, 91
      %v1765 = vpop.permute.xlu0 %1764
      %1766 = vrot.lane.b32.xlu0 %v1703, 91
      %v1767 = vpop.permute.xlu0 %1766
      %1768 = vrot.lane.b32.xlu0 %v1704, 91
      %v1769 = vpop.permute.xlu0 %1768
      %1770 = vrot.lane.b32.xlu0 %v1705, 91
      %v1771 = vpop.permute.xlu0 %1770
      %1772 = vrot.lane.b32.xlu0 %v1706, 91
      %v1773 = vpop.permute.xlu0 %1772
      %1774 = vrot.lane.b32.xlu0 %v1707, 91
      %v1775 = vpop.permute.xlu0 %1774
      %1776 = vrot.lane.b32.xlu0 %v1708, 91
      %v1777 = vpop.permute.xlu0 %1776
      %1778 = vrot.lane.b32.xlu0 %v1709, 91
      %v1779 = vpop.permute.xlu0 %1778
      %1780 = vrot.lane.b32.xlu0 %v1710, 91
      %v1781 = vpop.permute.xlu0 %1780
      %1782 = vrot.lane.b32.xlu0 %v1711, 91
      %v1783 = vpop.permute.xlu0 %1782
      %1784 = vrot.lane.b32.xlu0 %v1712, 91
      %v1785 = vpop.permute.xlu0 %1784
      %1786 = vrot.lane.b32.xlu0 %v1713, 91
      %v1787 = vpop.permute.xlu0 %1786
      %1788 = vrot.lane.b32.xlu0 %v1714, 91
      %v1789 = vpop.permute.xlu0 %1788
      %1790 = vrot.lane.b32.xlu0 %v1715, 91
      %v1791 = vpop.permute.xlu0 %1790
      %1792 = vrot.lane.b32.xlu0 %v1716, 91
      %v1793 = vpop.permute.xlu0 %1792
      %1794 = vrot.lane.b32.xlu0 %v1717, 91
      %v1795 = vpop.permute.xlu0 %1794
      %1796 = vrot.lane.b32.xlu0 %v1718, 91
      %v1797 = vpop.permute.xlu0 %1796
      %1798 = vrot.lane.b32.xlu0 %v1719, 91
      %v1799 = vpop.permute.xlu0 %1798
      %1800 = vrot.lane.b32.xlu0 %v1720, 91
      %v1801 = vpop.permute.xlu0 %1800
      %1802 = vrot.lane.b32.xlu0 %v1721, 91
      %v1803 = vpop.permute.xlu0 %1802
      %1804 = vrot.lane.b32.xlu0 %v1722, 91
      %v1805 = vpop.permute.xlu0 %1804
      %1806 = vrot.lane.b32.xlu0 %v1723, 91
      %v1807 = vpop.permute.xlu0 %1806
      %vm1808 = vcmask 744448
      %v1809 = vsel %vm1808, %v1753, %v1755
      %v1810 = vsel %vm1808, %v1755, %v1757
      %v1811 = vsel %vm1808, %v1757, %v1759
      %v1812 = vsel %vm1808, %v1759, %v1761
      %v1813 = vsel %vm1808, %v1761, %v1763
      %v1814 = vsel %vm1808, %v1763, %v1765
      %v1815 = vsel %vm1808, %v1767, %v1769
      %v1816 = vsel %vm1808, %v1769, %v1771
      %v1817 = vsel %vm1808, %v1771, %v1773
      %v1818 = vsel %vm1808, %v1773, %v1775
      %v1819 = vsel %vm1808, %v1775, %v1777
      %v1820 = vsel %vm1808, %v1777, %v1779
      %v1821 = vsel %vm1808, %v1781, %v1783
      %v1822 = vsel %vm1808, %v1783, %v1785
      %v1823 = vsel %vm1808, %v1785, %v1787
      %v1824 = vsel %vm1808, %v1787, %v1789
      %v1825 = vsel %vm1808, %v1789, %v1791
      %v1826 = vsel %vm1808, %v1791, %v1793
      %v1827 = vsel %vm1808, %v1795, %v1797
      %v1828 = vsel %vm1808, %v1797, %v1799
      %v1829 = vsel %vm1808, %v1799, %v1801
      %v1830 = vsel %vm1808, %v1801, %v1803
      %v1831 = vsel %vm1808, %v1803, %v1805
      %v1832 = vsel %vm1808, %v1805, %v1807
      %v1857 = vadd.f32 %v1656, %v1809
      %v1858 = vadd.f32 %v1657, %v1810
      %v1859 = vadd.f32 %v1658, %v1811
      %v1860 = vadd.f32 %v1659, %v1812
      %v1861 = vadd.f32 %v1660, %v1813
      %v1862 = vadd.f32 %v1661, %v1814
      %v1863 = vadd.f32 %v1662, %v1815
      %v1864 = vadd.f32 %v1663, %v1816
      %v1865 = vadd.f32 %v1664, %v1817
      %v1866 = vadd.f32 %v1665, %v1818
      %v1867 = vadd.f32 %v1666, %v1819
      %v1868 = vadd.f32 %v1667, %v1820
      %v1869 = vadd.f32 %v1668, %v1821
      %v1870 = vadd.f32 %v1669, %v1822
      %v1871 = vadd.f32 %v1670, %v1823
      %v1872 = vadd.f32 %v1671, %v1824
      %v1873 = vadd.f32 %v1672, %v1825
      %v1874 = vadd.f32 %v1673, %v1826
      %v1875 = vadd.f32 %v1674, %v1827
      %v1876 = vadd.f32 %v1675, %v1828
      %v1877 = vadd.f32 %v1676, %v1829
      %v1878 = vadd.f32 %v1677, %v1830
      %v1879 = vadd.f32 %v1678, %v1831
      %v1880 = vadd.f32 %v1679, %v1832
      %1881 = vset.pattern.permute.xlu0 8
      %1882 = vperm.xlu0 %1881, %v396
      %v1883 = vpop.permute.xlu0 %1882
      %1885 = vset.pattern.permute.xlu0 8
      %1886 = vperm.xlu0 %1885, %v397
      %v1887 = vpop.permute.xlu0 %1886
      %1889 = vset.pattern.permute.xlu0 8
      %1890 = vperm.xlu0 %1889, %v398
      %v1891 = vpop.permute.xlu0 %1890
      %1893 = vset.pattern.permute.xlu0 8
      %1894 = vperm.xlu0 %1893, %v399
      %v1895 = vpop.permute.xlu0 %1894
      %v1897 = vmul.f32 %v1883, %v476
      %v1898 = vmul.f32 %v1883, %v477
      %v1899 = vmul.f32 %v1883, %v478
      %v1900 = vmul.f32 %v1883, %v479
      %v1901 = vmul.f32 %v1883, %v480
      %v1902 = vmul.f32 %v1883, %v481
      %v1903 = vmul.f32 %v1883, %v482
      %v1904 = vmul.f32 %v1887, %v476
      %v1905 = vmul.f32 %v1887, %v477
      %v1906 = vmul.f32 %v1887, %v478
      %v1907 = vmul.f32 %v1887, %v479
      %v1908 = vmul.f32 %v1887, %v480
      %v1909 = vmul.f32 %v1887, %v481
      %v1910 = vmul.f32 %v1887, %v482
      %v1911 = vmul.f32 %v1891, %v476
      %v1912 = vmul.f32 %v1891, %v477
      %v1913 = vmul.f32 %v1891, %v478
      %v1914 = vmul.f32 %v1891, %v479
      %v1915 = vmul.f32 %v1891, %v480
      %v1916 = vmul.f32 %v1891, %v481
      %v1917 = vmul.f32 %v1891, %v482
      %v1918 = vmul.f32 %v1895, %v476
      %v1919 = vmul.f32 %v1895, %v477
      %v1920 = vmul.f32 %v1895, %v478
      %v1921 = vmul.f32 %v1895, %v479
      %v1922 = vmul.f32 %v1895, %v480
      %v1923 = vmul.f32 %v1895, %v481
      %v1924 = vmul.f32 %v1895, %v482
      %1953 = vrot.lane.b32.xlu0 %v1897, 90
      %v1954 = vpop.permute.xlu0 %1953
      %1955 = vrot.lane.b32.xlu0 %v1898, 90
      %v1956 = vpop.permute.xlu0 %1955
      %1957 = vrot.lane.b32.xlu0 %v1899, 90
      %v1958 = vpop.permute.xlu0 %1957
      %1959 = vrot.lane.b32.xlu0 %v1900, 90
      %v1960 = vpop.permute.xlu0 %1959
      %1961 = vrot.lane.b32.xlu0 %v1901, 90
      %v1962 = vpop.permute.xlu0 %1961
      %1963 = vrot.lane.b32.xlu0 %v1902, 90
      %v1964 = vpop.permute.xlu0 %1963
      %1965 = vrot.lane.b32.xlu0 %v1903, 90
      %v1966 = vpop.permute.xlu0 %1965
      %1967 = vrot.lane.b32.xlu0 %v1904, 90
      %v1968 = vpop.permute.xlu0 %1967
      %1969 = vrot.lane.b32.xlu0 %v1905, 90
      %v1970 = vpop.permute.xlu0 %1969
      %1971 = vrot.lane.b32.xlu0 %v1906, 90
      %v1972 = vpop.permute.xlu0 %1971
      %1973 = vrot.lane.b32.xlu0 %v1907, 90
      %v1974 = vpop.permute.xlu0 %1973
      %1975 = vrot.lane.b32.xlu0 %v1908, 90
      %v1976 = vpop.permute.xlu0 %1975
      %1977 = vrot.lane.b32.xlu0 %v1909, 90
      %v1978 = vpop.permute.xlu0 %1977
      %1979 = vrot.lane.b32.xlu0 %v1910, 90
      %v1980 = vpop.permute.xlu0 %1979
      %1981 = vrot.lane.b32.xlu0 %v1911, 90
      %v1982 = vpop.permute.xlu0 %1981
      %1983 = vrot.lane.b32.xlu0 %v1912, 90
      %v1984 = vpop.permute.xlu0 %1983
      %1985 = vrot.lane.b32.xlu0 %v1913, 90
      %v1986 = vpop.permute.xlu0 %1985
      %1987 = vrot.lane.b32.xlu0 %v1914, 90
      %v1988 = vpop.permute.xlu0 %1987
      %1989 = vrot.lane.b32.xlu0 %v1915, 90
      %v1990 = vpop.permute.xlu0 %1989
      %1991 = vrot.lane.b32.xlu0 %v1916, 90
      %v1992 = vpop.permute.xlu0 %1991
      %1993 = vrot.lane.b32.xlu0 %v1917, 90
      %v1994 = vpop.permute.xlu0 %1993
      %1995 = vrot.lane.b32.xlu0 %v1918, 90
      %v1996 = vpop.permute.xlu0 %1995
      %1997 = vrot.lane.b32.xlu0 %v1919, 90
      %v1998 = vpop.permute.xlu0 %1997
      %1999 = vrot.lane.b32.xlu0 %v1920, 90
      %v2000 = vpop.permute.xlu0 %1999
      %2001 = vrot.lane.b32.xlu0 %v1921, 90
      %v2002 = vpop.permute.xlu0 %2001
      %2003 = vrot.lane.b32.xlu0 %v1922, 90
      %v2004 = vpop.permute.xlu0 %2003
      %2005 = vrot.lane.b32.xlu0 %v1923, 90
      %v2006 = vpop.permute.xlu0 %2005
      %2007 = vrot.lane.b32.xlu0 %v1924, 90
      %v2008 = vpop.permute.xlu0 %2007
      %vm2009 = vcmask 736256
      %v2010 = vsel %vm2009, %v1954, %v1956
      %v2011 = vsel %vm2009, %v1956, %v1958
      %v2012 = vsel %vm2009, %v1958, %v1960
      %v2013 = vsel %vm2009, %v1960, %v1962
      %v2014 = vsel %vm2009, %v1962, %v1964
      %v2015 = vsel %vm2009, %v1964, %v1966
      %v2016 = vsel %vm2009, %v1968, %v1970
      %v2017 = vsel %vm2009, %v1970, %v1972
      %v2018 = vsel %vm2009, %v1972, %v1974
      %v2019 = vsel %vm2009, %v1974, %v1976
      %v2020 = vsel %vm2009, %v1976, %v1978
      %v2021 = vsel %vm2009, %v1978, %v1980
      %v2022 = vsel %vm2009, %v1982, %v1984
      %v2023 = vsel %vm2009, %v1984, %v1986
      %v2024 = vsel %vm2009, %v1986, %v1988
      %v2025 = vsel %vm2009, %v1988, %v1990
      %v2026 = vsel %vm2009, %v1990, %v1992
      %v2027 = vsel %vm2009, %v1992, %v1994
      %v2028 = vsel %vm2009, %v1996, %v1998
      %v2029 = vsel %vm2009, %v1998, %v2000
      %v2030 = vsel %vm2009, %v2000, %v2002
      %v2031 = vsel %vm2009, %v2002, %v2004
      %v2032 = vsel %vm2009, %v2004, %v2006
      %v2033 = vsel %vm2009, %v2006, %v2008
      %v2058 = vadd.f32 %v1857, %v2010
      %v2059 = vadd.f32 %v1858, %v2011
      %v2060 = vadd.f32 %v1859, %v2012
      %v2061 = vadd.f32 %v1860, %v2013
      %v2062 = vadd.f32 %v1861, %v2014
      %v2063 = vadd.f32 %v1862, %v2015
      %v2064 = vadd.f32 %v1863, %v2016
      %v2065 = vadd.f32 %v1864, %v2017
      %v2066 = vadd.f32 %v1865, %v2018
      %v2067 = vadd.f32 %v1866, %v2019
      %v2068 = vadd.f32 %v1867, %v2020
      %v2069 = vadd.f32 %v1868, %v2021
      %v2070 = vadd.f32 %v1869, %v2022
      %v2071 = vadd.f32 %v1870, %v2023
      %v2072 = vadd.f32 %v1871, %v2024
      %v2073 = vadd.f32 %v1872, %v2025
      %v2074 = vadd.f32 %v1873, %v2026
      %v2075 = vadd.f32 %v1874, %v2027
      %v2076 = vadd.f32 %v1875, %v2028
      %v2077 = vadd.f32 %v1876, %v2029
      %v2078 = vadd.f32 %v1877, %v2030
      %v2079 = vadd.f32 %v1878, %v2031
      %v2080 = vadd.f32 %v1879, %v2032
      %v2081 = vadd.f32 %v1880, %v2033
      %v2082 = vld [vmem:[%s4] sm:$0xff]
      %v2083 = vld [vmem:[%s4 + $0x8] sm:$0xff]
      %v2084 = vld [vmem:[%s4 + $0x10] sm:$0xff]
      %v2085 = vld [vmem:[%s4 + $0x18] sm:$0xff]
      %2087 = vset.pattern.permute.xlu0 0
      %2088 = vperm.xlu0 %2087, %v2082
      %v2089 = vpop.permute.xlu0 %2088
      %2092 = vset.pattern.permute.xlu0 0
      %2093 = vperm.xlu0 %2092, %v2083
      %v2094 = vpop.permute.xlu0 %2093
      %2097 = vset.pattern.permute.xlu0 0
      %2098 = vperm.xlu0 %2097, %v2084
      %v2099 = vpop.permute.xlu0 %2098
      %2102 = vset.pattern.permute.xlu0 0
      %2103 = vperm.xlu0 %2102, %v2085
      %v2104 = vpop.permute.xlu0 %2103
      %v2106 = vadd.f32 %v2058, %v2089
      %v2107 = vadd.f32 %v2059, %v2089
      %v2108 = vadd.f32 %v2060, %v2089
      %v2109 = vadd.f32 %v2061, %v2089
      %v2110 = vadd.f32 %v2062, %v2089
      %v2111 = vadd.f32 %v2063, %v2089
      %v2112 = vadd.f32 %v2064, %v2094
      %v2113 = vadd.f32 %v2065, %v2094
      %v2114 = vadd.f32 %v2066, %v2094
      %v2115 = vadd.f32 %v2067, %v2094
      %v2116 = vadd.f32 %v2068, %v2094
      %v2117 = vadd.f32 %v2069, %v2094
      %v2118 = vadd.f32 %v2070, %v2099
      %v2119 = vadd.f32 %v2071, %v2099
      %v2120 = vadd.f32 %v2072, %v2099
      %v2121 = vadd.f32 %v2073, %v2099
      %v2122 = vadd.f32 %v2074, %v2099
      %v2123 = vadd.f32 %v2075, %v2099
      %v2124 = vadd.f32 %v2076, %v2104
      %v2125 = vadd.f32 %v2077, %v2104
      %v2126 = vadd.f32 %v2078, %v2104
      %v2127 = vadd.f32 %v2079, %v2104
      %v2128 = vadd.f32 %v2080, %v2104
      %v2129 = vadd.f32 %v2081, %v2104
      %v2130 = vmax.f32 %v2106, 0.0
      %v2131 = vmax.f32 %v2107, 0.0
      %v2132 = vmax.f32 %v2108, 0.0
      %v2133 = vmax.f32 %v2109, 0.0
      %v2134 = vmax.f32 %v2110, 0.0
      %v2135 = vmax.f32 %v2111, 0.0
      %v2136 = vmax.f32 %v2112, 0.0
      %v2137 = vmax.f32 %v2113, 0.0
      %v2138 = vmax.f32 %v2114, 0.0
      %v2139 = vmax.f32 %v2115, 0.0
      %v2140 = vmax.f32 %v2116, 0.0
      %v2141 = vmax.f32 %v2117, 0.0
      %v2142 = vmax.f32 %v2118, 0.0
      %v2143 = vmax.f32 %v2119, 0.0
      %v2144 = vmax.f32 %v2120, 0.0
      %v2145 = vmax.f32 %v2121, 0.0
      %v2146 = vmax.f32 %v2122, 0.0
      %v2147 = vmax.f32 %v2123, 0.0
      %v2148 = vmax.f32 %v2124, 0.0
      %v2149 = vmax.f32 %v2125, 0.0
      %v2150 = vmax.f32 %v2126, 0.0
      %v2151 = vmax.f32 %v2127, 0.0
      %v2152 = vmax.f32 %v2128, 0.0
      %v2153 = vmax.f32 %v2129, 0.0
      %v2154 = vld [vmem:[%s1] sm:$0x3f]
      %v2156 = vperm.slane %v2154, 0
      %v2157 = vperm.slane %v2154, 1
      %v2158 = vperm.slane %v2154, 2
      %v2159 = vperm.slane %v2154, 3
      %v2160 = vperm.slane %v2154, 4
      %v2161 = vperm.slane %v2154, 5
      %v2168 = vmul.f32 %v2130, %v2156
      %v2169 = vmul.f32 %v2131, %v2157
      %v2170 = vmul.f32 %v2132, %v2158
      %v2171 = vmul.f32 %v2133, %v2159
      %v2172 = vmul.f32 %v2134, %v2160
      %v2173 = vmul.f32 %v2135, %v2161
      %v2174 = vmul.f32 %v2136, %v2156
      %v2175 = vmul.f32 %v2137, %v2157
      %v2176 = vmul.f32 %v2138, %v2158
      %v2177 = vmul.f32 %v2139, %v2159
      %v2178 = vmul.f32 %v2140, %v2160
      %v2179 = vmul.f32 %v2141, %v2161
      %v2180 = vmul.f32 %v2142, %v2156
      %v2181 = vmul.f32 %v2143, %v2157
      %v2182 = vmul.f32 %v2144, %v2158
      %v2183 = vmul.f32 %v2145, %v2159
      %v2184 = vmul.f32 %v2146, %v2160
      %v2185 = vmul.f32 %v2147, %v2161
      %v2186 = vmul.f32 %v2148, %v2156
      %v2187 = vmul.f32 %v2149, %v2157
      %v2188 = vmul.f32 %v2150, %v2158
      %v2189 = vmul.f32 %v2151, %v2159
      %v2190 = vmul.f32 %v2152, %v2160
      %v2191 = vmul.f32 %v2153, %v2161
      %vm2192 = vcmask 150528
      %2193 = vst.msk [vmem:[#allocation3] sm:$0xf] %vm2192, 0
      %2194 = vst.msk [vmem:[#allocation3 + $0x1c] sm:$0xf] %vm2192, 0
      %2195 = vst.msk [vmem:[#allocation3 + $0x38] sm:$0xf] %vm2192, 0
      %2196 = vst.msk [vmem:[#allocation3 + $0x54] sm:$0xf] %vm2192, 0
      %v2197 = vpack.c.bf16 %v2169, %v2168
      %v2198 = vpack.c.bf16 %v2171, %v2170
      %v2199 = vpack.c.bf16 %v2173, %v2172
      %v2200 = vpack.c.bf16 %v2175, %v2174
      %v2201 = vpack.c.bf16 %v2177, %v2176
      %v2202 = vpack.c.bf16 %v2179, %v2178
      %v2203 = vpack.c.bf16 %v2181, %v2180
      %v2204 = vpack.c.bf16 %v2183, %v2182
      %v2205 = vpack.c.bf16 %v2185, %v2184
      %v2206 = vpack.c.bf16 %v2187, %v2186
      %v2207 = vpack.c.bf16 %v2189, %v2188
      %v2208 = vpack.c.bf16 %v2191, %v2190
      %2221 = vrot.lane.b32.xlu0 %v2197, 19
      %v2222 = vpop.permute.xlu0 %2221
      %2223 = vrot.lane.b32.xlu0 %v2198, 19
      %v2224 = vpop.permute.xlu0 %2223
      %2225 = vrot.lane.b32.xlu0 %v2199, 19
      %v2226 = vpop.permute.xlu0 %2225
      %2227 = vrot.lane.b32.xlu0 %v2200, 19
      %v2228 = vpop.permute.xlu0 %2227
      %2229 = vrot.lane.b32.xlu0 %v2201, 19
      %v2230 = vpop.permute.xlu0 %2229
      %2231 = vrot.lane.b32.xlu0 %v2202, 19
      %v2232 = vpop.permute.xlu0 %2231
      %2233 = vrot.lane.b32.xlu0 %v2203, 19
      %v2234 = vpop.permute.xlu0 %2233
      %2235 = vrot.lane.b32.xlu0 %v2204, 19
      %v2236 = vpop.permute.xlu0 %2235
      %2237 = vrot.lane.b32.xlu0 %v2205, 19
      %v2238 = vpop.permute.xlu0 %2237
      %2239 = vrot.lane.b32.xlu0 %v2206, 19
      %v2240 = vpop.permute.xlu0 %2239
      %2241 = vrot.lane.b32.xlu0 %v2207, 19
      %v2242 = vpop.permute.xlu0 %2241
      %2243 = vrot.lane.b32.xlu0 %v2208, 19
      %v2244 = vpop.permute.xlu0 %2243
      %v2245 = vrot.slane %v2222, 4
      %v2246 = vrot.slane %v2224, 4
      %v2247 = vrot.slane %v2226, 4
      %v2248 = vrot.slane %v2228, 4
      %v2249 = vrot.slane %v2230, 4
      %v2250 = vrot.slane %v2232, 4
      %v2251 = vrot.slane %v2234, 4
      %v2252 = vrot.slane %v2236, 4
      %v2253 = vrot.slane %v2238, 4
      %v2254 = vrot.slane %v2240, 4
      %v2255 = vrot.slane %v2242, 4
      %v2256 = vrot.slane %v2244, 4
      %vm2257 = vcmask 154624
      %v2258 = vsel %vm2257, %v2245, %v2222
      %vm2259 = vcmask 1043456
      %v2260 = vsel %vm2259, %v2245, %v2246
      %v2261 = vsel %vm2257, %v2260, %v2224
      %v2262 = vsel %vm2259, %v2246, %v2247
      %v2263 = vsel %vm2257, %v2262, %v2226
      %v2264 = vsel %vm2257, %v2248, %v2228
      %v2265 = vsel %vm2259, %v2248, %v2249
      %v2266 = vsel %vm2257, %v2265, %v2230
      %v2267 = vsel %vm2259, %v2249, %v2250
      %v2268 = vsel %vm2257, %v2267, %v2232
      %v2269 = vsel %vm2257, %v2251, %v2234
      %v2270 = vsel %vm2259, %v2251, %v2252
      %v2271 = vsel %vm2257, %v2270, %v2236
      %v2272 = vsel %vm2259, %v2252, %v2253
      %v2273 = vsel %vm2257, %v2272, %v2238
      %v2274 = vsel %vm2257, %v2254, %v2240
      %v2275 = vsel %vm2259, %v2254, %v2255
      %v2276 = vsel %vm2257, %v2275, %v2242
      %v2277 = vsel %vm2259, %v2255, %v2256
      %v2278 = vsel %vm2257, %v2277, %v2244
      %vm2295 = vcmask 1043608
      %vm2296 = vcmask 1047556
      %vm2297 = vmor %vm2296, %vm2295
      %2298 = vst.msk [vmem:[#allocation3] sm:$0xff] %vm2297, %v2258
      %2299 = vst [vmem:[#allocation3 + $0x8] sm:$0xff] %v2261
      %2300 = vst [vmem:[#allocation3 + $0x10] sm:$0xff] %v2263
      %2301 = vst.msk [vmem:[#allocation3 + $0x18] sm:$0xf] %vm2192, %v2247
      %2302 = vst.msk [vmem:[#allocation3 + $0x1c] sm:$0xff] %vm2297, %v2264
      %2303 = vst [vmem:[#allocation3 + $0x24] sm:$0xff] %v2266
      %2304 = vst [vmem:[#allocation3 + $0x2c] sm:$0xff] %v2268
      %2305 = vst.msk [vmem:[#allocation3 + $0x34] sm:$0xf] %vm2192, %v2250
      %2306 = vst.msk [vmem:[#allocation3 + $0x38] sm:$0xff] %vm2297, %v2269
      %2307 = vst [vmem:[#allocation3 + $0x40] sm:$0xff] %v2271
      %2308 = vst [vmem:[#allocation3 + $0x48] sm:$0xff] %v2273
      %2309 = vst.msk [vmem:[#allocation3 + $0x50] sm:$0xf] %vm2192, %v2253
      %2310 = vst.msk [vmem:[#allocation3 + $0x54] sm:$0xff] %vm2297, %v2274
      %2311 = vst [vmem:[#allocation3 + $0x5c] sm:$0xff] %v2276
      %2312 = vst [vmem:[#allocation3 + $0x64] sm:$0xff] %v2278
      %2313 = vst.msk [vmem:[#allocation3 + $0x6c] sm:$0xf] %vm2192, %v2256
      %2314 = vst.msk [vmem:[#allocation3 + $0x18] sm:$0xf] %vm2295, 0
      %2315 = vst.msk [vmem:[#allocation3 + $0x34] sm:$0xf] %vm2295, 0
      %2316 = vst.msk [vmem:[#allocation3 + $0x50] sm:$0xf] %vm2295, 0
      %2317 = vst.msk [vmem:[#allocation3 + $0x6c] sm:$0xf] %vm2295, 0
      %v2318 = vld [vmem:[#allocation3] sm:$0xff]
      %v2319 = vld [vmem:[#allocation3 + $0x8] sm:$0xff]
      %v2320 = vld [vmem:[#allocation3 + $0x10] sm:$0xff]
      %v2321 = vld [vmem:[#allocation3 + $0x1c] sm:$0xff]
      %v2322 = vld [vmem:[#allocation3 + $0x24] sm:$0xff]
      %v2323 = vld [vmem:[#allocation3 + $0x2c] sm:$0xff]
      %v2324 = vld [vmem:[#allocation3 + $0x38] sm:$0xff]
      %v2325 = vld [vmem:[#allocation3 + $0x40] sm:$0xff]
      %v2326 = vld [vmem:[#allocation3 + $0x48] sm:$0xff]
      %v2327 = vld [vmem:[#allocation3 + $0x54] sm:$0xff]
      %v2328 = vld [vmem:[#allocation3 + $0x5c] sm:$0xff]
      %v2329 = vld [vmem:[#allocation3 + $0x64] sm:$0xff]
      %2330 = vst [vmem:[#allocation4] sm:$0xff] %v2318
      %2331 = vst [vmem:[#allocation4 + $0x8] sm:$0xff] %v2319
      %2332 = vst [vmem:[#allocation4 + $0x10] sm:$0xff] %v2320
      %2333 = vst [vmem:[#allocation4 + $0x18] sm:$0xff] %v2321
      %2334 = vst [vmem:[#allocation4 + $0x20] sm:$0xff] %v2322
      %2335 = vst [vmem:[#allocation4 + $0x28] sm:$0xff] %v2323
      %2336 = vst [vmem:[#allocation4 + $0x30] sm:$0xff] %v2324
      %2337 = vst [vmem:[#allocation4 + $0x38] sm:$0xff] %v2325
      %2338 = vst [vmem:[#allocation4 + $0x40] sm:$0xff] %v2326
      %2339 = vst [vmem:[#allocation4 + $0x48] sm:$0xff] %v2327
      %2340 = vst [vmem:[#allocation4 + $0x50] sm:$0xff] %v2328
      %2341 = vst [vmem:[#allocation4 + $0x58] sm:$0xff] %v2329
      %v2342 = vld [vmem:[#allocation3] sm:$0xff]
      %v2343 = vld [vmem:[#allocation3 + $0x8] sm:$0xff]
      %v2344 = vld [vmem:[#allocation3 + $0x10] sm:$0xff]
      %v2345 = vld [vmem:[#allocation3 + $0x18] sm:$0xf]
      %v2346 = vld [vmem:[#allocation3 + $0x1c] sm:$0xff]
      %v2347 = vld [vmem:[#allocation3 + $0x24] sm:$0xff]
      %v2348 = vld [vmem:[#allocation3 + $0x2c] sm:$0xff]
      %v2349 = vld [vmem:[#allocation3 + $0x34] sm:$0xf]
      %v2350 = vld [vmem:[#allocation3 + $0x38] sm:$0xff]
      %v2351 = vld [vmem:[#allocation3 + $0x40] sm:$0xff]
      %v2352 = vld [vmem:[#allocation3 + $0x48] sm:$0xff]
      %v2353 = vld [vmem:[#allocation3 + $0x50] sm:$0xf]
      %v2354 = vld [vmem:[#allocation3 + $0x54] sm:$0xff]
      %v2355 = vld [vmem:[#allocation3 + $0x5c] sm:$0xff]
      %v2356 = vld [vmem:[#allocation3 + $0x64] sm:$0xff]
      %v2357 = vld [vmem:[#allocation3 + $0x6c] sm:$0xf]
      %2374 = vrot.lane.b32.xlu0 %v2342, 127
      %v2375 = vpop.permute.xlu0 %2374
      %2376 = vrot.lane.b32.xlu0 %v2343, 127
      %v2377 = vpop.permute.xlu0 %2376
      %2378 = vrot.lane.b32.xlu0 %v2344, 127
      %v2379 = vpop.permute.xlu0 %2378
      %2380 = vrot.lane.b32.xlu0 %v2345, 127
      %v2381 = vpop.permute.xlu0 %2380
      %2382 = vrot.lane.b32.xlu0 %v2346, 127
      %v2383 = vpop.permute.xlu0 %2382
      %2384 = vrot.lane.b32.xlu0 %v2347, 127
      %v2385 = vpop.permute.xlu0 %2384
      %2386 = vrot.lane.b32.xlu0 %v2348, 127
      %v2387 = vpop.permute.xlu0 %2386
      %2388 = vrot.lane.b32.xlu0 %v2349, 127
      %v2389 = vpop.permute.xlu0 %2388
      %2390 = vrot.lane.b32.xlu0 %v2350, 127
      %v2391 = vpop.permute.xlu0 %2390
      %2392 = vrot.lane.b32.xlu0 %v2351, 127
      %v2393 = vpop.permute.xlu0 %2392
      %2394 = vrot.lane.b32.xlu0 %v2352, 127
      %v2395 = vpop.permute.xlu0 %2394
      %2396 = vrot.lane.b32.xlu0 %v2353, 127
      %v2397 = vpop.permute.xlu0 %2396
      %2398 = vrot.lane.b32.xlu0 %v2354, 127
      %v2399 = vpop.permute.xlu0 %2398
      %2400 = vrot.lane.b32.xlu0 %v2355, 127
      %v2401 = vpop.permute.xlu0 %2400
      %2402 = vrot.lane.b32.xlu0 %v2356, 127
      %v2403 = vpop.permute.xlu0 %2402
      %2404 = vrot.lane.b32.xlu0 %v2357, 127
      %v2405 = vpop.permute.xlu0 %2404
      %v2406 = vrot.slane %v2375, 4
      %v2407 = vrot.slane %v2377, 4
      %v2408 = vrot.slane %v2379, 4
      %v2409 = vrot.slane %v2381, 4
      %v2410 = vrot.slane %v2383, 4
      %v2411 = vrot.slane %v2385, 4
      %v2412 = vrot.slane %v2387, 4
      %v2413 = vrot.slane %v2389, 4
      %v2414 = vrot.slane %v2391, 4
      %v2415 = vrot.slane %v2393, 4
      %v2416 = vrot.slane %v2395, 4
      %v2417 = vrot.slane %v2397, 4
      %v2418 = vrot.slane %v2399, 4
      %v2419 = vrot.slane %v2401, 4
      %v2420 = vrot.slane %v2403, 4
      %v2421 = vrot.slane %v2405, 4
      %v2422 = vsel %vm2259, %v2406, %v2407
      %vm2423 = vcmask 1039360
      %v2424 = vsel %vm2423, %v2375, %v2422
      %v2425 = vsel %vm2259, %v2407, %v2408
      %v2426 = vsel %vm2423, %v2377, %v2425
      %v2427 = vsel %vm2259, %v2408, %v2409
      %v2428 = vsel %vm2423, %v2379, %v2427
      %v2429 = vsel %vm2259, %v2410, %v2411
      %v2430 = vsel %vm2423, %v2383, %v2429
      %v2431 = vsel %vm2259, %v2411, %v2412
      %v2432 = vsel %vm2423, %v2385, %v2431
      %v2433 = vsel %vm2259, %v2412, %v2413
      %v2434 = vsel %vm2423, %v2387, %v2433
      %v2435 = vsel %vm2259, %v2414, %v2415
      %v2436 = vsel %vm2423, %v2391, %v2435
      %v2437 = vsel %vm2259, %v2415, %v2416
      %v2438 = vsel %vm2423, %v2393, %v2437
      %v2439 = vsel %vm2259, %v2416, %v2417
      %v2440 = vsel %vm2423, %v2395, %v2439
      %v2441 = vsel %vm2259, %v2418, %v2419
      %v2442 = vsel %vm2423, %v2399, %v2441
      %v2443 = vsel %vm2259, %v2419, %v2420
      %v2444 = vsel %vm2423, %v2401, %v2443
      %v2445 = vsel %vm2259, %v2420, %v2421
      %v2446 = vsel %vm2423, %v2403, %v2445
      %2459 = vst [vmem:[#allocation4 + $0x60] sm:$0xff] %v2424
      %2460 = vst [vmem:[#allocation4 + $0x68] sm:$0xff] %v2426
      %2461 = vst [vmem:[#allocation4 + $0x70] sm:$0xff] %v2428
      %2462 = vst [vmem:[#allocation4 + $0x78] sm:$0xff] %v2430
      %2463 = vst [vmem:[#allocation4 + $0x80] sm:$0xff] %v2432
      %2464 = vst [vmem:[#allocation4 + $0x88] sm:$0xff] %v2434
      %2465 = vst [vmem:[#allocation4 + $0x90] sm:$0xff] %v2436
      %2466 = vst [vmem:[#allocation4 + $0x98] sm:$0xff] %v2438
      %2467 = vst [vmem:[#allocation4 + $0xa0] sm:$0xff] %v2440
      %2468 = vst [vmem:[#allocation4 + $0xa8] sm:$0xff] %v2442
      %2469 = vst [vmem:[#allocation4 + $0xb0] sm:$0xff] %v2444
      %2470 = vst [vmem:[#allocation4 + $0xb8] sm:$0xff] %v2446
      %v2471 = vld [vmem:[#allocation3] sm:$0xff]
      %v2472 = vld [vmem:[#allocation3 + $0x8] sm:$0xff]
      %v2473 = vld [vmem:[#allocation3 + $0x10] sm:$0xff]
      %v2474 = vld [vmem:[#allocation3 + $0x18] sm:$0xf]
      %v2475 = vld [vmem:[#allocation3 + $0x1c] sm:$0xff]
      %v2476 = vld [vmem:[#allocation3 + $0x24] sm:$0xff]
      %v2477 = vld [vmem:[#allocation3 + $0x2c] sm:$0xff]
      %v2478 = vld [vmem:[#allocation3 + $0x34] sm:$0xf]
      %v2479 = vld [vmem:[#allocation3 + $0x38] sm:$0xff]
      %v2480 = vld [vmem:[#allocation3 + $0x40] sm:$0xff]
      %v2481 = vld [vmem:[#allocation3 + $0x48] sm:$0xff]
      %v2482 = vld [vmem:[#allocation3 + $0x50] sm:$0xf]
      %v2483 = vld [vmem:[#allocation3 + $0x54] sm:$0xff]
      %v2484 = vld [vmem:[#allocation3 + $0x5c] sm:$0xff]
      %v2485 = vld [vmem:[#allocation3 + $0x64] sm:$0xff]
      %v2486 = vld [vmem:[#allocation3 + $0x6c] sm:$0xf]
      %2503 = vrot.lane.b32.xlu0 %v2471, 126
      %v2504 = vpop.permute.xlu0 %2503
      %2505 = vrot.lane.b32.xlu0 %v2472, 126
      %v2506 = vpop.permute.xlu0 %2505
      %2507 = vrot.lane.b32.xlu0 %v2473, 126
      %v2508 = vpop.permute.xlu0 %2507
      %2509 = vrot.lane.b32.xlu0 %v2474, 126
      %v2510 = vpop.permute.xlu0 %2509
      %2511 = vrot.lane.b32.xlu0 %v2475, 126
      %v2512 = vpop.permute.xlu0 %2511
      %2513 = vrot.lane.b32.xlu0 %v2476, 126
      %v2514 = vpop.permute.xlu0 %2513
      %2515 = vrot.lane.b32.xlu0 %v2477, 126
      %v2516 = vpop.permute.xlu0 %2515
      %2517 = vrot.lane.b32.xlu0 %v2478, 126
      %v2518 = vpop.permute.xlu0 %2517
      %2519 = vrot.lane.b32.xlu0 %v2479, 126
      %v2520 = vpop.permute.xlu0 %2519
      %2521 = vrot.lane.b32.xlu0 %v2480, 126
      %v2522 = vpop.permute.xlu0 %2521
      %2523 = vrot.lane.b32.xlu0 %v2481, 126
      %v2524 = vpop.permute.xlu0 %2523
      %2525 = vrot.lane.b32.xlu0 %v2482, 126
      %v2526 = vpop.permute.xlu0 %2525
      %2527 = vrot.lane.b32.xlu0 %v2483, 126
      %v2528 = vpop.permute.xlu0 %2527
      %2529 = vrot.lane.b32.xlu0 %v2484, 126
      %v2530 = vpop.permute.xlu0 %2529
      %2531 = vrot.lane.b32.xlu0 %v2485, 126
      %v2532 = vpop.permute.xlu0 %2531
      %2533 = vrot.lane.b32.xlu0 %v2486, 126
      %v2534 = vpop.permute.xlu0 %2533
      %v2535 = vrot.slane %v2504, 4
      %v2536 = vrot.slane %v2506, 4
      %v2537 = vrot.slane %v2508, 4
      %v2538 = vrot.slane %v2510, 4
      %v2539 = vrot.slane %v2512, 4
      %v2540 = vrot.slane %v2514, 4
      %v2541 = vrot.slane %v2516, 4
      %v2542 = vrot.slane %v2518, 4
      %v2543 = vrot.slane %v2520, 4
      %v2544 = vrot.slane %v2522, 4
      %v2545 = vrot.slane %v2524, 4
      %v2546 = vrot.slane %v2526, 4
      %v2547 = vrot.slane %v2528, 4
      %v2548 = vrot.slane %v2530, 4
      %v2549 = vrot.slane %v2532, 4
      %v2550 = vrot.slane %v2534, 4
      %v2551 = vsel %vm2259, %v2535, %v2536
      %vm2552 = vcmask 1031168
      %v2553 = vsel %vm2552, %v2504, %v2551
      %v2554 = vsel %vm2259, %v2536, %v2537
      %v2555 = vsel %vm2552, %v2506, %v2554
      %v2556 = vsel %vm2259, %v2537, %v2538
      %v2557 = vsel %vm2552, %v2508, %v2556
      %v2558 = vsel %vm2259, %v2539, %v2540
      %v2559 = vsel %vm2552, %v2512, %v2558
      %v2560 = vsel %vm2259, %v2540, %v2541
      %v2561 = vsel %vm2552, %v2514, %v2560
      %v2562 = vsel %vm2259, %v2541, %v2542
      %v2563 = vsel %vm2552, %v2516, %v2562
      %v2564 = vsel %vm2259, %v2543, %v2544
      %v2565 = vsel %vm2552, %v2520, %v2564
      %v2566 = vsel %vm2259, %v2544, %v2545
      %v2567 = vsel %vm2552, %v2522, %v2566
      %v2568 = vsel %vm2259, %v2545, %v2546
      %v2569 = vsel %vm2552, %v2524, %v2568
      %v2570 = vsel %vm2259, %v2547, %v2548
      %v2571 = vsel %vm2552, %v2528, %v2570
      %v2572 = vsel %vm2259, %v2548, %v2549
      %v2573 = vsel %vm2552, %v2530, %v2572
      %v2574 = vsel %vm2259, %v2549, %v2550
      %v2575 = vsel %vm2552, %v2532, %v2574
      %2588 = vst [vmem:[#allocation4 + $0xc0] sm:$0xff] %v2553
      %2589 = vst [vmem:[#allocation4 + $0xc8] sm:$0xff] %v2555
      %2590 = vst [vmem:[#allocation4 + $0xd0] sm:$0xff] %v2557
      %2591 = vst [vmem:[#allocation4 + $0xd8] sm:$0xff] %v2559
      %2592 = vst [vmem:[#allocation4 + $0xe0] sm:$0xff] %v2561
      %2593 = vst [vmem:[#allocation4 + $0xe8] sm:$0xff] %v2563
      %2594 = vst [vmem:[#allocation4 + $0xf0] sm:$0xff] %v2565
      %2595 = vst [vmem:[#allocation4 + $0xf8] sm:$0xff] %v2567
      %2596 = vst [vmem:[#allocation4 + $0x100] sm:$0xff] %v2569
      %2597 = vst [vmem:[#allocation4 + $0x108] sm:$0xff] %v2571
      %2598 = vst [vmem:[#allocation4 + $0x110] sm:$0xff] %v2573
      %2599 = vst [vmem:[#allocation4 + $0x118] sm:$0xff] %v2575
      %v2600 = vld [vmem:[#allocation3] sm:$0xff]
      %v2601 = vld [vmem:[#allocation3 + $0x8] sm:$0xff]
      %v2602 = vld [vmem:[#allocation3 + $0x10] sm:$0xff]
      %v2603 = vld [vmem:[#allocation3 + $0x18] sm:$0xf]
      %v2604 = vld [vmem:[#allocation3 + $0x1c] sm:$0xff]
      %v2605 = vld [vmem:[#allocation3 + $0x24] sm:$0xff]
      %v2606 = vld [vmem:[#allocation3 + $0x2c] sm:$0xff]
      %v2607 = vld [vmem:[#allocation3 + $0x34] sm:$0xf]
      %v2608 = vld [vmem:[#allocation3 + $0x38] sm:$0xff]
      %v2609 = vld [vmem:[#allocation3 + $0x40] sm:$0xff]
      %v2610 = vld [vmem:[#allocation3 + $0x48] sm:$0xff]
      %v2611 = vld [vmem:[#allocation3 + $0x50] sm:$0xf]
      %v2612 = vld [vmem:[#allocation3 + $0x54] sm:$0xff]
      %v2613 = vld [vmem:[#allocation3 + $0x5c] sm:$0xff]
      %v2614 = vld [vmem:[#allocation3 + $0x64] sm:$0xff]
      %v2615 = vld [vmem:[#allocation3 + $0x6c] sm:$0xf]
      %2632 = vrot.lane.b32.xlu0 %v2600, 110
      %v2633 = vpop.permute.xlu0 %2632
      %2634 = vrot.lane.b32.xlu0 %v2601, 110
      %v2635 = vpop.permute.xlu0 %2634
      %2636 = vrot.lane.b32.xlu0 %v2602, 110
      %v2637 = vpop.permute.xlu0 %2636
      %2638 = vrot.lane.b32.xlu0 %v2603, 110
      %v2639 = vpop.permute.xlu0 %2638
      %2640 = vrot.lane.b32.xlu0 %v2604, 110
      %v2641 = vpop.permute.xlu0 %2640
      %2642 = vrot.lane.b32.xlu0 %v2605, 110
      %v2643 = vpop.permute.xlu0 %2642
      %2644 = vrot.lane.b32.xlu0 %v2606, 110
      %v2645 = vpop.permute.xlu0 %2644
      %2646 = vrot.lane.b32.xlu0 %v2607, 110
      %v2647 = vpop.permute.xlu0 %2646
      %2648 = vrot.lane.b32.xlu0 %v2608, 110
      %v2649 = vpop.permute.xlu0 %2648
      %2650 = vrot.lane.b32.xlu0 %v2609, 110
      %v2651 = vpop.permute.xlu0 %2650
      %2652 = vrot.lane.b32.xlu0 %v2610, 110
      %v2653 = vpop.permute.xlu0 %2652
      %2654 = vrot.lane.b32.xlu0 %v2611, 110
      %v2655 = vpop.permute.xlu0 %2654
      %2656 = vrot.lane.b32.xlu0 %v2612, 110
      %v2657 = vpop.permute.xlu0 %2656
      %2658 = vrot.lane.b32.xlu0 %v2613, 110
      %v2659 = vpop.permute.xlu0 %2658
      %2660 = vrot.lane.b32.xlu0 %v2614, 110
      %v2661 = vpop.permute.xlu0 %2660
      %2662 = vrot.lane.b32.xlu0 %v2615, 110
      %v2663 = vpop.permute.xlu0 %2662
      %v2664 = vrot.slane %v2633, 4
      %v2665 = vrot.slane %v2635, 4
      %v2666 = vrot.slane %v2637, 4
      %v2667 = vrot.slane %v2639, 4
      %v2668 = vrot.slane %v2641, 4
      %v2669 = vrot.slane %v2643, 4
      %v2670 = vrot.slane %v2645, 4
      %v2671 = vrot.slane %v2647, 4
      %v2672 = vrot.slane %v2649, 4
      %v2673 = vrot.slane %v2651, 4
      %v2674 = vrot.slane %v2653, 4
      %v2675 = vrot.slane %v2655, 4
      %v2676 = vrot.slane %v2657, 4
      %v2677 = vrot.slane %v2659, 4
      %v2678 = vrot.slane %v2661, 4
      %v2679 = vrot.slane %v2663, 4
      %v2680 = vsel %vm2259, %v2664, %v2665
      %vm2681 = vcmask 900096
      %v2682 = vsel %vm2681, %v2633, %v2680
      %v2683 = vsel %vm2259, %v2665, %v2666
      %v2684 = vsel %vm2681, %v2635, %v2683
      %v2685 = vsel %vm2259, %v2666, %v2667
      %v2686 = vsel %vm2681, %v2637, %v2685
      %v2687 = vsel %vm2259, %v2668, %v2669
      %v2688 = vsel %vm2681, %v2641, %v2687
      %v2689 = vsel %vm2259, %v2669, %v2670
      %v2690 = vsel %vm2681, %v2643, %v2689
      %v2691 = vsel %vm2259, %v2670, %v2671
      %v2692 = vsel %vm2681, %v2645, %v2691
      %v2693 = vsel %vm2259, %v2672, %v2673
      %v2694 = vsel %vm2681, %v2649, %v2693
      %v2695 = vsel %vm2259, %v2673, %v2674
      %v2696 = vsel %vm2681, %v2651, %v2695
      %v2697 = vsel %vm2259, %v2674, %v2675
      %v2698 = vsel %vm2681, %v2653, %v2697
      %v2699 = vsel %vm2259, %v2676, %v2677
      %v2700 = vsel %vm2681, %v2657, %v2699
      %v2701 = vsel %vm2259, %v2677, %v2678
      %v2702 = vsel %vm2681, %v2659, %v2701
      %v2703 = vsel %vm2259, %v2678, %v2679
      %v2704 = vsel %vm2681, %v2661, %v2703
      %2717 = vst [vmem:[#allocation4 + $0x120] sm:$0xff] %v2682
      %2718 = vst [vmem:[#allocation4 + $0x128] sm:$0xff] %v2684
      %2719 = vst [vmem:[#allocation4 + $0x130] sm:$0xff] %v2686
      %2720 = vst [vmem:[#allocation4 + $0x138] sm:$0xff] %v2688
      %2721 = vst [vmem:[#allocation4 + $0x140] sm:$0xff] %v2690
      %2722 = vst [vmem:[#allocation4 + $0x148] sm:$0xff] %v2692
      %2723 = vst [vmem:[#allocation4 + $0x150] sm:$0xff] %v2694
      %2724 = vst [vmem:[#allocation4 + $0x158] sm:$0xff] %v2696
      %2725 = vst [vmem:[#allocation4 + $0x160] sm:$0xff] %v2698
      %2726 = vst [vmem:[#allocation4 + $0x168] sm:$0xff] %v2700
      %2727 = vst [vmem:[#allocation4 + $0x170] sm:$0xff] %v2702
      %2728 = vst [vmem:[#allocation4 + $0x178] sm:$0xff] %v2704
      %v2729 = vld [vmem:[#allocation3] sm:$0xff]
      %v2730 = vld [vmem:[#allocation3 + $0x8] sm:$0xff]
      %v2731 = vld [vmem:[#allocation3 + $0x10] sm:$0xff]
      %v2732 = vld [vmem:[#allocation3 + $0x18] sm:$0xf]
      %v2733 = vld [vmem:[#allocation3 + $0x1c] sm:$0xff]
      %v2734 = vld [vmem:[#allocation3 + $0x24] sm:$0xff]
      %v2735 = vld [vmem:[#allocation3 + $0x2c] sm:$0xff]
      %v2736 = vld [vmem:[#allocation3 + $0x34] sm:$0xf]
      %v2737 = vld [vmem:[#allocation3 + $0x38] sm:$0xff]
      %v2738 = vld [vmem:[#allocation3 + $0x40] sm:$0xff]
      %v2739 = vld [vmem:[#allocation3 + $0x48] sm:$0xff]
      %v2740 = vld [vmem:[#allocation3 + $0x50] sm:$0xf]
      %v2741 = vld [vmem:[#allocation3 + $0x54] sm:$0xff]
      %v2742 = vld [vmem:[#allocation3 + $0x5c] sm:$0xff]
      %v2743 = vld [vmem:[#allocation3 + $0x64] sm:$0xff]
      %v2744 = vld [vmem:[#allocation3 + $0x6c] sm:$0xf]
      %2761 = vrot.lane.b32.xlu0 %v2729, 109
      %v2762 = vpop.permute.xlu0 %2761
      %2763 = vrot.lane.b32.xlu0 %v2730, 109
      %v2764 = vpop.permute.xlu0 %2763
      %2765 = vrot.lane.b32.xlu0 %v2731, 109
      %v2766 = vpop.permute.xlu0 %2765
      %2767 = vrot.lane.b32.xlu0 %v2732, 109
      %v2768 = vpop.permute.xlu0 %2767
      %2769 = vrot.lane.b32.xlu0 %v2733, 109
      %v2770 = vpop.permute.xlu0 %2769
      %2771 = vrot.lane.b32.xlu0 %v2734, 109
      %v2772 = vpop.permute.xlu0 %2771
      %2773 = vrot.lane.b32.xlu0 %v2735, 109
      %v2774 = vpop.permute.xlu0 %2773
      %2775 = vrot.lane.b32.xlu0 %v2736, 109
      %v2776 = vpop.permute.xlu0 %2775
      %2777 = vrot.lane.b32.xlu0 %v2737, 109
      %v2778 = vpop.permute.xlu0 %2777
      %2779 = vrot.lane.b32.xlu0 %v2738, 109
      %v2780 = vpop.permute.xlu0 %2779
      %2781 = vrot.lane.b32.xlu0 %v2739, 109
      %v2782 = vpop.permute.xlu0 %2781
      %2783 = vrot.lane.b32.xlu0 %v2740, 109
      %v2784 = vpop.permute.xlu0 %2783
      %2785 = vrot.lane.b32.xlu0 %v2741, 109
      %v2786 = vpop.permute.xlu0 %2785
      %2787 = vrot.lane.b32.xlu0 %v2742, 109
      %v2788 = vpop.permute.xlu0 %2787
      %2789 = vrot.lane.b32.xlu0 %v2743, 109
      %v2790 = vpop.permute.xlu0 %2789
      %2791 = vrot.lane.b32.xlu0 %v2744, 109
      %v2792 = vpop.permute.xlu0 %2791
      %v2793 = vrot.slane %v2762, 4
      %v2794 = vrot.slane %v2764, 4
      %v2795 = vrot.slane %v2766, 4
      %v2796 = vrot.slane %v2768, 4
      %v2797 = vrot.slane %v2770, 4
      %v2798 = vrot.slane %v2772, 4
      %v2799 = vrot.slane %v2774, 4
      %v2800 = vrot.slane %v2776, 4
      %v2801 = vrot.slane %v2778, 4
      %v2802 = vrot.slane %v2780, 4
      %v2803 = vrot.slane %v2782, 4
      %v2804 = vrot.slane %v2784, 4
      %v2805 = vrot.slane %v2786, 4
      %v2806 = vrot.slane %v2788, 4
      %v2807 = vrot.slane %v2790, 4
      %v2808 = vrot.slane %v2792, 4
      %v2809 = vsel %vm2259, %v2793, %v2794
      %vm2810 = vcmask 891904
      %v2811 = vsel %vm2810, %v2762, %v2809
      %v2812 = vsel %vm2259, %v2794, %v2795
      %v2813 = vsel %vm2810, %v2764, %v2812
      %v2814 = vsel %vm2259, %v2795, %v2796
      %v2815 = vsel %vm2810, %v2766, %v2814
      %v2816 = vsel %vm2259, %v2797, %v2798
      %v2817 = vsel %vm2810, %v2770, %v2816
      %v2818 = vsel %vm2259, %v2798, %v2799
      %v2819 = vsel %vm2810, %v2772, %v2818
      %v2820 = vsel %vm2259, %v2799, %v2800
      %v2821 = vsel %vm2810, %v2774, %v2820
      %v2822 = vsel %vm2259, %v2801, %v2802
      %v2823 = vsel %vm2810, %v2778, %v2822
      %v2824 = vsel %vm2259, %v2802, %v2803
      %v2825 = vsel %vm2810, %v2780, %v2824
      %v2826 = vsel %vm2259, %v2803, %v2804
      %v2827 = vsel %vm2810, %v2782, %v2826
      %v2828 = vsel %vm2259, %v2805, %v2806
      %v2829 = vsel %vm2810, %v2786, %v2828
      %v2830 = vsel %vm2259, %v2806, %v2807
      %v2831 = vsel %vm2810, %v2788, %v2830
      %v2832 = vsel %vm2259, %v2807, %v2808
      %v2833 = vsel %vm2810, %v2790, %v2832
      %2846 = vst [vmem:[#allocation4 + $0x180] sm:$0xff] %v2811
      %2847 = vst [vmem:[#allocation4 + $0x188] sm:$0xff] %v2813
      %2848 = vst [vmem:[#allocation4 + $0x190] sm:$0xff] %v2815
      %2849 = vst [vmem:[#allocation4 + $0x198] sm:$0xff] %v2817
      %2850 = vst [vmem:[#allocation4 + $0x1a0] sm:$0xff] %v2819
      %2851 = vst [vmem:[#allocation4 + $0x1a8] sm:$0xff] %v2821
      %2852 = vst [vmem:[#allocation4 + $0x1b0] sm:$0xff] %v2823
      %2853 = vst [vmem:[#allocation4 + $0x1b8] sm:$0xff] %v2825
      %2854 = vst [vmem:[#allocation4 + $0x1c0] sm:$0xff] %v2827
      %2855 = vst [vmem:[#allocation4 + $0x1c8] sm:$0xff] %v2829
      %2856 = vst [vmem:[#allocation4 + $0x1d0] sm:$0xff] %v2831
      %2857 = vst [vmem:[#allocation4 + $0x1d8] sm:$0xff] %v2833
      %v2858 = vld [vmem:[#allocation3] sm:$0xff]
      %v2859 = vld [vmem:[#allocation3 + $0x8] sm:$0xff]
      %v2860 = vld [vmem:[#allocation3 + $0x10] sm:$0xff]
      %v2861 = vld [vmem:[#allocation3 + $0x18] sm:$0xf]
      %v2862 = vld [vmem:[#allocation3 + $0x1c] sm:$0xff]
      %v2863 = vld [vmem:[#allocation3 + $0x24] sm:$0xff]
      %v2864 = vld [vmem:[#allocation3 + $0x2c] sm:$0xff]
      %v2865 = vld [vmem:[#allocation3 + $0x34] sm:$0xf]
      %v2866 = vld [vmem:[#allocation3 + $0x38] sm:$0xff]
      %v2867 = vld [vmem:[#allocation3 + $0x40] sm:$0xff]
      %v2868 = vld [vmem:[#allocation3 + $0x48] sm:$0xff]
      %v2869 = vld [vmem:[#allocation3 + $0x50] sm:$0xf]
      %v2870 = vld [vmem:[#allocation3 + $0x54] sm:$0xff]
      %v2871 = vld [vmem:[#allocation3 + $0x5c] sm:$0xff]
      %v2872 = vld [vmem:[#allocation3 + $0x64] sm:$0xff]
      %v2873 = vld [vmem:[#allocation3 + $0x6c] sm:$0xf]
      %2890 = vrot.lane.b32.xlu0 %v2858, 108
      %v2891 = vpop.permute.xlu0 %2890
      %2892 = vrot.lane.b32.xlu0 %v2859, 108
      %v2893 = vpop.permute.xlu0 %2892
      %2894 = vrot.lane.b32.xlu0 %v2860, 108
      %v2895 = vpop.permute.xlu0 %2894
      %2896 = vrot.lane.b32.xlu0 %v2861, 108
      %v2897 = vpop.permute.xlu0 %2896
      %2898 = vrot.lane.b32.xlu0 %v2862, 108
      %v2899 = vpop.permute.xlu0 %2898
      %2900 = vrot.lane.b32.xlu0 %v2863, 108
      %v2901 = vpop.permute.xlu0 %2900
      %2902 = vrot.lane.b32.xlu0 %v2864, 108
      %v2903 = vpop.permute.xlu0 %2902
      %2904 = vrot.lane.b32.xlu0 %v2865, 108
      %v2905 = vpop.permute.xlu0 %2904
      %2906 = vrot.lane.b32.xlu0 %v2866, 108
      %v2907 = vpop.permute.xlu0 %2906
      %2908 = vrot.lane.b32.xlu0 %v2867, 108
      %v2909 = vpop.permute.xlu0 %2908
      %2910 = vrot.lane.b32.xlu0 %v2868, 108
      %v2911 = vpop.permute.xlu0 %2910
      %2912 = vrot.lane.b32.xlu0 %v2869, 108
      %v2913 = vpop.permute.xlu0 %2912
      %2914 = vrot.lane.b32.xlu0 %v2870, 108
      %v2915 = vpop.permute.xlu0 %2914
      %2916 = vrot.lane.b32.xlu0 %v2871, 108
      %v2917 = vpop.permute.xlu0 %2916
      %2918 = vrot.lane.b32.xlu0 %v2872, 108
      %v2919 = vpop.permute.xlu0 %2918
      %2920 = vrot.lane.b32.xlu0 %v2873, 108
      %v2921 = vpop.permute.xlu0 %2920
      %v2922 = vrot.slane %v2891, 4
      %v2923 = vrot.slane %v2893, 4
      %v2924 = vrot.slane %v2895, 4
      %v2925 = vrot.slane %v2897, 4
      %v2926 = vrot.slane %v2899, 4
      %v2927 = vrot.slane %v2901, 4
      %v2928 = vrot.slane %v2903, 4
      %v2929 = vrot.slane %v2905, 4
      %v2930 = vrot.slane %v2907, 4
      %v2931 = vrot.slane %v2909, 4
      %v2932 = vrot.slane %v2911, 4
      %v2933 = vrot.slane %v2913, 4
      %v2934 = vrot.slane %v2915, 4
      %v2935 = vrot.slane %v2917, 4
      %v2936 = vrot.slane %v2919, 4
      %v2937 = vrot.slane %v2921, 4
      %v2938 = vsel %vm2259, %v2922, %v2923
      %vm2939 = vcmask 883712
      %v2940 = vsel %vm2939, %v2891, %v2938
      %v2941 = vsel %vm2259, %v2923, %v2924
      %v2942 = vsel %vm2939, %v2893, %v2941
      %v2943 = vsel %vm2259, %v2924, %v2925
      %v2944 = vsel %vm2939, %v2895, %v2943
      %v2945 = vsel %vm2259, %v2926, %v2927
      %v2946 = vsel %vm2939, %v2899, %v2945
      %v2947 = vsel %vm2259, %v2927, %v2928
      %v2948 = vsel %vm2939, %v2901, %v2947
      %v2949 = vsel %vm2259, %v2928, %v2929
      %v2950 = vsel %vm2939, %v2903, %v2949
      %v2951 = vsel %vm2259, %v2930, %v2931
      %v2952 = vsel %vm2939, %v2907, %v2951
      %v2953 = vsel %vm2259, %v2931, %v2932
      %v2954 = vsel %vm2939, %v2909, %v2953
      %v2955 = vsel %vm2259, %v2932, %v2933
      %v2956 = vsel %vm2939, %v2911, %v2955
      %v2957 = vsel %vm2259, %v2934, %v2935
      %v2958 = vsel %vm2939, %v2915, %v2957
      %v2959 = vsel %vm2259, %v2935, %v2936
      %v2960 = vsel %vm2939, %v2917, %v2959
      %v2961 = vsel %vm2259, %v2936, %v2937
      %v2962 = vsel %vm2939, %v2919, %v2961
      %2975 = vst [vmem:[#allocation4 + $0x1e0] sm:$0xff] %v2940
      %2976 = vst [vmem:[#allocation4 + $0x1e8] sm:$0xff] %v2942
      %2977 = vst [vmem:[#allocation4 + $0x1f0] sm:$0xff] %v2944
      %2978 = vst [vmem:[#allocation4 + $0x1f8] sm:$0xff] %v2946
      %2979 = vst [vmem:[#allocation4 + $0x200] sm:$0xff] %v2948
      %2980 = vst [vmem:[#allocation4 + $0x208] sm:$0xff] %v2950
      %2981 = vst [vmem:[#allocation4 + $0x210] sm:$0xff] %v2952
      %2982 = vst [vmem:[#allocation4 + $0x218] sm:$0xff] %v2954
      %2983 = vst [vmem:[#allocation4 + $0x220] sm:$0xff] %v2956
      %2984 = vst [vmem:[#allocation4 + $0x228] sm:$0xff] %v2958
      %2985 = vst [vmem:[#allocation4 + $0x230] sm:$0xff] %v2960
      %2986 = vst [vmem:[#allocation4 + $0x238] sm:$0xff] %v2962
      %v2987 = vld [vmem:[#allocation3] sm:$0xff]
      %v2988 = vld [vmem:[#allocation3 + $0x8] sm:$0xff]
      %v2989 = vld [vmem:[#allocation3 + $0x10] sm:$0xff]
      %v2990 = vld [vmem:[#allocation3 + $0x18] sm:$0xf]
      %v2991 = vld [vmem:[#allocation3 + $0x1c] sm:$0xff]
      %v2992 = vld [vmem:[#allocation3 + $0x24] sm:$0xff]
      %v2993 = vld [vmem:[#allocation3 + $0x2c] sm:$0xff]
      %v2994 = vld [vmem:[#allocation3 + $0x34] sm:$0xf]
      %v2995 = vld [vmem:[#allocation3 + $0x38] sm:$0xff]
      %v2996 = vld [vmem:[#allocation3 + $0x40] sm:$0xff]
      %v2997 = vld [vmem:[#allocation3 + $0x48] sm:$0xff]
      %v2998 = vld [vmem:[#allocation3 + $0x50] sm:$0xf]
      %v2999 = vld [vmem:[#allocation3 + $0x54] sm:$0xff]
      %v3000 = vld [vmem:[#allocation3 + $0x5c] sm:$0xff]
      %v3001 = vld [vmem:[#allocation3 + $0x64] sm:$0xff]
      %v3002 = vld [vmem:[#allocation3 + $0x6c] sm:$0xf]
      %3019 = vrot.lane.b32.xlu0 %v2987, 92
      %v3020 = vpop.permute.xlu0 %3019
      %3021 = vrot.lane.b32.xlu0 %v2988, 92
      %v3022 = vpop.permute.xlu0 %3021
      %3023 = vrot.lane.b32.xlu0 %v2989, 92
      %v3024 = vpop.permute.xlu0 %3023
      %3025 = vrot.lane.b32.xlu0 %v2990, 92
      %v3026 = vpop.permute.xlu0 %3025
      %3027 = vrot.lane.b32.xlu0 %v2991, 92
      %v3028 = vpop.permute.xlu0 %3027
      %3029 = vrot.lane.b32.xlu0 %v2992, 92
      %v3030 = vpop.permute.xlu0 %3029
      %3031 = vrot.lane.b32.xlu0 %v2993, 92
      %v3032 = vpop.permute.xlu0 %3031
      %3033 = vrot.lane.b32.xlu0 %v2994, 92
      %v3034 = vpop.permute.xlu0 %3033
      %3035 = vrot.lane.b32.xlu0 %v2995, 92
      %v3036 = vpop.permute.xlu0 %3035
      %3037 = vrot.lane.b32.xlu0 %v2996, 92
      %v3038 = vpop.permute.xlu0 %3037
      %3039 = vrot.lane.b32.xlu0 %v2997, 92
      %v3040 = vpop.permute.xlu0 %3039
      %3041 = vrot.lane.b32.xlu0 %v2998, 92
      %v3042 = vpop.permute.xlu0 %3041
      %3043 = vrot.lane.b32.xlu0 %v2999, 92
      %v3044 = vpop.permute.xlu0 %3043
      %3045 = vrot.lane.b32.xlu0 %v3000, 92
      %v3046 = vpop.permute.xlu0 %3045
      %3047 = vrot.lane.b32.xlu0 %v3001, 92
      %v3048 = vpop.permute.xlu0 %3047
      %3049 = vrot.lane.b32.xlu0 %v3002, 92
      %v3050 = vpop.permute.xlu0 %3049
      %v3051 = vrot.slane %v3020, 4
      %v3052 = vrot.slane %v3022, 4
      %v3053 = vrot.slane %v3024, 4
      %v3054 = vrot.slane %v3026, 4
      %v3055 = vrot.slane %v3028, 4
      %v3056 = vrot.slane %v3030, 4
      %v3057 = vrot.slane %v3032, 4
      %v3058 = vrot.slane %v3034, 4
      %v3059 = vrot.slane %v3036, 4
      %v3060 = vrot.slane %v3038, 4
      %v3061 = vrot.slane %v3040, 4
      %v3062 = vrot.slane %v3042, 4
      %v3063 = vrot.slane %v3044, 4
      %v3064 = vrot.slane %v3046, 4
      %v3065 = vrot.slane %v3048, 4
      %v3066 = vrot.slane %v3050, 4
      %v3067 = vsel %vm2259, %v3051, %v3052
      %vm3068 = vcmask 752640
      %v3069 = vsel %vm3068, %v3020, %v3067
      %v3070 = vsel %vm2259, %v3052, %v3053
      %v3071 = vsel %vm3068, %v3022, %v3070
      %v3072 = vsel %vm2259, %v3053, %v3054
      %v3073 = vsel %vm3068, %v3024, %v3072
      %v3074 = vsel %vm2259, %v3055, %v3056
      %v3075 = vsel %vm3068, %v3028, %v3074
      %v3076 = vsel %vm2259, %v3056, %v3057
      %v3077 = vsel %vm3068, %v3030, %v3076
      %v3078 = vsel %vm2259, %v3057, %v3058
      %v3079 = vsel %vm3068, %v3032, %v3078
      %v3080 = vsel %vm2259, %v3059, %v3060
      %v3081 = vsel %vm3068, %v3036, %v3080
      %v3082 = vsel %vm2259, %v3060, %v3061
      %v3083 = vsel %vm3068, %v3038, %v3082
      %v3084 = vsel %vm2259, %v3061, %v3062
      %v3085 = vsel %vm3068, %v3040, %v3084
      %v3086 = vsel %vm2259, %v3063, %v3064
      %v3087 = vsel %vm3068, %v3044, %v3086
      %v3088 = vsel %vm2259, %v3064, %v3065
      %v3089 = vsel %vm3068, %v3046, %v3088
      %v3090 = vsel %vm2259, %v3065, %v3066
      %v3091 = vsel %vm3068, %v3048, %v3090
      %3104 = vst [vmem:[#allocation4 + $0x240] sm:$0xff] %v3069
      %3105 = vst [vmem:[#allocation4 + $0x248] sm:$0xff] %v3071
      %3106 = vst [vmem:[#allocation4 + $0x250] sm:$0xff] %v3073
      %3107 = vst [vmem:[#allocation4 + $0x258] sm:$0xff] %v3075
      %3108 = vst [vmem:[#allocation4 + $0x260] sm:$0xff] %v3077
      %3109 = vst [vmem:[#allocation4 + $0x268] sm:$0xff] %v3079
      %3110 = vst [vmem:[#allocation4 + $0x270] sm:$0xff] %v3081
      %3111 = vst [vmem:[#allocation4 + $0x278] sm:$0xff] %v3083
      %3112 = vst [vmem:[#allocation4 + $0x280] sm:$0xff] %v3085
      %3113 = vst [vmem:[#allocation4 + $0x288] sm:$0xff] %v3087
      %3114 = vst [vmem:[#allocation4 + $0x290] sm:$0xff] %v3089
      %3115 = vst [vmem:[#allocation4 + $0x298] sm:$0xff] %v3091
      %v3116 = vld [vmem:[#allocation3] sm:$0xff]
      %v3117 = vld [vmem:[#allocation3 + $0x8] sm:$0xff]
      %v3118 = vld [vmem:[#allocation3 + $0x10] sm:$0xff]
      %v3119 = vld [vmem:[#allocation3 + $0x18] sm:$0xf]
      %v3120 = vld [vmem:[#allocation3 + $0x1c] sm:$0xff]
      %v3121 = vld [vmem:[#allocation3 + $0x24] sm:$0xff]
      %v3122 = vld [vmem:[#allocation3 + $0x2c] sm:$0xff]
      %v3123 = vld [vmem:[#allocation3 + $0x34] sm:$0xf]
      %v3124 = vld [vmem:[#allocation3 + $0x38] sm:$0xff]
      %v3125 = vld [vmem:[#allocation3 + $0x40] sm:$0xff]
      %v3126 = vld [vmem:[#allocation3 + $0x48] sm:$0xff]
      %v3127 = vld [vmem:[#allocation3 + $0x50] sm:$0xf]
      %v3128 = vld [vmem:[#allocation3 + $0x54] sm:$0xff]
      %v3129 = vld [vmem:[#allocation3 + $0x5c] sm:$0xff]
      %v3130 = vld [vmem:[#allocation3 + $0x64] sm:$0xff]
      %v3131 = vld [vmem:[#allocation3 + $0x6c] sm:$0xf]
      %3148 = vrot.lane.b32.xlu0 %v3116, 91
      %v3149 = vpop.permute.xlu0 %3148
      %3150 = vrot.lane.b32.xlu0 %v3117, 91
      %v3151 = vpop.permute.xlu0 %3150
      %3152 = vrot.lane.b32.xlu0 %v3118, 91
      %v3153 = vpop.permute.xlu0 %3152
      %3154 = vrot.lane.b32.xlu0 %v3119, 91
      %v3155 = vpop.permute.xlu0 %3154
      %3156 = vrot.lane.b32.xlu0 %v3120, 91
      %v3157 = vpop.permute.xlu0 %3156
      %3158 = vrot.lane.b32.xlu0 %v3121, 91
      %v3159 = vpop.permute.xlu0 %3158
      %3160 = vrot.lane.b32.xlu0 %v3122, 91
      %v3161 = vpop.permute.xlu0 %3160
      %3162 = vrot.lane.b32.xlu0 %v3123, 91
      %v3163 = vpop.permute.xlu0 %3162
      %3164 = vrot.lane.b32.xlu0 %v3124, 91
      %v3165 = vpop.permute.xlu0 %3164
      %3166 = vrot.lane.b32.xlu0 %v3125, 91
      %v3167 = vpop.permute.xlu0 %3166
      %3168 = vrot.lane.b32.xlu0 %v3126, 91
      %v3169 = vpop.permute.xlu0 %3168
      %3170 = vrot.lane.b32.xlu0 %v3127, 91
      %v3171 = vpop.permute.xlu0 %3170
      %3172 = vrot.lane.b32.xlu0 %v3128, 91
      %v3173 = vpop.permute.xlu0 %3172
      %3174 = vrot.lane.b32.xlu0 %v3129, 91
      %v3175 = vpop.permute.xlu0 %3174
      %3176 = vrot.lane.b32.xlu0 %v3130, 91
      %v3177 = vpop.permute.xlu0 %3176
      %3178 = vrot.lane.b32.xlu0 %v3131, 91
      %v3179 = vpop.permute.xlu0 %3178
      %v3180 = vrot.slane %v3149, 4
      %v3181 = vrot.slane %v3151, 4
      %v3182 = vrot.slane %v3153, 4
      %v3183 = vrot.slane %v3155, 4
      %v3184 = vrot.slane %v3157, 4
      %v3185 = vrot.slane %v3159, 4
      %v3186 = vrot.slane %v3161, 4
      %v3187 = vrot.slane %v3163, 4
      %v3188 = vrot.slane %v3165, 4
      %v3189 = vrot.slane %v3167, 4
      %v3190 = vrot.slane %v3169, 4
      %v3191 = vrot.slane %v3171, 4
      %v3192 = vrot.slane %v3173, 4
      %v3193 = vrot.slane %v3175, 4
      %v3194 = vrot.slane %v3177, 4
      %v3195 = vrot.slane %v3179, 4
      %v3196 = vsel %vm2259, %v3180, %v3181
      %vm3197 = vcmask 744448
      %v3198 = vsel %vm3197, %v3149, %v3196
      %v3199 = vsel %vm2259, %v3181, %v3182
      %v3200 = vsel %vm3197, %v3151, %v3199
      %v3201 = vsel %vm2259, %v3182, %v3183
      %v3202 = vsel %vm3197, %v3153, %v3201
      %v3203 = vsel %vm2259, %v3184, %v3185
      %v3204 = vsel %vm3197, %v3157, %v3203
      %v3205 = vsel %vm2259, %v3185, %v3186
      %v3206 = vsel %vm3197, %v3159, %v3205
      %v3207 = vsel %vm2259, %v3186, %v3187
      %v3208 = vsel %vm3197, %v3161, %v3207
      %v3209 = vsel %vm2259, %v3188, %v3189
      %v3210 = vsel %vm3197, %v3165, %v3209
      %v3211 = vsel %vm2259, %v3189, %v3190
      %v3212 = vsel %vm3197, %v3167, %v3211
      %v3213 = vsel %vm2259, %v3190, %v3191
      %v3214 = vsel %vm3197, %v3169, %v3213
      %v3215 = vsel %vm2259, %v3192, %v3193
      %v3216 = vsel %vm3197, %v3173, %v3215
      %v3217 = vsel %vm2259, %v3193, %v3194
      %v3218 = vsel %vm3197, %v3175, %v3217
      %v3219 = vsel %vm2259, %v3194, %v3195
      %v3220 = vsel %vm3197, %v3177, %v3219
      %3233 = vst [vmem:[#allocation4 + $0x2a0] sm:$0xff] %v3198
      %3234 = vst [vmem:[#allocation4 + $0x2a8] sm:$0xff] %v3200
      %3235 = vst [vmem:[#allocation4 + $0x2b0] sm:$0xff] %v3202
      %3236 = vst [vmem:[#allocation4 + $0x2b8] sm:$0xff] %v3204
      %3237 = vst [vmem:[#allocation4 + $0x2c0] sm:$0xff] %v3206
      %3238 = vst [vmem:[#allocation4 + $0x2c8] sm:$0xff] %v3208
      %3239 = vst [vmem:[#allocation4 + $0x2d0] sm:$0xff] %v3210
      %3240 = vst [vmem:[#allocation4 + $0x2d8] sm:$0xff] %v3212
      %3241 = vst [vmem:[#allocation4 + $0x2e0] sm:$0xff] %v3214
      %3242 = vst [vmem:[#allocation4 + $0x2e8] sm:$0xff] %v3216
      %3243 = vst [vmem:[#allocation4 + $0x2f0] sm:$0xff] %v3218
      %3244 = vst [vmem:[#allocation4 + $0x2f8] sm:$0xff] %v3220
      %v3245 = vld [vmem:[#allocation3] sm:$0xff]
      %v3246 = vld [vmem:[#allocation3 + $0x8] sm:$0xff]
      %v3247 = vld [vmem:[#allocation3 + $0x10] sm:$0xff]
      %v3248 = vld [vmem:[#allocation3 + $0x18] sm:$0xf]
      %v3249 = vld [vmem:[#allocation3 + $0x1c] sm:$0xff]
      %v3250 = vld [vmem:[#allocation3 + $0x24] sm:$0xff]
      %v3251 = vld [vmem:[#allocation3 + $0x2c] sm:$0xff]
      %v3252 = vld [vmem:[#allocation3 + $0x34] sm:$0xf]
      %v3253 = vld [vmem:[#allocation3 + $0x38] sm:$0xff]
      %v3254 = vld [vmem:[#allocation3 + $0x40] sm:$0xff]
      %v3255 = vld [vmem:[#allocation3 + $0x48] sm:$0xff]
      %v3256 = vld [vmem:[#allocation3 + $0x50] sm:$0xf]
      %v3257 = vld [vmem:[#allocation3 + $0x54] sm:$0xff]
      %v3258 = vld [vmem:[#allocation3 + $0x5c] sm:$0xff]
      %v3259 = vld [vmem:[#allocation3 + $0x64] sm:$0xff]
      %v3260 = vld [vmem:[#allocation3 + $0x6c] sm:$0xf]
      %3277 = vrot.lane.b32.xlu0 %v3245, 90
      %v3278 = vpop.permute.xlu0 %3277
      %3279 = vrot.lane.b32.xlu0 %v3246, 90
      %v3280 = vpop.permute.xlu0 %3279
      %3281 = vrot.lane.b32.xlu0 %v3247, 90
      %v3282 = vpop.permute.xlu0 %3281
      %3283 = vrot.lane.b32.xlu0 %v3248, 90
      %v3284 = vpop.permute.xlu0 %3283
      %3285 = vrot.lane.b32.xlu0 %v3249, 90
      %v3286 = vpop.permute.xlu0 %3285
      %3287 = vrot.lane.b32.xlu0 %v3250, 90
      %v3288 = vpop.permute.xlu0 %3287
      %3289 = vrot.lane.b32.xlu0 %v3251, 90
      %v3290 = vpop.permute.xlu0 %3289
      %3291 = vrot.lane.b32.xlu0 %v3252, 90
      %v3292 = vpop.permute.xlu0 %3291
      %3293 = vrot.lane.b32.xlu0 %v3253, 90
      %v3294 = vpop.permute.xlu0 %3293
      %3295 = vrot.lane.b32.xlu0 %v3254, 90
      %v3296 = vpop.permute.xlu0 %3295
      %3297 = vrot.lane.b32.xlu0 %v3255, 90
      %v3298 = vpop.permute.xlu0 %3297
      %3299 = vrot.lane.b32.xlu0 %v3256, 90
      %v3300 = vpop.permute.xlu0 %3299
      %3301 = vrot.lane.b32.xlu0 %v3257, 90
      %v3302 = vpop.permute.xlu0 %3301
      %3303 = vrot.lane.b32.xlu0 %v3258, 90
      %v3304 = vpop.permute.xlu0 %3303
      %3305 = vrot.lane.b32.xlu0 %v3259, 90
      %v3306 = vpop.permute.xlu0 %3305
      %3307 = vrot.lane.b32.xlu0 %v3260, 90
      %v3308 = vpop.permute.xlu0 %3307
      %v3309 = vrot.slane %v3278, 4
      %v3310 = vrot.slane %v3280, 4
      %v3311 = vrot.slane %v3282, 4
      %v3312 = vrot.slane %v3284, 4
      %v3313 = vrot.slane %v3286, 4
      %v3314 = vrot.slane %v3288, 4
      %v3315 = vrot.slane %v3290, 4
      %v3316 = vrot.slane %v3292, 4
      %v3317 = vrot.slane %v3294, 4
      %v3318 = vrot.slane %v3296, 4
      %v3319 = vrot.slane %v3298, 4
      %v3320 = vrot.slane %v3300, 4
      %v3321 = vrot.slane %v3302, 4
      %v3322 = vrot.slane %v3304, 4
      %v3323 = vrot.slane %v3306, 4
      %v3324 = vrot.slane %v3308, 4
      %v3325 = vsel %vm2259, %v3309, %v3310
      %vm3326 = vcmask 736256
      %v3327 = vsel %vm3326, %v3278, %v3325
      %v3328 = vsel %vm2259, %v3310, %v3311
      %v3329 = vsel %vm3326, %v3280, %v3328
      %v3330 = vsel %vm2259, %v3311, %v3312
      %v3331 = vsel %vm3326, %v3282, %v3330
      %v3332 = vsel %vm2259, %v3313, %v3314
      %v3333 = vsel %vm3326, %v3286, %v3332
      %v3334 = vsel %vm2259, %v3314, %v3315
      %v3335 = vsel %vm3326, %v3288, %v3334
      %v3336 = vsel %vm2259, %v3315, %v3316
      %v3337 = vsel %vm3326, %v3290, %v3336
      %v3338 = vsel %vm2259, %v3317, %v3318
      %v3339 = vsel %vm3326, %v3294, %v3338
      %v3340 = vsel %vm2259, %v3318, %v3319
      %v3341 = vsel %vm3326, %v3296, %v3340
      %v3342 = vsel %vm2259, %v3319, %v3320
      %v3343 = vsel %vm3326, %v3298, %v3342
      %v3344 = vsel %vm2259, %v3321, %v3322
      %v3345 = vsel %vm3326, %v3302, %v3344
      %v3346 = vsel %vm2259, %v3322, %v3323
      %v3347 = vsel %vm3326, %v3304, %v3346
      %v3348 = vsel %vm2259, %v3323, %v3324
      %v3349 = vsel %vm3326, %v3306, %v3348
      %3362 = vst [vmem:[#allocation4 + $0x300] sm:$0xff] %v3327
      %3363 = vst [vmem:[#allocation4 + $0x308] sm:$0xff] %v3329
      %3364 = vst [vmem:[#allocation4 + $0x310] sm:$0xff] %v3331
      %3365 = vst [vmem:[#allocation4 + $0x318] sm:$0xff] %v3333
      %3366 = vst [vmem:[#allocation4 + $0x320] sm:$0xff] %v3335
      %3367 = vst [vmem:[#allocation4 + $0x328] sm:$0xff] %v3337
      %3368 = vst [vmem:[#allocation4 + $0x330] sm:$0xff] %v3339
      %3369 = vst [vmem:[#allocation4 + $0x338] sm:$0xff] %v3341
      %3370 = vst [vmem:[#allocation4 + $0x340] sm:$0xff] %v3343
      %3371 = vst [vmem:[#allocation4 + $0x348] sm:$0xff] %v3345
      %3372 = vst [vmem:[#allocation4 + $0x350] sm:$0xff] %v3347
      %3373 = vst [vmem:[#allocation4 + $0x358] sm:$0xff] %v3349
      %v3374 = vld [vmem:[%s5] sm:$0xff]
      %v3375 = vld [vmem:[%s5 + $0x8] sm:$0xf]
      %v3376 = vld [vmem:[%s5 + $0xc] sm:$0xff]
      %v3377 = vld [vmem:[%s5 + $0x14] sm:$0xf]
      %v3378 = vld [vmem:[%s5 + $0x18] sm:$0xff]
      %v3379 = vld [vmem:[%s5 + $0x20] sm:$0xf]
      %v3380 = vld [vmem:[%s5 + $0x24] sm:$0xff]
      %v3381 = vld [vmem:[%s5 + $0x2c] sm:$0xf]
      %v3382 = vld [vmem:[%s5 + $0x30] sm:$0xff]
      %v3383 = vld [vmem:[%s5 + $0x38] sm:$0xf]
      %v3384 = vld [vmem:[%s5 + $0x3c] sm:$0xff]
      %v3385 = vld [vmem:[%s5 + $0x44] sm:$0xf]
      %v3386 = vld [vmem:[%s5 + $0x48] sm:$0xff]
      %v3387 = vld [vmem:[%s5 + $0x50] sm:$0xf]
      %v3388 = vld [vmem:[%s5 + $0x54] sm:$0xff]
      %v3389 = vld [vmem:[%s5 + $0x5c] sm:$0xf]
      %v3390 = vld [vmem:[#allocation4] sm:$0xff]
      %v3391 = vld [vmem:[#allocation4 + $0x8] sm:$0xff]
      %v3392 = vld [vmem:[#allocation4 + $0x10] sm:$0xff]
      %v3393 = vld [vmem:[#allocation4 + $0x18] sm:$0xff]
      %v3394 = vld [vmem:[#allocation4 + $0x20] sm:$0xff]
      %v3395 = vld [vmem:[#allocation4 + $0x28] sm:$0xff]
      %v3396 = vld [vmem:[#allocation4 + $0x30] sm:$0xff]
      %v3397 = vld [vmem:[#allocation4 + $0x38] sm:$0xff]
      %v3398 = vld [vmem:[#allocation4 + $0x40] sm:$0xff]
      %v3399 = vld [vmem:[#allocation4 + $0x48] sm:$0xff]
      %v3400 = vld [vmem:[#allocation4 + $0x50] sm:$0xff]
      %v3401 = vld [vmem:[#allocation4 + $0x58] sm:$0xff]
      %v3402 = vld [vmem:[#allocation4 + $0x60] sm:$0xff]
      %v3403 = vld [vmem:[#allocation4 + $0x68] sm:$0xff]
      %v3404 = vld [vmem:[#allocation4 + $0x70] sm:$0xff]
      %v3405 = vld [vmem:[#allocation4 + $0x78] sm:$0xff]
      %v3406 = vld [vmem:[#allocation4 + $0x80] sm:$0xff]
      %v3407 = vld [vmem:[#allocation4 + $0x88] sm:$0xff]
      %v3408 = vld [vmem:[#allocation4 + $0x90] sm:$0xff]
      %v3409 = vld [vmem:[#allocation4 + $0x98] sm:$0xff]
      %v3410 = vld [vmem:[#allocation4 + $0xa0] sm:$0xff]
      %v3411 = vld [vmem:[#allocation4 + $0xa8] sm:$0xff]
      %v3412 = vld [vmem:[#allocation4 + $0xb0] sm:$0xff]
      %v3413 = vld [vmem:[#allocation4 + $0xb8] sm:$0xff]
      %v3414 = vld [vmem:[#allocation4 + $0xc0] sm:$0xff]
      %v3415 = vld [vmem:[#allocation4 + $0xc8] sm:$0xff]
      %v3416 = vld [vmem:[#allocation4 + $0xd0] sm:$0xff]
      %v3417 = vld [vmem:[#allocation4 + $0xd8] sm:$0xff]
      %v3418 = vld [vmem:[#allocation4 + $0xe0] sm:$0xff]
      %v3419 = vld [vmem:[#allocation4 + $0xe8] sm:$0xff]
      %v3420 = vld [vmem:[#allocation4 + $0xf0] sm:$0xff]
      %v3421 = vld [vmem:[#allocation4 + $0xf8] sm:$0xff]
      %v3422 = vld [vmem:[#allocation4 + $0x100] sm:$0xff]
      %v3423 = vld [vmem:[#allocation4 + $0x108] sm:$0xff]
      %v3424 = vld [vmem:[#allocation4 + $0x110] sm:$0xff]
      %v3425 = vld [vmem:[#allocation4 + $0x118] sm:$0xff]
      %v3426 = vld [vmem:[#allocation4 + $0x120] sm:$0xff]
      %v3427 = vld [vmem:[#allocation4 + $0x128] sm:$0xff]
      %v3428 = vld [vmem:[#allocation4 + $0x130] sm:$0xff]
      %v3429 = vld [vmem:[#allocation4 + $0x138] sm:$0xff]
      %v3430 = vld [vmem:[#allocation4 + $0x140] sm:$0xff]
      %v3431 = vld [vmem:[#allocation4 + $0x148] sm:$0xff]
      %v3432 = vld [vmem:[#allocation4 + $0x150] sm:$0xff]
      %v3433 = vld [vmem:[#allocation4 + $0x158] sm:$0xff]
      %v3434 = vld [vmem:[#allocation4 + $0x160] sm:$0xff]
      %v3435 = vld [vmem:[#allocation4 + $0x168] sm:$0xff]
      %v3436 = vld [vmem:[#allocation4 + $0x170] sm:$0xff]
      %v3437 = vld [vmem:[#allocation4 + $0x178] sm:$0xff]
      %v3438 = vld [vmem:[#allocation4 + $0x180] sm:$0xff]
      %v3439 = vld [vmem:[#allocation4 + $0x188] sm:$0xff]
      %v3440 = vld [vmem:[#allocation4 + $0x190] sm:$0xff]
      %v3441 = vld [vmem:[#allocation4 + $0x198] sm:$0xff]
      %v3442 = vld [vmem:[#allocation4 + $0x1a0] sm:$0xff]
      %v3443 = vld [vmem:[#allocation4 + $0x1a8] sm:$0xff]
      %v3444 = vld [vmem:[#allocation4 + $0x1b0] sm:$0xff]
      %v3445 = vld [vmem:[#allocation4 + $0x1b8] sm:$0xff]
      %v3446 = vld [vmem:[#allocation4 + $0x1c0] sm:$0xff]
      %v3447 = vld [vmem:[#allocation4 + $0x1c8] sm:$0xff]
      %v3448 = vld [vmem:[#allocation4 + $0x1d0] sm:$0xff]
      %v3449 = vld [vmem:[#allocation4 + $0x1d8] sm:$0xff]
      %v3450 = vld [vmem:[#allocation4 + $0x1e0] sm:$0xff]
      %v3451 = vld [vmem:[#allocation4 + $0x1e8] sm:$0xff]
      %v3452 = vld [vmem:[#allocation4 + $0x1f0] sm:$0xff]
      %v3453 = vld [vmem:[#allocation4 + $0x1f8] sm:$0xff]
      %v3454 = vld [vmem:[#allocation4 + $0x200] sm:$0xff]
      %v3455 = vld [vmem:[#allocation4 + $0x208] sm:$0xff]
      %v3456 = vld [vmem:[#allocation4 + $0x210] sm:$0xff]
      %v3457 = vld [vmem:[#allocation4 + $0x218] sm:$0xff]
      %v3458 = vld [vmem:[#allocation4 + $0x220] sm:$0xff]
      %v3459 = vld [vmem:[#allocation4 + $0x228] sm:$0xff]
      %v3460 = vld [vmem:[#allocation4 + $0x230] sm:$0xff]
      %v3461 = vld [vmem:[#allocation4 + $0x238] sm:$0xff]
      %v3462 = vld [vmem:[#allocation4 + $0x240] sm:$0xff]
      %v3463 = vld [vmem:[#allocation4 + $0x248] sm:$0xff]
      %v3464 = vld [vmem:[#allocation4 + $0x250] sm:$0xff]
      %v3465 = vld [vmem:[#allocation4 + $0x258] sm:$0xff]
      %v3466 = vld [vmem:[#allocation4 + $0x260] sm:$0xff]
      %v3467 = vld [vmem:[#allocation4 + $0x268] sm:$0xff]
      %v3468 = vld [vmem:[#allocation4 + $0x270] sm:$0xff]
      %v3469 = vld [vmem:[#allocation4 + $0x278] sm:$0xff]
      %v3470 = vld [vmem:[#allocation4 + $0x280] sm:$0xff]
      %v3471 = vld [vmem:[#allocation4 + $0x288] sm:$0xff]
      %v3472 = vld [vmem:[#allocation4 + $0x290] sm:$0xff]
      %v3473 = vld [vmem:[#allocation4 + $0x298] sm:$0xff]
      %v3474 = vld [vmem:[#allocation4 + $0x2a0] sm:$0xff]
      %v3475 = vld [vmem:[#allocation4 + $0x2a8] sm:$0xff]
      %v3476 = vld [vmem:[#allocation4 + $0x2b0] sm:$0xff]
      %v3477 = vld [vmem:[#allocation4 + $0x2b8] sm:$0xff]
      %v3478 = vld [vmem:[#allocation4 + $0x2c0] sm:$0xff]
      %v3479 = vld [vmem:[#allocation4 + $0x2c8] sm:$0xff]
      %v3480 = vld [vmem:[#allocation4 + $0x2d0] sm:$0xff]
      %v3481 = vld [vmem:[#allocation4 + $0x2d8] sm:$0xff]
      %v3482 = vld [vmem:[#allocation4 + $0x2e0] sm:$0xff]
      %v3483 = vld [vmem:[#allocation4 + $0x2e8] sm:$0xff]
      %v3484 = vld [vmem:[#allocation4 + $0x2f0] sm:$0xff]
      %v3485 = vld [vmem:[#allocation4 + $0x2f8] sm:$0xff]
      %v3486 = vld [vmem:[#allocation4 + $0x300] sm:$0xff]
      %v3487 = vld [vmem:[#allocation4 + $0x308] sm:$0xff]
      %v3488 = vld [vmem:[#allocation4 + $0x310] sm:$0xff]
      %v3489 = vld [vmem:[#allocation4 + $0x318] sm:$0xff]
      %v3490 = vld [vmem:[#allocation4 + $0x320] sm:$0xff]
      %v3491 = vld [vmem:[#allocation4 + $0x328] sm:$0xff]
      %v3492 = vld [vmem:[#allocation4 + $0x330] sm:$0xff]
      %v3493 = vld [vmem:[#allocation4 + $0x338] sm:$0xff]
      %v3494 = vld [vmem:[#allocation4 + $0x340] sm:$0xff]
      %v3495 = vld [vmem:[#allocation4 + $0x348] sm:$0xff]
      %v3496 = vld [vmem:[#allocation4 + $0x350] sm:$0xff]
      %v3497 = vld [vmem:[#allocation4 + $0x358] sm:$0xff]
      %v3498 = vld [vmem:[%s6] sm:$0xff]
      %v3499 = vld [vmem:[%s6 + $0x8] sm:$0xff]
      %v3500 = vld [vmem:[%s6 + $0x10] sm:$0xff]
      %v3501 = vld [vmem:[%s6 + $0x18] sm:$0xff]
      %v3502 = vld [vmem:[%s6 + $0x20] sm:$0xff]
      %v3503 = vld [vmem:[%s6 + $0x28] sm:$0xff]
      %v3504 = vld [vmem:[%s6 + $0x30] sm:$0xff]
      %v3505 = vld [vmem:[%s6 + $0x38] sm:$0xff]
      %3507 = vset.pattern.permute.xlu0 0
      %3508 = vperm.xlu0 %3507, %v3498
      %v3509 = vpop.permute.xlu0 %3508
      %3512 = vset.pattern.permute.xlu0 0
      %3513 = vperm.xlu0 %3512, %v3499
      %v3514 = vpop.permute.xlu0 %3513
      %3517 = vset.pattern.permute.xlu0 0
      %3518 = vperm.xlu0 %3517, %v3500
      %v3519 = vpop.permute.xlu0 %3518
      %3522 = vset.pattern.permute.xlu0 0
      %3523 = vperm.xlu0 %3522, %v3501
      %v3524 = vpop.permute.xlu0 %3523
      %3527 = vset.pattern.permute.xlu0 0
      %3528 = vperm.xlu0 %3527, %v3502
      %v3529 = vpop.permute.xlu0 %3528
      %3532 = vset.pattern.permute.xlu0 0
      %3533 = vperm.xlu0 %3532, %v3503
      %v3534 = vpop.permute.xlu0 %3533
      %3537 = vset.pattern.permute.xlu0 0
      %3538 = vperm.xlu0 %3537, %v3504
      %v3539 = vpop.permute.xlu0 %3538
      %3542 = vset.pattern.permute.xlu0 0
      %3543 = vperm.xlu0 %3542, %v3505
      %v3544 = vpop.permute.xlu0 %3543
      %v3562 = vunpack.c.l.b16 %v3374
      %v3563 = vunpack.c.h.b16 %v3374
      %v3564 = vunpack.c.l.b16 %v3375
      %v3565 = vunpack.c.l.b16 %v3376
      %v3566 = vunpack.c.h.b16 %v3376
      %v3567 = vunpack.c.l.b16 %v3377
      %v3568 = vunpack.c.l.b16 %v3378
      %v3569 = vunpack.c.h.b16 %v3378
      %v3570 = vunpack.c.l.b16 %v3379
      %v3571 = vunpack.c.l.b16 %v3380
      %v3572 = vunpack.c.h.b16 %v3380
      %v3573 = vunpack.c.l.b16 %v3381
      %v3574 = vunpack.c.l.b16 %v3382
      %v3575 = vunpack.c.h.b16 %v3382
      %v3576 = vunpack.c.l.b16 %v3383
      %v3577 = vunpack.c.l.b16 %v3384
      %v3578 = vunpack.c.h.b16 %v3384
      %v3579 = vunpack.c.l.b16 %v3385
      %v3580 = vunpack.c.l.b16 %v3386
      %v3581 = vunpack.c.h.b16 %v3386
      %v3582 = vunpack.c.l.b16 %v3387
      %v3583 = vunpack.c.l.b16 %v3388
      %v3584 = vunpack.c.h.b16 %v3388
      %v3585 = vunpack.c.l.b16 %v3389
      %v3586 = vpack.c.b16 %v3565, %v3562
      %v3587 = vpack.c.b16 %v3566, %v3563
      %v3588 = vpack.c.b16 %v3567, %v3564
      %v3589 = vpack.c.b16 %v3571, %v3568
      %v3590 = vpack.c.b16 %v3572, %v3569
      %v3591 = vpack.c.b16 %v3573, %v3570
      %v3592 = vpack.c.b16 %v3577, %v3574
      %v3593 = vpack.c.b16 %v3578, %v3575
      %v3594 = vpack.c.b16 %v3579, %v3576
      %v3595 = vpack.c.b16 %v3583, %v3580
      %v3596 = vpack.c.b16 %v3584, %v3581
      %v3597 = vpack.c.b16 %v3585, %v3582
      %v3714 = vunpack.c.l.b16 %v3390
      %v3715 = vunpack.c.h.b16 %v3390
      %v3716 = vunpack.c.l.b16 %v3391
      %v3717 = vunpack.c.h.b16 %v3391
      %v3718 = vunpack.c.l.b16 %v3392
      %v3719 = vunpack.c.h.b16 %v3392
      %v3720 = vunpack.c.l.b16 %v3393
      %v3721 = vunpack.c.h.b16 %v3393
      %v3722 = vunpack.c.l.b16 %v3394
      %v3723 = vunpack.c.h.b16 %v3394
      %v3724 = vunpack.c.l.b16 %v3395
      %v3725 = vunpack.c.h.b16 %v3395
      %v3726 = vunpack.c.l.b16 %v3396
      %v3727 = vunpack.c.h.b16 %v3396
      %v3728 = vunpack.c.l.b16 %v3397
      %v3729 = vunpack.c.h.b16 %v3397
      %v3730 = vunpack.c.l.b16 %v3398
      %v3731 = vunpack.c.h.b16 %v3398
      %v3732 = vunpack.c.l.b16 %v3399
      %v3733 = vunpack.c.h.b16 %v3399
      %v3734 = vunpack.c.l.b16 %v3400
      %v3735 = vunpack.c.h.b16 %v3400
      %v3736 = vunpack.c.l.b16 %v3401
      %v3737 = vunpack.c.h.b16 %v3401
      %v3738 = vunpack.c.l.b16 %v3402
      %v3739 = vunpack.c.h.b16 %v3402
      %v3740 = vunpack.c.l.b16 %v3403
      %v3741 = vunpack.c.h.b16 %v3403
      %v3742 = vunpack.c.l.b16 %v3404
      %v3743 = vunpack.c.h.b16 %v3404
      %v3744 = vunpack.c.l.b16 %v3405
      %v3745 = vunpack.c.h.b16 %v3405
      %v3746 = vunpack.c.l.b16 %v3406
      %v3747 = vunpack.c.h.b16 %v3406
      %v3748 = vunpack.c.l.b16 %v3407
      %v3749 = vunpack.c.h.b16 %v3407
      %v3750 = vunpack.c.l.b16 %v3408
      %v3751 = vunpack.c.h.b16 %v3408
      %v3752 = vunpack.c.l.b16 %v3409
      %v3753 = vunpack.c.h.b16 %v3409
      %v3754 = vunpack.c.l.b16 %v3410
      %v3755 = vunpack.c.h.b16 %v3410
      %v3756 = vunpack.c.l.b16 %v3411
      %v3757 = vunpack.c.h.b16 %v3411
      %v3758 = vunpack.c.l.b16 %v3412
      %v3759 = vunpack.c.h.b16 %v3412
      %v3760 = vunpack.c.l.b16 %v3413
      %v3761 = vunpack.c.h.b16 %v3413
      %v3762 = vunpack.c.l.b16 %v3414
      %v3763 = vunpack.c.h.b16 %v3414
      %v3764 = vunpack.c.l.b16 %v3415
      %v3765 = vunpack.c.h.b16 %v3415
      %v3766 = vunpack.c.l.b16 %v3416
      %v3767 = vunpack.c.h.b16 %v3416
      %v3768 = vunpack.c.l.b16 %v3417
      %v3769 = vunpack.c.h.b16 %v3417
      %v3770 = vunpack.c.l.b16 %v3418
      %v3771 = vunpack.c.h.b16 %v3418
      %v3772 = vunpack.c.l.b16 %v3419
      %v3773 = vunpack.c.h.b16 %v3419
      %v3774 = vunpack.c.l.b16 %v3420
      %v3775 = vunpack.c.h.b16 %v3420
      %v3776 = vunpack.c.l.b16 %v3421
      %v3777 = vunpack.c.h.b16 %v3421
      %v3778 = vunpack.c.l.b16 %v3422
      %v3779 = vunpack.c.h.b16 %v3422
      %v3780 = vunpack.c.l.b16 %v3423
      %v3781 = vunpack.c.h.b16 %v3423
      %v3782 = vunpack.c.l.b16 %v3424
      %v3783 = vunpack.c.h.b16 %v3424
      %v3784 = vunpack.c.l.b16 %v3425
      %v3785 = vunpack.c.h.b16 %v3425
      %v3786 = vunpack.c.l.b16 %v3426
      %v3787 = vunpack.c.h.b16 %v3426
      %v3788 = vunpack.c.l.b16 %v3427
      %v3789 = vunpack.c.h.b16 %v3427
      %v3790 = vunpack.c.l.b16 %v3428
      %v3791 = vunpack.c.h.b16 %v3428
      %v3792 = vunpack.c.l.b16 %v3429
      %v3793 = vunpack.c.h.b16 %v3429
      %v3794 = vunpack.c.l.b16 %v3430
      %v3795 = vunpack.c.h.b16 %v3430
      %v3796 = vunpack.c.l.b16 %v3431
      %v3797 = vunpack.c.h.b16 %v3431
      %v3798 = vunpack.c.l.b16 %v3432
      %v3799 = vunpack.c.h.b16 %v3432
      %v3800 = vunpack.c.l.b16 %v3433
      %v3801 = vunpack.c.h.b16 %v3433
      %v3802 = vunpack.c.l.b16 %v3434
      %v3803 = vunpack.c.h.b16 %v3434
      %v3804 = vunpack.c.l.b16 %v3435
      %v3805 = vunpack.c.h.b16 %v3435
      %v3806 = vunpack.c.l.b16 %v3436
      %v3807 = vunpack.c.h.b16 %v3436
      %v3808 = vunpack.c.l.b16 %v3437
      %v3809 = vunpack.c.h.b16 %v3437
      %v3810 = vunpack.c.l.b16 %v3438
      %v3811 = vunpack.c.h.b16 %v3438
      %v3812 = vunpack.c.l.b16 %v3439
      %v3813 = vunpack.c.h.b16 %v3439
      %v3814 = vunpack.c.l.b16 %v3440
      %v3815 = vunpack.c.h.b16 %v3440
      %v3816 = vunpack.c.l.b16 %v3441
      %v3817 = vunpack.c.h.b16 %v3441
      %v3818 = vunpack.c.l.b16 %v3442
      %v3819 = vunpack.c.h.b16 %v3442
      %v3820 = vunpack.c.l.b16 %v3443
      %v3821 = vunpack.c.h.b16 %v3443
      %v3822 = vunpack.c.l.b16 %v3444
      %v3823 = vunpack.c.h.b16 %v3444
      %v3824 = vunpack.c.l.b16 %v3445
      %v3825 = vunpack.c.h.b16 %v3445
      %v3826 = vunpack.c.l.b16 %v3446
      %v3827 = vunpack.c.h.b16 %v3446
      %v3828 = vunpack.c.l.b16 %v3447
      %v3829 = vunpack.c.h.b16 %v3447
      %v3830 = vunpack.c.l.b16 %v3448
      %v3831 = vunpack.c.h.b16 %v3448
      %v3832 = vunpack.c.l.b16 %v3449
      %v3833 = vunpack.c.h.b16 %v3449
      %v3834 = vunpack.c.l.b16 %v3450
      %v3835 = vunpack.c.h.b16 %v3450
      %v3836 = vunpack.c.l.b16 %v3451
      %v3837 = vunpack.c.h.b16 %v3451
      %v3838 = vunpack.c.l.b16 %v3452
      %v3839 = vunpack.c.h.b16 %v3452
      %v3840 = vunpack.c.l.b16 %v3453
      %v3841 = vunpack.c.h.b16 %v3453
      %v3842 = vunpack.c.l.b16 %v3454
      %v3843 = vunpack.c.h.b16 %v3454
      %v3844 = vunpack.c.l.b16 %v3455
      %v3845 = vunpack.c.h.b16 %v3455
      %v3846 = vunpack.c.l.b16 %v3456
      %v3847 = vunpack.c.h.b16 %v3456
      %v3848 = vunpack.c.l.b16 %v3457
      %v3849 = vunpack.c.h.b16 %v3457
      %v3850 = vunpack.c.l.b16 %v3458
      %v3851 = vunpack.c.h.b16 %v3458
      %v3852 = vunpack.c.l.b16 %v3459
      %v3853 = vunpack.c.h.b16 %v3459
      %v3854 = vunpack.c.l.b16 %v3460
      %v3855 = vunpack.c.h.b16 %v3460
      %v3856 = vunpack.c.l.b16 %v3461
      %v3857 = vunpack.c.h.b16 %v3461
      %v3858 = vunpack.c.l.b16 %v3462
      %v3859 = vunpack.c.h.b16 %v3462
      %v3860 = vunpack.c.l.b16 %v3463
      %v3861 = vunpack.c.h.b16 %v3463
      %v3862 = vunpack.c.l.b16 %v3464
      %v3863 = vunpack.c.h.b16 %v3464
      %v3864 = vunpack.c.l.b16 %v3465
      %v3865 = vunpack.c.h.b16 %v3465
      %v3866 = vunpack.c.l.b16 %v3466
      %v3867 = vunpack.c.h.b16 %v3466
      %v3868 = vunpack.c.l.b16 %v3467
      %v3869 = vunpack.c.h.b16 %v3467
      %v3870 = vunpack.c.l.b16 %v3468
      %v3871 = vunpack.c.h.b16 %v3468
      %v3872 = vunpack.c.l.b16 %v3469
      %v3873 = vunpack.c.h.b16 %v3469
      %v3874 = vunpack.c.l.b16 %v3470
      %v3875 = vunpack.c.h.b16 %v3470
      %v3876 = vunpack.c.l.b16 %v3471
      %v3877 = vunpack.c.h.b16 %v3471
      %v3878 = vunpack.c.l.b16 %v3472
      %v3879 = vunpack.c.h.b16 %v3472
      %v3880 = vunpack.c.l.b16 %v3473
      %v3881 = vunpack.c.h.b16 %v3473
      %v3882 = vunpack.c.l.b16 %v3474
      %v3883 = vunpack.c.h.b16 %v3474
      %v3884 = vunpack.c.l.b16 %v3475
      %v3885 = vunpack.c.h.b16 %v3475
      %v3886 = vunpack.c.l.b16 %v3476
      %v3887 = vunpack.c.h.b16 %v3476
      %v3888 = vunpack.c.l.b16 %v3477
      %v3889 = vunpack.c.h.b16 %v3477
      %v3890 = vunpack.c.l.b16 %v3478
      %v3891 = vunpack.c.h.b16 %v3478
      %v3892 = vunpack.c.l.b16 %v3479
      %v3893 = vunpack.c.h.b16 %v3479
      %v3894 = vunpack.c.l.b16 %v3480
      %v3895 = vunpack.c.h.b16 %v3480
      %v3896 = vunpack.c.l.b16 %v3481
      %v3897 = vunpack.c.h.b16 %v3481
      %v3898 = vunpack.c.l.b16 %v3482
      %v3899 = vunpack.c.h.b16 %v3482
      %v3900 = vunpack.c.l.b16 %v3483
      %v3901 = vunpack.c.h.b16 %v3483
      %v3902 = vunpack.c.l.b16 %v3484
      %v3903 = vunpack.c.h.b16 %v3484
      %v3904 = vunpack.c.l.b16 %v3485
      %v3905 = vunpack.c.h.b16 %v3485
      %v3906 = vunpack.c.l.b16 %v3486
      %v3907 = vunpack.c.h.b16 %v3486
      %v3908 = vunpack.c.l.b16 %v3487
      %v3909 = vunpack.c.h.b16 %v3487
      %v3910 = vunpack.c.l.b16 %v3488
      %v3911 = vunpack.c.h.b16 %v3488
      %v3912 = vunpack.c.l.b16 %v3489
      %v3913 = vunpack.c.h.b16 %v3489
      %v3914 = vunpack.c.l.b16 %v3490
      %v3915 = vunpack.c.h.b16 %v3490
      %v3916 = vunpack.c.l.b16 %v3491
      %v3917 = vunpack.c.h.b16 %v3491
      %v3918 = vunpack.c.l.b16 %v3492
      %v3919 = vunpack.c.h.b16 %v3492
      %v3920 = vunpack.c.l.b16 %v3493
      %v3921 = vunpack.c.h.b16 %v3493
      %v3922 = vunpack.c.l.b16 %v3494
      %v3923 = vunpack.c.h.b16 %v3494
      %v3924 = vunpack.c.l.b16 %v3495
      %v3925 = vunpack.c.h.b16 %v3495
      %v3926 = vunpack.c.l.b16 %v3496
      %v3927 = vunpack.c.h.b16 %v3496
      %v3928 = vunpack.c.l.b16 %v3497
      %v3929 = vunpack.c.h.b16 %v3497
      %v3930 = vpack.c.b16 %v3720, %v3714
      %v3931 = vpack.c.b16 %v3721, %v3715
      %v3932 = vpack.c.b16 %v3722, %v3716
      %v3933 = vpack.c.b16 %v3723, %v3717
      %v3934 = vpack.c.b16 %v3724, %v3718
      %v3935 = vpack.c.b16 %v3725, %v3719
      %v3936 = vpack.c.b16 %v3732, %v3726
      %v3937 = vpack.c.b16 %v3733, %v3727
      %v3938 = vpack.c.b16 %v3734, %v3728
      %v3939 = vpack.c.b16 %v3735, %v3729
      %v3940 = vpack.c.b16 %v3736, %v3730
      %v3941 = vpack.c.b16 %v3737, %v3731
      %v3942 = vpack.c.b16 %v3744, %v3738
      %v3943 = vpack.c.b16 %v3745, %v3739
      %v3944 = vpack.c.b16 %v3746, %v3740
      %v3945 = vpack.c.b16 %v3747, %v3741
      %v3946 = vpack.c.b16 %v3748, %v3742
      %v3947 = vpack.c.b16 %v3749, %v3743
      %v3948 = vpack.c.b16 %v3756, %v3750
      %v3949 = vpack.c.b16 %v3757, %v3751
      %v3950 = vpack.c.b16 %v3758, %v3752
      %v3951 = vpack.c.b16 %v3759, %v3753
      %v3952 = vpack.c.b16 %v3760, %v3754
      %v3953 = vpack.c.b16 %v3761, %v3755
      %v3954 = vpack.c.b16 %v3768, %v3762
      %v3955 = vpack.c.b16 %v3769, %v3763
      %v3956 = vpack.c.b16 %v3770, %v3764
      %v3957 = vpack.c.b16 %v3771, %v3765
      %v3958 = vpack.c.b16 %v3772, %v3766
      %v3959 = vpack.c.b16 %v3773, %v3767
      %v3960 = vpack.c.b16 %v3780, %v3774
      %v3961 = vpack.c.b16 %v3781, %v3775
      %v3962 = vpack.c.b16 %v3782, %v3776
      %v3963 = vpack.c.b16 %v3783, %v3777
      %v3964 = vpack.c.b16 %v3784, %v3778
      %v3965 = vpack.c.b16 %v3785, %v3779
      %v3966 = vpack.c.b16 %v3792, %v3786
      %v3967 = vpack.c.b16 %v3793, %v3787
      %v3968 = vpack.c.b16 %v3794, %v3788
      %v3969 = vpack.c.b16 %v3795, %v3789
      %v3970 = vpack.c.b16 %v3796, %v3790
      %v3971 = vpack.c.b16 %v3797, %v3791
      %v3972 = vpack.c.b16 %v3804, %v3798
      %v3973 = vpack.c.b16 %v3805, %v3799
      %v3974 = vpack.c.b16 %v3806, %v3800
      %v3975 = vpack.c.b16 %v3807, %v3801
      %v3976 = vpack.c.b16 %v3808, %v3802
      %v3977 = vpack.c.b16 %v3809, %v3803
      %v3978 = vpack.c.b16 %v3816, %v3810
      %v3979 = vpack.c.b16 %v3817, %v3811
      %v3980 = vpack.c.b16 %v3818, %v3812
      %v3981 = vpack.c.b16 %v3819, %v3813
      %v3982 = vpack.c.b16 %v3820, %v3814
      %v3983 = vpack.c.b16 %v3821, %v3815
      %v3984 = vpack.c.b16 %v3828, %v3822
      %v3985 = vpack.c.b16 %v3829, %v3823
      %v3986 = vpack.c.b16 %v3830, %v3824
      %v3987 = vpack.c.b16 %v3831, %v3825
      %v3988 = vpack.c.b16 %v3832, %v3826
      %v3989 = vpack.c.b16 %v3833, %v3827
      %v3990 = vpack.c.b16 %v3840, %v3834
      %v3991 = vpack.c.b16 %v3841, %v3835
      %v3992 = vpack.c.b16 %v3842, %v3836
      %v3993 = vpack.c.b16 %v3843, %v3837
      %v3994 = vpack.c.b16 %v3844, %v3838
      %v3995 = vpack.c.b16 %v3845, %v3839
      %v3996 = vpack.c.b16 %v3852, %v3846
      %v3997 = vpack.c.b16 %v3853, %v3847
      %v3998 = vpack.c.b16 %v3854, %v3848
      %v3999 = vpack.c.b16 %v3855, %v3849
      %v4000 = vpack.c.b16 %v3856, %v3850
      %v4001 = vpack.c.b16 %v3857, %v3851
      %v4002 = vpack.c.b16 %v3864, %v3858
      %v4003 = vpack.c.b16 %v3865, %v3859
      %v4004 = vpack.c.b16 %v3866, %v3860
      %v4005 = vpack.c.b16 %v3867, %v3861
      %v4006 = vpack.c.b16 %v3868, %v3862
      %v4007 = vpack.c.b16 %v3869, %v3863
      %v4008 = vpack.c.b16 %v3876, %v3870
      %v4009 = vpack.c.b16 %v3877, %v3871
      %v4010 = vpack.c.b16 %v3878, %v3872
      %v4011 = vpack.c.b16 %v3879, %v3873
      %v4012 = vpack.c.b16 %v3880, %v3874
      %v4013 = vpack.c.b16 %v3881, %v3875
      %v4014 = vpack.c.b16 %v3888, %v3882
      %v4015 = vpack.c.b16 %v3889, %v3883
      %v4016 = vpack.c.b16 %v3890, %v3884
      %v4017 = vpack.c.b16 %v3891, %v3885
      %v4018 = vpack.c.b16 %v3892, %v3886
      %v4019 = vpack.c.b16 %v3893, %v3887
      %v4020 = vpack.c.b16 %v3900, %v3894
      %v4021 = vpack.c.b16 %v3901, %v3895
      %v4022 = vpack.c.b16 %v3902, %v3896
      %v4023 = vpack.c.b16 %v3903, %v3897
      %v4024 = vpack.c.b16 %v3904, %v3898
      %v4025 = vpack.c.b16 %v3905, %v3899
      %v4026 = vpack.c.b16 %v3912, %v3906
      %v4027 = vpack.c.b16 %v3913, %v3907
      %v4028 = vpack.c.b16 %v3914, %v3908
      %v4029 = vpack.c.b16 %v3915, %v3909
      %v4030 = vpack.c.b16 %v3916, %v3910
      %v4031 = vpack.c.b16 %v3917, %v3911
      %v4032 = vpack.c.b16 %v3924, %v3918
      %v4033 = vpack.c.b16 %v3925, %v3919
      %v4034 = vpack.c.b16 %v3926, %v3920
      %v4035 = vpack.c.b16 %v3927, %v3921
      %v4036 = vpack.c.b16 %v3928, %v3922
      %v4037 = vpack.c.b16 %v3929, %v3923
      %vm4146 = vcmask 261120
      %v4148 = vsel %vm4146, %v3588, 0
      %v4151 = vsel %vm4146, %v3591, 0
      %v4154 = vsel %vm4146, %v3594, 0
      %v4157 = vsel %vm4146, %v3597, 0
      %4159 = vmatpush.bf16.msra.mxu0 %v3972
      %4160 = vmatpush.bf16.msra.mxu0 %v3966
      %4161 = vmatpush.bf16.msra.mxu0 %v3960
      %4162 = vmatpush.bf16.msra.mxu0 %v3954
      %4163 = vmatpush.bf16.msra.mxu0 %v3948
      %4164 = vmatpush.bf16.msra.mxu0 %v3942
      %4165 = vmatpush.bf16.msra.mxu0 %v3936
      %4166 = vmatpush.bf16.msra.mxu0 %v3930
      %4167 = vmatmul.bf16.gmra.mxu0 %v3586
      %v4168 = vpop.f32.mrf.mxu0
      %v4169 = vadd.f32 %v3509, %v4168
      %v4170 = vpop.f32.mrf.mxu0
      %v4171 = vadd.f32 %v3514, %v4170
      %4172 = vmatmul.bf16.gmra.mxu0 %v3589
      %v4173 = vpop.f32.mrf.mxu0
      %v4174 = vadd.f32 %v3519, %v4173
      %v4175 = vpop.f32.mrf.mxu0
      %v4176 = vadd.f32 %v3524, %v4175
      %4177 = vmatmul.bf16.gmra.mxu0 %v3592
      %v4178 = vpop.f32.mrf.mxu0
      %v4179 = vadd.f32 %v3529, %v4178
      %v4180 = vpop.f32.mrf.mxu0
      %v4181 = vadd.f32 %v3534, %v4180
      %4182 = vmatmul.bf16.gmra.mxu0 %v3595
      %v4183 = vpop.f32.mrf.mxu0
      %v4184 = vadd.f32 %v3539, %v4183
      %v4185 = vpop.f32.mrf.mxu0
      %v4186 = vadd.f32 %v3544, %v4185
      %4187 = vdwg.mxu0
      %4188 = vmatpush.bf16.msra.mxu0 %v4020
      %4189 = vmatpush.bf16.msra.mxu0 %v4014
      %4190 = vmatpush.bf16.msra.mxu0 %v4008
      %4191 = vmatpush.bf16.msra.mxu0 %v4002
      %4192 = vmatpush.bf16.msra.mxu0 %v3996
      %4193 = vmatpush.bf16.msra.mxu0 %v3990
      %4194 = vmatpush.bf16.msra.mxu0 %v3984
      %4195 = vmatpush.bf16.msra.mxu0 %v3978
      %4196 = vmatmul.bf16.gmra.mxu0 %v3587
      %v4197 = vpop.f32.mrf.mxu0
      %v4198 = vadd.f32 %v4169, %v4197
      %v4199 = vpop.f32.mrf.mxu0
      %v4200 = vadd.f32 %v4171, %v4199
      %4201 = vmatmul.bf16.gmra.mxu0 %v3590
      %v4202 = vpop.f32.mrf.mxu0
      %v4203 = vadd.f32 %v4174, %v4202
      %v4204 = vpop.f32.mrf.mxu0
      %v4205 = vadd.f32 %v4176, %v4204
      %4206 = vmatmul.bf16.gmra.mxu0 %v3593
      %v4207 = vpop.f32.mrf.mxu0
      %v4208 = vadd.f32 %v4179, %v4207
      %v4209 = vpop.f32.mrf.mxu0
      %v4210 = vadd.f32 %v4181, %v4209
      %4211 = vmatmul.bf16.gmra.mxu0 %v3596
      %v4212 = vpop.f32.mrf.mxu0
      %v4213 = vadd.f32 %v4184, %v4212
      %v4214 = vpop.f32.mrf.mxu0
      %v4215 = vadd.f32 %v4186, %v4214
      %4216 = vdwg.mxu0
      %4217 = vmatpush.bf16.msra.mxu0 0
      %4218 = vmatpush.bf16.msra.mxu0 0
      %4219 = vmatpush.bf16.msra.mxu0 0
      %4220 = vmatpush.bf16.msra.mxu0 0
      %4221 = vmatpush.bf16.msra.mxu0 0
      %4222 = vmatpush.bf16.msra.mxu0 0
      %4223 = vmatpush.bf16.msra.mxu0 %v4032
      %4224 = vmatpush.bf16.msra.mxu0 %v4026
      %4225 = vmatmul.bf16.gmra.mxu0 %v4148
      %v4226 = vpop.f32.mrf.mxu0
      %v4227 = vadd.f32 %v4198, %v4226
      %v4228 = vpop.f32.mrf.mxu0
      %v4229 = vadd.f32 %v4200, %v4228
      %4230 = vmatmul.bf16.gmra.mxu0 %v4151
      %v4231 = vpop.f32.mrf.mxu0
      %v4232 = vadd.f32 %v4203, %v4231
      %v4233 = vpop.f32.mrf.mxu0
      %v4234 = vadd.f32 %v4205, %v4233
      %4235 = vmatmul.bf16.gmra.mxu0 %v4154
      %v4236 = vpop.f32.mrf.mxu0
      %v4237 = vadd.f32 %v4208, %v4236
      %v4238 = vpop.f32.mrf.mxu0
      %v4239 = vadd.f32 %v4210, %v4238
      %4240 = vmatmul.bf16.gmra.mxu0 %v4157
      %v4241 = vpop.f32.mrf.mxu0
      %v4242 = vadd.f32 %v4213, %v4241
      %v4243 = vpop.f32.mrf.mxu0
      %v4244 = vadd.f32 %v4215, %v4243
      %4245 = vdwg.mxu0
      %4246 = vmatpush.bf16.msra.mxu0 %v3973
      %4247 = vmatpush.bf16.msra.mxu0 %v3967
      %4248 = vmatpush.bf16.msra.mxu0 %v3961
      %4249 = vmatpush.bf16.msra.mxu0 %v3955
      %4250 = vmatpush.bf16.msra.mxu0 %v3949
      %4251 = vmatpush.bf16.msra.mxu0 %v3943
      %4252 = vmatpush.bf16.msra.mxu0 %v3937
      %4253 = vmatpush.bf16.msra.mxu0 %v3931
      %4254 = vmatmul.bf16.gmra.mxu0 %v3586
      %v4255 = vpop.f32.mrf.mxu0
      %v4256 = vadd.f32 %v3509, %v4255
      %v4257 = vpop.f32.mrf.mxu0
      %v4258 = vadd.f32 %v3514, %v4257
      %4259 = vmatmul.bf16.gmra.mxu0 %v3589
      %v4260 = vpop.f32.mrf.mxu0
      %v4261 = vadd.f32 %v3519, %v4260
      %v4262 = vpop.f32.mrf.mxu0
      %v4263 = vadd.f32 %v3524, %v4262
      %4264 = vmatmul.bf16.gmra.mxu0 %v3592
      %v4265 = vpop.f32.mrf.mxu0
      %v4266 = vadd.f32 %v3529, %v4265
      %v4267 = vpop.f32.mrf.mxu0
      %v4268 = vadd.f32 %v3534, %v4267
      %4269 = vmatmul.bf16.gmra.mxu0 %v3595
      %v4270 = vpop.f32.mrf.mxu0
      %v4271 = vadd.f32 %v3539, %v4270
      %v4272 = vpop.f32.mrf.mxu0
      %v4273 = vadd.f32 %v3544, %v4272
      %4274 = vdwg.mxu0
      %4275 = vmatpush.bf16.msra.mxu0 %v4021
      %4276 = vmatpush.bf16.msra.mxu0 %v4015
      %4277 = vmatpush.bf16.msra.mxu0 %v4009
      %4278 = vmatpush.bf16.msra.mxu0 %v4003
      %4279 = vmatpush.bf16.msra.mxu0 %v3997
      %4280 = vmatpush.bf16.msra.mxu0 %v3991
      %4281 = vmatpush.bf16.msra.mxu0 %v3985
      %4282 = vmatpush.bf16.msra.mxu0 %v3979
      %4283 = vmatmul.bf16.gmra.mxu0 %v3587
      %v4284 = vpop.f32.mrf.mxu0
      %v4285 = vadd.f32 %v4256, %v4284
      %v4286 = vpop.f32.mrf.mxu0
      %v4287 = vadd.f32 %v4258, %v4286
      %4288 = vmatmul.bf16.gmra.mxu0 %v3590
      %v4289 = vpop.f32.mrf.mxu0
      %v4290 = vadd.f32 %v4261, %v4289
      %v4291 = vpop.f32.mrf.mxu0
      %v4292 = vadd.f32 %v4263, %v4291
      %4293 = vmatmul.bf16.gmra.mxu0 %v3593
      %v4294 = vpop.f32.mrf.mxu0
      %v4295 = vadd.f32 %v4266, %v4294
      %v4296 = vpop.f32.mrf.mxu0
      %v4297 = vadd.f32 %v4268, %v4296
      %4298 = vmatmul.bf16.gmra.mxu0 %v3596
      %v4299 = vpop.f32.mrf.mxu0
      %v4300 = vadd.f32 %v4271, %v4299
      %v4301 = vpop.f32.mrf.mxu0
      %v4302 = vadd.f32 %v4273, %v4301
      %4303 = vdwg.mxu0
      %4304 = vmatpush.bf16.msra.mxu0 0
      %4305 = vmatpush.bf16.msra.mxu0 0
      %4306 = vmatpush.bf16.msra.mxu0 0
      %4307 = vmatpush.bf16.msra.mxu0 0
      %4308 = vmatpush.bf16.msra.mxu0 0
      %4309 = vmatpush.bf16.msra.mxu0 0
      %4310 = vmatpush.bf16.msra.mxu0 %v4033
      %4311 = vmatpush.bf16.msra.mxu0 %v4027
      %4312 = vmatmul.bf16.gmra.mxu0 %v4148
      %v4313 = vpop.f32.mrf.mxu0
      %v4314 = vadd.f32 %v4285, %v4313
      %v4315 = vpop.f32.mrf.mxu0
      %v4316 = vadd.f32 %v4287, %v4315
      %4317 = vmatmul.bf16.gmra.mxu0 %v4151
      %v4318 = vpop.f32.mrf.mxu0
      %v4319 = vadd.f32 %v4290, %v4318
      %v4320 = vpop.f32.mrf.mxu0
      %v4321 = vadd.f32 %v4292, %v4320
      %4322 = vmatmul.bf16.gmra.mxu0 %v4154
      %v4323 = vpop.f32.mrf.mxu0
      %v4324 = vadd.f32 %v4295, %v4323
      %v4325 = vpop.f32.mrf.mxu0
      %v4326 = vadd.f32 %v4297, %v4325
      %4327 = vmatmul.bf16.gmra.mxu0 %v4157
      %v4328 = vpop.f32.mrf.mxu0
      %v4329 = vadd.f32 %v4300, %v4328
      %v4330 = vpop.f32.mrf.mxu0
      %v4331 = vadd.f32 %v4302, %v4330
      %4332 = vdwg.mxu0
      %4333 = vmatpush.bf16.msra.mxu0 %v3974
      %4334 = vmatpush.bf16.msra.mxu0 %v3968
      %4335 = vmatpush.bf16.msra.mxu0 %v3962
      %4336 = vmatpush.bf16.msra.mxu0 %v3956
      %4337 = vmatpush.bf16.msra.mxu0 %v3950
      %4338 = vmatpush.bf16.msra.mxu0 %v3944
      %4339 = vmatpush.bf16.msra.mxu0 %v3938
      %4340 = vmatpush.bf16.msra.mxu0 %v3932
      %4341 = vmatmul.bf16.gmra.mxu0 %v3586
      %v4342 = vpop.f32.mrf.mxu0
      %v4343 = vadd.f32 %v3509, %v4342
      %v4344 = vpop.f32.mrf.mxu0
      %v4345 = vadd.f32 %v3514, %v4344
      %4346 = vmatmul.bf16.gmra.mxu0 %v3589
      %v4347 = vpop.f32.mrf.mxu0
      %v4348 = vadd.f32 %v3519, %v4347
      %v4349 = vpop.f32.mrf.mxu0
      %v4350 = vadd.f32 %v3524, %v4349
      %4351 = vmatmul.bf16.gmra.mxu0 %v3592
      %v4352 = vpop.f32.mrf.mxu0
      %v4353 = vadd.f32 %v3529, %v4352
      %v4354 = vpop.f32.mrf.mxu0
      %v4355 = vadd.f32 %v3534, %v4354
      %4356 = vmatmul.bf16.gmra.mxu0 %v3595
      %v4357 = vpop.f32.mrf.mxu0
      %v4358 = vadd.f32 %v3539, %v4357
      %v4359 = vpop.f32.mrf.mxu0
      %v4360 = vadd.f32 %v3544, %v4359
      %4361 = vdwg.mxu0
      %4362 = vmatpush.bf16.msra.mxu0 %v4022
      %4363 = vmatpush.bf16.msra.mxu0 %v4016
      %4364 = vmatpush.bf16.msra.mxu0 %v4010
      %4365 = vmatpush.bf16.msra.mxu0 %v4004
      %4366 = vmatpush.bf16.msra.mxu0 %v3998
      %4367 = vmatpush.bf16.msra.mxu0 %v3992
      %4368 = vmatpush.bf16.msra.mxu0 %v3986
      %4369 = vmatpush.bf16.msra.mxu0 %v3980
      %4370 = vmatmul.bf16.gmra.mxu0 %v3587
      %v4371 = vpop.f32.mrf.mxu0
      %v4372 = vadd.f32 %v4343, %v4371
      %v4373 = vpop.f32.mrf.mxu0
      %v4374 = vadd.f32 %v4345, %v4373
      %4375 = vmatmul.bf16.gmra.mxu0 %v3590
      %v4376 = vpop.f32.mrf.mxu0
      %v4377 = vadd.f32 %v4348, %v4376
      %v4378 = vpop.f32.mrf.mxu0
      %v4379 = vadd.f32 %v4350, %v4378
      %4380 = vmatmul.bf16.gmra.mxu0 %v3593
      %v4381 = vpop.f32.mrf.mxu0
      %v4382 = vadd.f32 %v4353, %v4381
      %v4383 = vpop.f32.mrf.mxu0
      %v4384 = vadd.f32 %v4355, %v4383
      %4385 = vmatmul.bf16.gmra.mxu0 %v3596
      %v4386 = vpop.f32.mrf.mxu0
      %v4387 = vadd.f32 %v4358, %v4386
      %v4388 = vpop.f32.mrf.mxu0
      %v4389 = vadd.f32 %v4360, %v4388
      %4390 = vdwg.mxu0
      %4391 = vmatpush.bf16.msra.mxu0 0
      %4392 = vmatpush.bf16.msra.mxu0 0
      %4393 = vmatpush.bf16.msra.mxu0 0
      %4394 = vmatpush.bf16.msra.mxu0 0
      %4395 = vmatpush.bf16.msra.mxu0 0
      %4396 = vmatpush.bf16.msra.mxu0 0
      %4397 = vmatpush.bf16.msra.mxu0 %v4034
      %4398 = vmatpush.bf16.msra.mxu0 %v4028
      %4399 = vmatmul.bf16.gmra.mxu0 %v4148
      %v4400 = vpop.f32.mrf.mxu0
      %v4401 = vadd.f32 %v4372, %v4400
      %v4402 = vpop.f32.mrf.mxu0
      %v4403 = vadd.f32 %v4374, %v4402
      %4404 = vmatmul.bf16.gmra.mxu0 %v4151
      %v4405 = vpop.f32.mrf.mxu0
      %v4406 = vadd.f32 %v4377, %v4405
      %v4407 = vpop.f32.mrf.mxu0
      %v4408 = vadd.f32 %v4379, %v4407
      %4409 = vmatmul.bf16.gmra.mxu0 %v4154
      %v4410 = vpop.f32.mrf.mxu0
      %v4411 = vadd.f32 %v4382, %v4410
      %v4412 = vpop.f32.mrf.mxu0
      %v4413 = vadd.f32 %v4384, %v4412
      %4414 = vmatmul.bf16.gmra.mxu0 %v4157
      %v4415 = vpop.f32.mrf.mxu0
      %v4416 = vadd.f32 %v4387, %v4415
      %v4417 = vpop.f32.mrf.mxu0
      %v4418 = vadd.f32 %v4389, %v4417
      %4419 = vdwg.mxu0
      %4420 = vmatpush.bf16.msra.mxu0 %v3975
      %4421 = vmatpush.bf16.msra.mxu0 %v3969
      %4422 = vmatpush.bf16.msra.mxu0 %v3963
      %4423 = vmatpush.bf16.msra.mxu0 %v3957
      %4424 = vmatpush.bf16.msra.mxu0 %v3951
      %4425 = vmatpush.bf16.msra.mxu0 %v3945
      %4426 = vmatpush.bf16.msra.mxu0 %v3939
      %4427 = vmatpush.bf16.msra.mxu0 %v3933
      %4428 = vmatmul.bf16.gmra.mxu0 %v3586
      %v4429 = vpop.f32.mrf.mxu0
      %v4430 = vadd.f32 %v3509, %v4429
      %v4431 = vpop.f32.mrf.mxu0
      %v4432 = vadd.f32 %v3514, %v4431
      %4433 = vmatmul.bf16.gmra.mxu0 %v3589
      %v4434 = vpop.f32.mrf.mxu0
      %v4435 = vadd.f32 %v3519, %v4434
      %v4436 = vpop.f32.mrf.mxu0
      %v4437 = vadd.f32 %v3524, %v4436
      %4438 = vmatmul.bf16.gmra.mxu0 %v3592
      %v4439 = vpop.f32.mrf.mxu0
      %v4440 = vadd.f32 %v3529, %v4439
      %v4441 = vpop.f32.mrf.mxu0
      %v4442 = vadd.f32 %v3534, %v4441
      %4443 = vmatmul.bf16.gmra.mxu0 %v3595
      %v4444 = vpop.f32.mrf.mxu0
      %v4445 = vadd.f32 %v3539, %v4444
      %v4446 = vpop.f32.mrf.mxu0
      %v4447 = vadd.f32 %v3544, %v4446
      %4448 = vdwg.mxu0
      %4449 = vmatpush.bf16.msra.mxu0 %v4023
      %4450 = vmatpush.bf16.msra.mxu0 %v4017
      %4451 = vmatpush.bf16.msra.mxu0 %v4011
      %4452 = vmatpush.bf16.msra.mxu0 %v4005
      %4453 = vmatpush.bf16.msra.mxu0 %v3999
      %4454 = vmatpush.bf16.msra.mxu0 %v3993
      %4455 = vmatpush.bf16.msra.mxu0 %v3987
      %4456 = vmatpush.bf16.msra.mxu0 %v3981
      %4457 = vmatmul.bf16.gmra.mxu0 %v3587
      %v4458 = vpop.f32.mrf.mxu0
      %v4459 = vadd.f32 %v4430, %v4458
      %v4460 = vpop.f32.mrf.mxu0
      %v4461 = vadd.f32 %v4432, %v4460
      %4462 = vmatmul.bf16.gmra.mxu0 %v3590
      %v4463 = vpop.f32.mrf.mxu0
      %v4464 = vadd.f32 %v4435, %v4463
      %v4465 = vpop.f32.mrf.mxu0
      %v4466 = vadd.f32 %v4437, %v4465
      %4467 = vmatmul.bf16.gmra.mxu0 %v3593
      %v4468 = vpop.f32.mrf.mxu0
      %v4469 = vadd.f32 %v4440, %v4468
      %v4470 = vpop.f32.mrf.mxu0
      %v4471 = vadd.f32 %v4442, %v4470
      %4472 = vmatmul.bf16.gmra.mxu0 %v3596
      %v4473 = vpop.f32.mrf.mxu0
      %v4474 = vadd.f32 %v4445, %v4473
      %v4475 = vpop.f32.mrf.mxu0
      %v4476 = vadd.f32 %v4447, %v4475
      %4477 = vdwg.mxu0
      %4478 = vmatpush.bf16.msra.mxu0 0
      %4479 = vmatpush.bf16.msra.mxu0 0
      %4480 = vmatpush.bf16.msra.mxu0 0
      %4481 = vmatpush.bf16.msra.mxu0 0
      %4482 = vmatpush.bf16.msra.mxu0 0
      %4483 = vmatpush.bf16.msra.mxu0 0
      %4484 = vmatpush.bf16.msra.mxu0 %v4035
      %4485 = vmatpush.bf16.msra.mxu0 %v4029
      %4486 = vmatmul.bf16.gmra.mxu0 %v4148
      %v4487 = vpop.f32.mrf.mxu0
      %v4488 = vadd.f32 %v4459, %v4487
      %v4489 = vpop.f32.mrf.mxu0
      %v4490 = vadd.f32 %v4461, %v4489
      %4491 = vmatmul.bf16.gmra.mxu0 %v4151
      %v4492 = vpop.f32.mrf.mxu0
      %v4493 = vadd.f32 %v4464, %v4492
      %v4494 = vpop.f32.mrf.mxu0
      %v4495 = vadd.f32 %v4466, %v4494
      %4496 = vmatmul.bf16.gmra.mxu0 %v4154
      %v4497 = vpop.f32.mrf.mxu0
      %v4498 = vadd.f32 %v4469, %v4497
      %v4499 = vpop.f32.mrf.mxu0
      %v4500 = vadd.f32 %v4471, %v4499
      %4501 = vmatmul.bf16.gmra.mxu0 %v4157
      %v4502 = vpop.f32.mrf.mxu0
      %v4503 = vadd.f32 %v4474, %v4502
      %v4504 = vpop.f32.mrf.mxu0
      %v4505 = vadd.f32 %v4476, %v4504
      %4506 = vdwg.mxu0
      %4507 = vmatpush.bf16.msra.mxu0 %v3976
      %4508 = vmatpush.bf16.msra.mxu0 %v3970
      %4509 = vmatpush.bf16.msra.mxu0 %v3964
      %4510 = vmatpush.bf16.msra.mxu0 %v3958
      %4511 = vmatpush.bf16.msra.mxu0 %v3952
      %4512 = vmatpush.bf16.msra.mxu0 %v3946
      %4513 = vmatpush.bf16.msra.mxu0 %v3940
      %4514 = vmatpush.bf16.msra.mxu0 %v3934
      %4515 = vmatmul.bf16.gmra.mxu0 %v3586
      %v4516 = vpop.f32.mrf.mxu0
      %v4517 = vadd.f32 %v3509, %v4516
      %v4518 = vpop.f32.mrf.mxu0
      %v4519 = vadd.f32 %v3514, %v4518
      %4520 = vmatmul.bf16.gmra.mxu0 %v3589
      %v4521 = vpop.f32.mrf.mxu0
      %v4522 = vadd.f32 %v3519, %v4521
      %v4523 = vpop.f32.mrf.mxu0
      %v4524 = vadd.f32 %v3524, %v4523
      %4525 = vmatmul.bf16.gmra.mxu0 %v3592
      %v4526 = vpop.f32.mrf.mxu0
      %v4527 = vadd.f32 %v3529, %v4526
      %v4528 = vpop.f32.mrf.mxu0
      %v4529 = vadd.f32 %v3534, %v4528
      %4530 = vmatmul.bf16.gmra.mxu0 %v3595
      %v4531 = vpop.f32.mrf.mxu0
      %v4532 = vadd.f32 %v3539, %v4531
      %v4533 = vpop.f32.mrf.mxu0
      %v4534 = vadd.f32 %v3544, %v4533
      %4535 = vdwg.mxu0
      %4536 = vmatpush.bf16.msra.mxu0 %v4024
      %4537 = vmatpush.bf16.msra.mxu0 %v4018
      %4538 = vmatpush.bf16.msra.mxu0 %v4012
      %4539 = vmatpush.bf16.msra.mxu0 %v4006
      %4540 = vmatpush.bf16.msra.mxu0 %v4000
      %4541 = vmatpush.bf16.msra.mxu0 %v3994
      %4542 = vmatpush.bf16.msra.mxu0 %v3988
      %4543 = vmatpush.bf16.msra.mxu0 %v3982
      %4544 = vmatmul.bf16.gmra.mxu0 %v3587
      %v4545 = vpop.f32.mrf.mxu0
      %v4546 = vadd.f32 %v4517, %v4545
      %v4547 = vpop.f32.mrf.mxu0
      %v4548 = vadd.f32 %v4519, %v4547
      %4549 = vmatmul.bf16.gmra.mxu0 %v3590
      %v4550 = vpop.f32.mrf.mxu0
      %v4551 = vadd.f32 %v4522, %v4550
      %v4552 = vpop.f32.mrf.mxu0
      %v4553 = vadd.f32 %v4524, %v4552
      %4554 = vmatmul.bf16.gmra.mxu0 %v3593
      %v4555 = vpop.f32.mrf.mxu0
      %v4556 = vadd.f32 %v4527, %v4555
      %v4557 = vpop.f32.mrf.mxu0
      %v4558 = vadd.f32 %v4529, %v4557
      %4559 = vmatmul.bf16.gmra.mxu0 %v3596
      %v4560 = vpop.f32.mrf.mxu0
      %v4561 = vadd.f32 %v4532, %v4560
      %v4562 = vpop.f32.mrf.mxu0
      %v4563 = vadd.f32 %v4534, %v4562
      %4564 = vdwg.mxu0
      %4565 = vmatpush.bf16.msra.mxu0 0
      %4566 = vmatpush.bf16.msra.mxu0 0
      %4567 = vmatpush.bf16.msra.mxu0 0
      %4568 = vmatpush.bf16.msra.mxu0 0
      %4569 = vmatpush.bf16.msra.mxu0 0
      %4570 = vmatpush.bf16.msra.mxu0 0
      %4571 = vmatpush.bf16.msra.mxu0 %v4036
      %4572 = vmatpush.bf16.msra.mxu0 %v4030
      %4573 = vmatmul.bf16.gmra.mxu0 %v4148
      %v4574 = vpop.f32.mrf.mxu0
      %v4575 = vadd.f32 %v4546, %v4574
      %v4576 = vpop.f32.mrf.mxu0
      %v4577 = vadd.f32 %v4548, %v4576
      %4578 = vmatmul.bf16.gmra.mxu0 %v4151
      %v4579 = vpop.f32.mrf.mxu0
      %v4580 = vadd.f32 %v4551, %v4579
      %v4581 = vpop.f32.mrf.mxu0
      %v4582 = vadd.f32 %v4553, %v4581
      %4583 = vmatmul.bf16.gmra.mxu0 %v4154
      %v4584 = vpop.f32.mrf.mxu0
      %v4585 = vadd.f32 %v4556, %v4584
      %v4586 = vpop.f32.mrf.mxu0
      %v4587 = vadd.f32 %v4558, %v4586
      %4588 = vmatmul.bf16.gmra.mxu0 %v4157
      %v4589 = vpop.f32.mrf.mxu0
      %v4590 = vadd.f32 %v4561, %v4589
      %v4591 = vpop.f32.mrf.mxu0
      %v4592 = vadd.f32 %v4563, %v4591
      %4593 = vdwg.mxu0
      %4594 = vmatpush.bf16.msra.mxu0 %v3977
      %4595 = vmatpush.bf16.msra.mxu0 %v3971
      %4596 = vmatpush.bf16.msra.mxu0 %v3965
      %4597 = vmatpush.bf16.msra.mxu0 %v3959
      %4598 = vmatpush.bf16.msra.mxu0 %v3953
      %4599 = vmatpush.bf16.msra.mxu0 %v3947
      %4600 = vmatpush.bf16.msra.mxu0 %v3941
      %4601 = vmatpush.bf16.msra.mxu0 %v3935
      %4602 = vmatmul.bf16.gmra.mxu0 %v3586
      %v4603 = vpop.f32.mrf.mxu0
      %v4604 = vadd.f32 %v3509, %v4603
      %v4605 = vpop.f32.mrf.mxu0
      %v4606 = vadd.f32 %v3514, %v4605
      %4607 = vmatmul.bf16.gmra.mxu0 %v3589
      %v4608 = vpop.f32.mrf.mxu0
      %v4609 = vadd.f32 %v3519, %v4608
      %v4610 = vpop.f32.mrf.mxu0
      %v4611 = vadd.f32 %v3524, %v4610
      %4612 = vmatmul.bf16.gmra.mxu0 %v3592
      %v4613 = vpop.f32.mrf.mxu0
      %v4614 = vadd.f32 %v3529, %v4613
      %v4615 = vpop.f32.mrf.mxu0
      %v4616 = vadd.f32 %v3534, %v4615
      %4617 = vmatmul.bf16.gmra.mxu0 %v3595
      %v4618 = vpop.f32.mrf.mxu0
      %v4619 = vadd.f32 %v3539, %v4618
      %v4620 = vpop.f32.mrf.mxu0
      %v4621 = vadd.f32 %v3544, %v4620
      %4622 = vdwg.mxu0
      %4623 = vmatpush.bf16.msra.mxu0 %v4025
      %4624 = vmatpush.bf16.msra.mxu0 %v4019
      %4625 = vmatpush.bf16.msra.mxu0 %v4013
      %4626 = vmatpush.bf16.msra.mxu0 %v4007
      %4627 = vmatpush.bf16.msra.mxu0 %v4001
      %4628 = vmatpush.bf16.msra.mxu0 %v3995
      %4629 = vmatpush.bf16.msra.mxu0 %v3989
      %4630 = vmatpush.bf16.msra.mxu0 %v3983
      %4631 = vmatmul.bf16.gmra.mxu0 %v3587
      %v4632 = vpop.f32.mrf.mxu0
      %v4633 = vadd.f32 %v4604, %v4632
      %v4634 = vpop.f32.mrf.mxu0
      %v4635 = vadd.f32 %v4606, %v4634
      %4636 = vmatmul.bf16.gmra.mxu0 %v3590
      %v4637 = vpop.f32.mrf.mxu0
      %v4638 = vadd.f32 %v4609, %v4637
      %v4639 = vpop.f32.mrf.mxu0
      %v4640 = vadd.f32 %v4611, %v4639
      %4641 = vmatmul.bf16.gmra.mxu0 %v3593
      %v4642 = vpop.f32.mrf.mxu0
      %v4643 = vadd.f32 %v4614, %v4642
      %v4644 = vpop.f32.mrf.mxu0
      %v4645 = vadd.f32 %v4616, %v4644
      %4646 = vmatmul.bf16.gmra.mxu0 %v3596
      %v4647 = vpop.f32.mrf.mxu0
      %v4648 = vadd.f32 %v4619, %v4647
      %v4649 = vpop.f32.mrf.mxu0
      %v4650 = vadd.f32 %v4621, %v4649
      %4651 = vdwg.mxu0
      %4652 = vmatpush.bf16.msra.mxu0 0
      %4653 = vmatpush.bf16.msra.mxu0 0
      %4654 = vmatpush.bf16.msra.mxu0 0
      %4655 = vmatpush.bf16.msra.mxu0 0
      %4656 = vmatpush.bf16.msra.mxu0 0
      %4657 = vmatpush.bf16.msra.mxu0 0
      %4658 = vmatpush.bf16.msra.mxu0 %v4037
      %4659 = vmatpush.bf16.msra.mxu0 %v4031
      %4660 = vmatmul.bf16.gmra.mxu0 %v4148
      %v4661 = vpop.f32.mrf.mxu0
      %v4662 = vadd.f32 %v4633, %v4661
      %v4663 = vpop.f32.mrf.mxu0
      %v4664 = vadd.f32 %v4635, %v4663
      %4665 = vmatmul.bf16.gmra.mxu0 %v4151
      %v4666 = vpop.f32.mrf.mxu0
      %v4667 = vadd.f32 %v4638, %v4666
      %v4668 = vpop.f32.mrf.mxu0
      %v4669 = vadd.f32 %v4640, %v4668
      %4670 = vmatmul.bf16.gmra.mxu0 %v4154
      %v4671 = vpop.f32.mrf.mxu0
      %v4672 = vadd.f32 %v4643, %v4671
      %v4673 = vpop.f32.mrf.mxu0
      %v4674 = vadd.f32 %v4645, %v4673
      %4675 = vmatmul.bf16.gmra.mxu0 %v4157
      %v4676 = vpop.f32.mrf.mxu0
      %v4677 = vadd.f32 %v4648, %v4676
      %v4678 = vpop.f32.mrf.mxu0
      %v4679 = vadd.f32 %v4650, %v4678
      %4680 = vdwg.mxu0
      %v4681 = vmax.f32 %v4227, 0.0
      %v4682 = vmax.f32 %v4314, 0.0
      %v4683 = vmax.f32 %v4401, 0.0
      %v4684 = vmax.f32 %v4488, 0.0
      %v4685 = vmax.f32 %v4575, 0.0
      %v4686 = vmax.f32 %v4662, 0.0
      %v4687 = vmax.f32 %v4229, 0.0
      %v4688 = vmax.f32 %v4316, 0.0
      %v4689 = vmax.f32 %v4403, 0.0
      %v4690 = vmax.f32 %v4490, 0.0
      %v4691 = vmax.f32 %v4577, 0.0
      %v4692 = vmax.f32 %v4664, 0.0
      %v4693 = vmax.f32 %v4232, 0.0
      %v4694 = vmax.f32 %v4319, 0.0
      %v4695 = vmax.f32 %v4406, 0.0
      %v4696 = vmax.f32 %v4493, 0.0
      %v4697 = vmax.f32 %v4580, 0.0
      %v4698 = vmax.f32 %v4667, 0.0
      %v4699 = vmax.f32 %v4234, 0.0
      %v4700 = vmax.f32 %v4321, 0.0
      %v4701 = vmax.f32 %v4408, 0.0
      %v4702 = vmax.f32 %v4495, 0.0
      %v4703 = vmax.f32 %v4582, 0.0
      %v4704 = vmax.f32 %v4669, 0.0
      %v4705 = vmax.f32 %v4237, 0.0
      %v4706 = vmax.f32 %v4324, 0.0
      %v4707 = vmax.f32 %v4411, 0.0
      %v4708 = vmax.f32 %v4498, 0.0
      %v4709 = vmax.f32 %v4585, 0.0
      %v4710 = vmax.f32 %v4672, 0.0
      %v4711 = vmax.f32 %v4239, 0.0
      %v4712 = vmax.f32 %v4326, 0.0
      %v4713 = vmax.f32 %v4413, 0.0
      %v4714 = vmax.f32 %v4500, 0.0
      %v4715 = vmax.f32 %v4587, 0.0
      %v4716 = vmax.f32 %v4674, 0.0
      %v4717 = vmax.f32 %v4242, 0.0
      %v4718 = vmax.f32 %v4329, 0.0
      %v4719 = vmax.f32 %v4416, 0.0
      %v4720 = vmax.f32 %v4503, 0.0
      %v4721 = vmax.f32 %v4590, 0.0
      %v4722 = vmax.f32 %v4677, 0.0
      %v4723 = vmax.f32 %v4244, 0.0
      %v4724 = vmax.f32 %v4331, 0.0
      %v4725 = vmax.f32 %v4418, 0.0
      %v4726 = vmax.f32 %v4505, 0.0
      %v4727 = vmax.f32 %v4592, 0.0
      %v4728 = vmax.f32 %v4679, 0.0
      %4729 = vst [vmem:[#allocation5] sm:$0xff] %v4681
      %4730 = vst [vmem:[#allocation5 + $0x8] sm:$0xff] %v4682
      %4731 = vst [vmem:[#allocation5 + $0x10] sm:$0xff] %v4683
      %4732 = vst [vmem:[#allocation5 + $0x18] sm:$0xff] %v4684
      %4733 = vst [vmem:[#allocation5 + $0x20] sm:$0xff] %v4685
      %4734 = vst [vmem:[#allocation5 + $0x28] sm:$0xff] %v4686
      %4735 = vst [vmem:[#allocation5 + $0x38] sm:$0xff] %v4687
      %4736 = vst [vmem:[#allocation5 + $0x40] sm:$0xff] %v4688
      %4737 = vst [vmem:[#allocation5 + $0x48] sm:$0xff] %v4689
      %4738 = vst [vmem:[#allocation5 + $0x50] sm:$0xff] %v4690
      %4739 = vst [vmem:[#allocation5 + $0x58] sm:$0xff] %v4691
      %4740 = vst [vmem:[#allocation5 + $0x60] sm:$0xff] %v4692
      %4741 = vst [vmem:[#allocation5 + $0x70] sm:$0xff] %v4693
      %4742 = vst [vmem:[#allocation5 + $0x78] sm:$0xff] %v4694
      %4743 = vst [vmem:[#allocation5 + $0x80] sm:$0xff] %v4695
      %4744 = vst [vmem:[#allocation5 + $0x88] sm:$0xff] %v4696
      %4745 = vst [vmem:[#allocation5 + $0x90] sm:$0xff] %v4697
      %4746 = vst [vmem:[#allocation5 + $0x98] sm:$0xff] %v4698
      %4747 = vst [vmem:[#allocation5 + $0xa8] sm:$0xff] %v4699
      %4748 = vst [vmem:[#allocation5 + $0xb0] sm:$0xff] %v4700
      %4749 = vst [vmem:[#allocation5 + $0xb8] sm:$0xff] %v4701
      %4750 = vst [vmem:[#allocation5 + $0xc0] sm:$0xff] %v4702
      %4751 = vst [vmem:[#allocation5 + $0xc8] sm:$0xff] %v4703
      %4752 = vst [vmem:[#allocation5 + $0xd0] sm:$0xff] %v4704
      %4753 = vst [vmem:[#allocation5 + $0xe0] sm:$0xff] %v4705
      %4754 = vst [vmem:[#allocation5 + $0xe8] sm:$0xff] %v4706
      %4755 = vst [vmem:[#allocation5 + $0xf0] sm:$0xff] %v4707
      %4756 = vst [vmem:[#allocation5 + $0xf8] sm:$0xff] %v4708
      %4757 = vst [vmem:[#allocation5 + $0x100] sm:$0xff] %v4709
      %4758 = vst [vmem:[#allocation5 + $0x108] sm:$0xff] %v4710
      %4759 = vst [vmem:[#allocation5 + $0x118] sm:$0xff] %v4711
      %4760 = vst [vmem:[#allocation5 + $0x120] sm:$0xff] %v4712
      %4761 = vst [vmem:[#allocation5 + $0x128] sm:$0xff] %v4713
      %4762 = vst [vmem:[#allocation5 + $0x130] sm:$0xff] %v4714
      %4763 = vst [vmem:[#allocation5 + $0x138] sm:$0xff] %v4715
      %4764 = vst [vmem:[#allocation5 + $0x140] sm:$0xff] %v4716
      %4765 = vst [vmem:[#allocation5 + $0x150] sm:$0xff] %v4717
      %4766 = vst [vmem:[#allocation5 + $0x158] sm:$0xff] %v4718
      %4767 = vst [vmem:[#allocation5 + $0x160] sm:$0xff] %v4719
      %4768 = vst [vmem:[#allocation5 + $0x168] sm:$0xff] %v4720
      %4769 = vst [vmem:[#allocation5 + $0x170] sm:$0xff] %v4721
      %4770 = vst [vmem:[#allocation5 + $0x178] sm:$0xff] %v4722
      %4771 = vst [vmem:[#allocation5 + $0x188] sm:$0xff] %v4723
      %4772 = vst [vmem:[#allocation5 + $0x190] sm:$0xff] %v4724
      %4773 = vst [vmem:[#allocation5 + $0x198] sm:$0xff] %v4725
      %4774 = vst [vmem:[#allocation5 + $0x1a0] sm:$0xff] %v4726
      %4775 = vst [vmem:[#allocation5 + $0x1a8] sm:$0xff] %v4727
      %4776 = vst [vmem:[#allocation5 + $0x1b0] sm:$0xff] %v4728
      %4777 = vst [vmem:[#allocation5 + $0x30] sm:$0xff] 0.0
      %4778 = vst [vmem:[#allocation5 + $0x68] sm:$0xff] 0.0
      %4779 = vst [vmem:[#allocation5 + $0xa0] sm:$0xff] 0.0
      %4780 = vst [vmem:[#allocation5 + $0xd8] sm:$0xff] 0.0
      %4781 = vst [vmem:[#allocation5 + $0x110] sm:$0xff] 0.0
      %4782 = vst [vmem:[#allocation5 + $0x148] sm:$0xff] 0.0
      %4783 = vst [vmem:[#allocation5 + $0x180] sm:$0xff] 0.0
      %4784 = vst [vmem:[#allocation5 + $0x1b8] sm:$0xff] 0.0
      %v4785 = vld [vmem:[#allocation5] sm:$0xff]
      %v4786 = vld [vmem:[#allocation5 + $0x8] sm:$0xff]
      %v4787 = vld [vmem:[#allocation5 + $0x10] sm:$0xff]
      %v4788 = vld [vmem:[#allocation5 + $0x18] sm:$0xff]
      %v4789 = vld [vmem:[#allocation5 + $0x20] sm:$0xff]
      %v4790 = vld [vmem:[#allocation5 + $0x28] sm:$0xff]
      %v4791 = vld [vmem:[#allocation5 + $0x38] sm:$0xff]
      %v4792 = vld [vmem:[#allocation5 + $0x40] sm:$0xff]
      %v4793 = vld [vmem:[#allocation5 + $0x48] sm:$0xff]
      %v4794 = vld [vmem:[#allocation5 + $0x50] sm:$0xff]
      %v4795 = vld [vmem:[#allocation5 + $0x58] sm:$0xff]
      %v4796 = vld [vmem:[#allocation5 + $0x60] sm:$0xff]
      %v4797 = vld [vmem:[#allocation5 + $0x70] sm:$0xff]
      %v4798 = vld [vmem:[#allocation5 + $0x78] sm:$0xff]
      %v4799 = vld [vmem:[#allocation5 + $0x80] sm:$0xff]
      %v4800 = vld [vmem:[#allocation5 + $0x88] sm:$0xff]
      %v4801 = vld [vmem:[#allocation5 + $0x90] sm:$0xff]
      %v4802 = vld [vmem:[#allocation5 + $0x98] sm:$0xff]
      %v4803 = vld [vmem:[#allocation5 + $0xa8] sm:$0xff]
      %v4804 = vld [vmem:[#allocation5 + $0xb0] sm:$0xff]
      %v4805 = vld [vmem:[#allocation5 + $0xb8] sm:$0xff]
      %v4806 = vld [vmem:[#allocation5 + $0xc0] sm:$0xff]
      %v4807 = vld [vmem:[#allocation5 + $0xc8] sm:$0xff]
      %v4808 = vld [vmem:[#allocation5 + $0xd0] sm:$0xff]
      %v4809 = vld [vmem:[#allocation5 + $0xe0] sm:$0xff]
      %v4810 = vld [vmem:[#allocation5 + $0xe8] sm:$0xff]
      %v4811 = vld [vmem:[#allocation5 + $0xf0] sm:$0xff]
      %v4812 = vld [vmem:[#allocation5 + $0xf8] sm:$0xff]
      %v4813 = vld [vmem:[#allocation5 + $0x100] sm:$0xff]
      %v4814 = vld [vmem:[#allocation5 + $0x108] sm:$0xff]
      %v4815 = vld [vmem:[#allocation5 + $0x118] sm:$0xff]
      %v4816 = vld [vmem:[#allocation5 + $0x120] sm:$0xff]
      %v4817 = vld [vmem:[#allocation5 + $0x128] sm:$0xff]
      %v4818 = vld [vmem:[#allocation5 + $0x130] sm:$0xff]
      %v4819 = vld [vmem:[#allocation5 + $0x138] sm:$0xff]
      %v4820 = vld [vmem:[#allocation5 + $0x140] sm:$0xff]
      %v4821 = vld [vmem:[#allocation5 + $0x150] sm:$0xff]
      %v4822 = vld [vmem:[#allocation5 + $0x158] sm:$0xff]
      %v4823 = vld [vmem:[#allocation5 + $0x160] sm:$0xff]
      %v4824 = vld [vmem:[#allocation5 + $0x168] sm:$0xff]
      %v4825 = vld [vmem:[#allocation5 + $0x170] sm:$0xff]
      %v4826 = vld [vmem:[#allocation5 + $0x178] sm:$0xff]
      %v4827 = vld [vmem:[#allocation5 + $0x188] sm:$0xff]
      %v4828 = vld [vmem:[#allocation5 + $0x190] sm:$0xff]
      %v4829 = vld [vmem:[#allocation5 + $0x198] sm:$0xff]
      %v4830 = vld [vmem:[#allocation5 + $0x1a0] sm:$0xff]
      %v4831 = vld [vmem:[#allocation5 + $0x1a8] sm:$0xff]
      %v4832 = vld [vmem:[#allocation5 + $0x1b0] sm:$0xff]
      %v4833 = vld [vmem:[#allocation5] sm:$0xff]
      %v4834 = vld [vmem:[#allocation5 + $0x8] sm:$0xff]
      %v4835 = vld [vmem:[#allocation5 + $0x10] sm:$0xff]
      %v4836 = vld [vmem:[#allocation5 + $0x18] sm:$0xff]
      %v4837 = vld [vmem:[#allocation5 + $0x20] sm:$0xff]
      %v4838 = vld [vmem:[#allocation5 + $0x28] sm:$0xff]
      %v4839 = vld [vmem:[#allocation5 + $0x30] sm:$0xff]
      %v4840 = vld [vmem:[#allocation5 + $0x38] sm:$0xff]
      %v4841 = vld [vmem:[#allocation5 + $0x40] sm:$0xff]
      %v4842 = vld [vmem:[#allocation5 + $0x48] sm:$0xff]
      %v4843 = vld [vmem:[#allocation5 + $0x50] sm:$0xff]
      %v4844 = vld [vmem:[#allocation5 + $0x58] sm:$0xff]
      %v4845 = vld [vmem:[#allocation5 + $0x60] sm:$0xff]
      %v4846 = vld [vmem:[#allocation5 + $0x68] sm:$0xff]
      %v4847 = vld [vmem:[#allocation5 + $0x70] sm:$0xff]
      %v4848 = vld [vmem:[#allocation5 + $0x78] sm:$0xff]
      %v4849 = vld [vmem:[#allocation5 + $0x80] sm:$0xff]
      %v4850 = vld [vmem:[#allocation5 + $0x88] sm:$0xff]
      %v4851 = vld [vmem:[#allocation5 + $0x90] sm:$0xff]
      %v4852 = vld [vmem:[#allocation5 + $0x98] sm:$0xff]
      %v4853 = vld [vmem:[#allocation5 + $0xa0] sm:$0xff]
      %v4854 = vld [vmem:[#allocation5 + $0xa8] sm:$0xff]
      %v4855 = vld [vmem:[#allocation5 + $0xb0] sm:$0xff]
      %v4856 = vld [vmem:[#allocation5 + $0xb8] sm:$0xff]
      %v4857 = vld [vmem:[#allocation5 + $0xc0] sm:$0xff]
      %v4858 = vld [vmem:[#allocation5 + $0xc8] sm:$0xff]
      %v4859 = vld [vmem:[#allocation5 + $0xd0] sm:$0xff]
      %v4860 = vld [vmem:[#allocation5 + $0xd8] sm:$0xff]
      %v4861 = vld [vmem:[#allocation5 + $0xe0] sm:$0xff]
      %v4862 = vld [vmem:[#allocation5 + $0xe8] sm:$0xff]
      %v4863 = vld [vmem:[#allocation5 + $0xf0] sm:$0xff]
      %v4864 = vld [vmem:[#allocation5 + $0xf8] sm:$0xff]
      %v4865 = vld [vmem:[#allocation5 + $0x100] sm:$0xff]
      %v4866 = vld [vmem:[#allocation5 + $0x108] sm:$0xff]
      %v4867 = vld [vmem:[#allocation5 + $0x110] sm:$0xff]
      %v4868 = vld [vmem:[#allocation5 + $0x118] sm:$0xff]
      %v4869 = vld [vmem:[#allocation5 + $0x120] sm:$0xff]
      %v4870 = vld [vmem:[#allocation5 + $0x128] sm:$0xff]
      %v4871 = vld [vmem:[#allocation5 + $0x130] sm:$0xff]
      %v4872 = vld [vmem:[#allocation5 + $0x138] sm:$0xff]
      %v4873 = vld [vmem:[#allocation5 + $0x140] sm:$0xff]
      %v4874 = vld [vmem:[#allocation5 + $0x148] sm:$0xff]
      %v4875 = vld [vmem:[#allocation5 + $0x150] sm:$0xff]
      %v4876 = vld [vmem:[#allocation5 + $0x158] sm:$0xff]
      %v4877 = vld [vmem:[#allocation5 + $0x160] sm:$0xff]
      %v4878 = vld [vmem:[#allocation5 + $0x168] sm:$0xff]
      %v4879 = vld [vmem:[#allocation5 + $0x170] sm:$0xff]
      %v4880 = vld [vmem:[#allocation5 + $0x178] sm:$0xff]
      %v4881 = vld [vmem:[#allocation5 + $0x180] sm:$0xff]
      %v4882 = vld [vmem:[#allocation5 + $0x188] sm:$0xff]
      %v4883 = vld [vmem:[#allocation5 + $0x190] sm:$0xff]
      %v4884 = vld [vmem:[#allocation5 + $0x198] sm:$0xff]
      %v4885 = vld [vmem:[#allocation5 + $0x1a0] sm:$0xff]
      %v4886 = vld [vmem:[#allocation5 + $0x1a8] sm:$0xff]
      %v4887 = vld [vmem:[#allocation5 + $0x1b0] sm:$0xff]
      %v4888 = vld [vmem:[#allocation5 + $0x1b8] sm:$0xff]
      %4945 = vrot.lane.b32.xlu0 %v4833, 127
      %v4946 = vpop.permute.xlu0 %4945
      %4947 = vrot.lane.b32.xlu0 %v4834, 127
      %v4948 = vpop.permute.xlu0 %4947
      %4949 = vrot.lane.b32.xlu0 %v4835, 127
      %v4950 = vpop.permute.xlu0 %4949
      %4951 = vrot.lane.b32.xlu0 %v4836, 127
      %v4952 = vpop.permute.xlu0 %4951
      %4953 = vrot.lane.b32.xlu0 %v4837, 127
      %v4954 = vpop.permute.xlu0 %4953
      %4955 = vrot.lane.b32.xlu0 %v4838, 127
      %v4956 = vpop.permute.xlu0 %4955
      %4957 = vrot.lane.b32.xlu0 %v4839, 127
      %v4958 = vpop.permute.xlu0 %4957
      %4959 = vrot.lane.b32.xlu0 %v4840, 127
      %v4960 = vpop.permute.xlu0 %4959
      %4961 = vrot.lane.b32.xlu0 %v4841, 127
      %v4962 = vpop.permute.xlu0 %4961
      %4963 = vrot.lane.b32.xlu0 %v4842, 127
      %v4964 = vpop.permute.xlu0 %4963
      %4965 = vrot.lane.b32.xlu0 %v4843, 127
      %v4966 = vpop.permute.xlu0 %4965
      %4967 = vrot.lane.b32.xlu0 %v4844, 127
      %v4968 = vpop.permute.xlu0 %4967
      %4969 = vrot.lane.b32.xlu0 %v4845, 127
      %v4970 = vpop.permute.xlu0 %4969
      %4971 = vrot.lane.b32.xlu0 %v4846, 127
      %v4972 = vpop.permute.xlu0 %4971
      %4973 = vrot.lane.b32.xlu0 %v4847, 127
      %v4974 = vpop.permute.xlu0 %4973
      %4975 = vrot.lane.b32.xlu0 %v4848, 127
      %v4976 = vpop.permute.xlu0 %4975
      %4977 = vrot.lane.b32.xlu0 %v4849, 127
      %v4978 = vpop.permute.xlu0 %4977
      %4979 = vrot.lane.b32.xlu0 %v4850, 127
      %v4980 = vpop.permute.xlu0 %4979
      %4981 = vrot.lane.b32.xlu0 %v4851, 127
      %v4982 = vpop.permute.xlu0 %4981
      %4983 = vrot.lane.b32.xlu0 %v4852, 127
      %v4984 = vpop.permute.xlu0 %4983
      %4985 = vrot.lane.b32.xlu0 %v4853, 127
      %v4986 = vpop.permute.xlu0 %4985
      %4987 = vrot.lane.b32.xlu0 %v4854, 127
      %v4988 = vpop.permute.xlu0 %4987
      %4989 = vrot.lane.b32.xlu0 %v4855, 127
      %v4990 = vpop.permute.xlu0 %4989
      %4991 = vrot.lane.b32.xlu0 %v4856, 127
      %v4992 = vpop.permute.xlu0 %4991
      %4993 = vrot.lane.b32.xlu0 %v4857, 127
      %v4994 = vpop.permute.xlu0 %4993
      %4995 = vrot.lane.b32.xlu0 %v4858, 127
      %v4996 = vpop.permute.xlu0 %4995
      %4997 = vrot.lane.b32.xlu0 %v4859, 127
      %v4998 = vpop.permute.xlu0 %4997
      %4999 = vrot.lane.b32.xlu0 %v4860, 127
      %v5000 = vpop.permute.xlu0 %4999
      %5001 = vrot.lane.b32.xlu0 %v4861, 127
      %v5002 = vpop.permute.xlu0 %5001
      %5003 = vrot.lane.b32.xlu0 %v4862, 127
      %v5004 = vpop.permute.xlu0 %5003
      %5005 = vrot.lane.b32.xlu0 %v4863, 127
      %v5006 = vpop.permute.xlu0 %5005
      %5007 = vrot.lane.b32.xlu0 %v4864, 127
      %v5008 = vpop.permute.xlu0 %5007
      %5009 = vrot.lane.b32.xlu0 %v4865, 127
      %v5010 = vpop.permute.xlu0 %5009
      %5011 = vrot.lane.b32.xlu0 %v4866, 127
      %v5012 = vpop.permute.xlu0 %5011
      %5013 = vrot.lane.b32.xlu0 %v4867, 127
      %v5014 = vpop.permute.xlu0 %5013
      %5015 = vrot.lane.b32.xlu0 %v4868, 127
      %v5016 = vpop.permute.xlu0 %5015
      %5017 = vrot.lane.b32.xlu0 %v4869, 127
      %v5018 = vpop.permute.xlu0 %5017
      %5019 = vrot.lane.b32.xlu0 %v4870, 127
      %v5020 = vpop.permute.xlu0 %5019
      %5021 = vrot.lane.b32.xlu0 %v4871, 127
      %v5022 = vpop.permute.xlu0 %5021
      %5023 = vrot.lane.b32.xlu0 %v4872, 127
      %v5024 = vpop.permute.xlu0 %5023
      %5025 = vrot.lane.b32.xlu0 %v4873, 127
      %v5026 = vpop.permute.xlu0 %5025
      %5027 = vrot.lane.b32.xlu0 %v4874, 127
      %v5028 = vpop.permute.xlu0 %5027
      %5029 = vrot.lane.b32.xlu0 %v4875, 127
      %v5030 = vpop.permute.xlu0 %5029
      %5031 = vrot.lane.b32.xlu0 %v4876, 127
      %v5032 = vpop.permute.xlu0 %5031
      %5033 = vrot.lane.b32.xlu0 %v4877, 127
      %v5034 = vpop.permute.xlu0 %5033
      %5035 = vrot.lane.b32.xlu0 %v4878, 127
      %v5036 = vpop.permute.xlu0 %5035
      %5037 = vrot.lane.b32.xlu0 %v4879, 127
      %v5038 = vpop.permute.xlu0 %5037
      %5039 = vrot.lane.b32.xlu0 %v4880, 127
      %v5040 = vpop.permute.xlu0 %5039
      %5041 = vrot.lane.b32.xlu0 %v4881, 127
      %v5042 = vpop.permute.xlu0 %5041
      %5043 = vrot.lane.b32.xlu0 %v4882, 127
      %v5044 = vpop.permute.xlu0 %5043
      %5045 = vrot.lane.b32.xlu0 %v4883, 127
      %v5046 = vpop.permute.xlu0 %5045
      %5047 = vrot.lane.b32.xlu0 %v4884, 127
      %v5048 = vpop.permute.xlu0 %5047
      %5049 = vrot.lane.b32.xlu0 %v4885, 127
      %v5050 = vpop.permute.xlu0 %5049
      %5051 = vrot.lane.b32.xlu0 %v4886, 127
      %v5052 = vpop.permute.xlu0 %5051
      %5053 = vrot.lane.b32.xlu0 %v4887, 127
      %v5054 = vpop.permute.xlu0 %5053
      %5055 = vrot.lane.b32.xlu0 %v4888, 127
      %v5056 = vpop.permute.xlu0 %5055
      %v5057 = vsel %vm602, %v4946, %v4948
      %v5058 = vsel %vm602, %v4948, %v4950
      %v5059 = vsel %vm602, %v4950, %v4952
      %v5060 = vsel %vm602, %v4952, %v4954
      %v5061 = vsel %vm602, %v4954, %v4956
      %v5062 = vsel %vm602, %v4956, %v4958
      %v5063 = vsel %vm602, %v4960, %v4962
      %v5064 = vsel %vm602, %v4962, %v4964
      %v5065 = vsel %vm602, %v4964, %v4966
      %v5066 = vsel %vm602, %v4966, %v4968
      %v5067 = vsel %vm602, %v4968, %v4970
      %v5068 = vsel %vm602, %v4970, %v4972
      %v5069 = vsel %vm602, %v4974, %v4976
      %v5070 = vsel %vm602, %v4976, %v4978
      %v5071 = vsel %vm602, %v4978, %v4980
      %v5072 = vsel %vm602, %v4980, %v4982
      %v5073 = vsel %vm602, %v4982, %v4984
      %v5074 = vsel %vm602, %v4984, %v4986
      %v5075 = vsel %vm602, %v4988, %v4990
      %v5076 = vsel %vm602, %v4990, %v4992
      %v5077 = vsel %vm602, %v4992, %v4994
      %v5078 = vsel %vm602, %v4994, %v4996
      %v5079 = vsel %vm602, %v4996, %v4998
      %v5080 = vsel %vm602, %v4998, %v5000
      %v5081 = vsel %vm602, %v5002, %v5004
      %v5082 = vsel %vm602, %v5004, %v5006
      %v5083 = vsel %vm602, %v5006, %v5008
      %v5084 = vsel %vm602, %v5008, %v5010
      %v5085 = vsel %vm602, %v5010, %v5012
      %v5086 = vsel %vm602, %v5012, %v5014
      %v5087 = vsel %vm602, %v5016, %v5018
      %v5088 = vsel %vm602, %v5018, %v5020
      %v5089 = vsel %vm602, %v5020, %v5022
      %v5090 = vsel %vm602, %v5022, %v5024
      %v5091 = vsel %vm602, %v5024, %v5026
      %v5092 = vsel %vm602, %v5026, %v5028
      %v5093 = vsel %vm602, %v5030, %v5032
      %v5094 = vsel %vm602, %v5032, %v5034
      %v5095 = vsel %vm602, %v5034, %v5036
      %v5096 = vsel %vm602, %v5036, %v5038
      %v5097 = vsel %vm602, %v5038, %v5040
      %v5098 = vsel %vm602, %v5040, %v5042
      %v5099 = vsel %vm602, %v5044, %v5046
      %v5100 = vsel %vm602, %v5046, %v5048
      %v5101 = vsel %vm602, %v5048, %v5050
      %v5102 = vsel %vm602, %v5050, %v5052
      %v5103 = vsel %vm602, %v5052, %v5054
      %v5104 = vsel %vm602, %v5054, %v5056
      %v5153 = vmax.f32 %v4785, %v5057
      %v5154 = vmax.f32 %v4786, %v5058
      %v5155 = vmax.f32 %v4787, %v5059
      %v5156 = vmax.f32 %v4788, %v5060
      %v5157 = vmax.f32 %v4789, %v5061
      %v5158 = vmax.f32 %v4790, %v5062
      %v5159 = vmax.f32 %v4791, %v5063
      %v5160 = vmax.f32 %v4792, %v5064
      %v5161 = vmax.f32 %v4793, %v5065
      %v5162 = vmax.f32 %v4794, %v5066
      %v5163 = vmax.f32 %v4795, %v5067
      %v5164 = vmax.f32 %v4796, %v5068
      %v5165 = vmax.f32 %v4797, %v5069
      %v5166 = vmax.f32 %v4798, %v5070
      %v5167 = vmax.f32 %v4799, %v5071
      %v5168 = vmax.f32 %v4800, %v5072
      %v5169 = vmax.f32 %v4801, %v5073
      %v5170 = vmax.f32 %v4802, %v5074
      %v5171 = vmax.f32 %v4803, %v5075
      %v5172 = vmax.f32 %v4804, %v5076
      %v5173 = vmax.f32 %v4805, %v5077
      %v5174 = vmax.f32 %v4806, %v5078
      %v5175 = vmax.f32 %v4807, %v5079
      %v5176 = vmax.f32 %v4808, %v5080
      %v5177 = vmax.f32 %v4809, %v5081
      %v5178 = vmax.f32 %v4810, %v5082
      %v5179 = vmax.f32 %v4811, %v5083
      %v5180 = vmax.f32 %v4812, %v5084
      %v5181 = vmax.f32 %v4813, %v5085
      %v5182 = vmax.f32 %v4814, %v5086
      %v5183 = vmax.f32 %v4815, %v5087
      %v5184 = vmax.f32 %v4816, %v5088
      %v5185 = vmax.f32 %v4817, %v5089
      %v5186 = vmax.f32 %v4818, %v5090
      %v5187 = vmax.f32 %v4819, %v5091
      %v5188 = vmax.f32 %v4820, %v5092
      %v5189 = vmax.f32 %v4821, %v5093
      %v5190 = vmax.f32 %v4822, %v5094
      %v5191 = vmax.f32 %v4823, %v5095
      %v5192 = vmax.f32 %v4824, %v5096
      %v5193 = vmax.f32 %v4825, %v5097
      %v5194 = vmax.f32 %v4826, %v5098
      %v5195 = vmax.f32 %v4827, %v5099
      %v5196 = vmax.f32 %v4828, %v5100
      %v5197 = vmax.f32 %v4829, %v5101
      %v5198 = vmax.f32 %v4830, %v5102
      %v5199 = vmax.f32 %v4831, %v5103
      %v5200 = vmax.f32 %v4832, %v5104
      %v5209 = vmax.f32 %v4833, %v5057
      %v5210 = vmax.f32 %v4834, %v5058
      %v5211 = vmax.f32 %v4835, %v5059
      %v5212 = vmax.f32 %v4836, %v5060
      %v5213 = vmax.f32 %v4837, %v5061
      %v5214 = vmax.f32 %v4838, %v5062
      %v5215 = vmax.f32 %v4839, %v4958
      %v5216 = vmax.f32 %v4840, %v5063
      %v5217 = vmax.f32 %v4841, %v5064
      %v5218 = vmax.f32 %v4842, %v5065
      %v5219 = vmax.f32 %v4843, %v5066
      %v5220 = vmax.f32 %v4844, %v5067
      %v5221 = vmax.f32 %v4845, %v5068
      %v5222 = vmax.f32 %v4846, %v4972
      %v5223 = vmax.f32 %v4847, %v5069
      %v5224 = vmax.f32 %v4848, %v5070
      %v5225 = vmax.f32 %v4849, %v5071
      %v5226 = vmax.f32 %v4850, %v5072
      %v5227 = vmax.f32 %v4851, %v5073
      %v5228 = vmax.f32 %v4852, %v5074
      %v5229 = vmax.f32 %v4853, %v4986
      %v5230 = vmax.f32 %v4854, %v5075
      %v5231 = vmax.f32 %v4855, %v5076
      %v5232 = vmax.f32 %v4856, %v5077
      %v5233 = vmax.f32 %v4857, %v5078
      %v5234 = vmax.f32 %v4858, %v5079
      %v5235 = vmax.f32 %v4859, %v5080
      %v5236 = vmax.f32 %v4860, %v5000
      %v5237 = vmax.f32 %v4861, %v5081
      %v5238 = vmax.f32 %v4862, %v5082
      %v5239 = vmax.f32 %v4863, %v5083
      %v5240 = vmax.f32 %v4864, %v5084
      %v5241 = vmax.f32 %v4865, %v5085
      %v5242 = vmax.f32 %v4866, %v5086
      %v5243 = vmax.f32 %v4867, %v5014
      %v5244 = vmax.f32 %v4868, %v5087
      %v5245 = vmax.f32 %v4869, %v5088
      %v5246 = vmax.f32 %v4870, %v5089
      %v5247 = vmax.f32 %v4871, %v5090
      %v5248 = vmax.f32 %v4872, %v5091
      %v5249 = vmax.f32 %v4873, %v5092
      %v5250 = vmax.f32 %v4874, %v5028
      %v5251 = vmax.f32 %v4875, %v5093
      %v5252 = vmax.f32 %v4876, %v5094
      %v5253 = vmax.f32 %v4877, %v5095
      %v5254 = vmax.f32 %v4878, %v5096
      %v5255 = vmax.f32 %v4879, %v5097
      %v5256 = vmax.f32 %v4880, %v5098
      %v5257 = vmax.f32 %v4881, %v5042
      %v5258 = vmax.f32 %v4882, %v5099
      %v5259 = vmax.f32 %v4883, %v5100
      %v5260 = vmax.f32 %v4884, %v5101
      %v5261 = vmax.f32 %v4885, %v5102
      %v5262 = vmax.f32 %v4886, %v5103
      %v5263 = vmax.f32 %v4887, %v5104
      %v5264 = vmax.f32 %v4888, %v5056
      %5321 = vrot.lane.b32.xlu0 %v5209, 110
      %v5322 = vpop.permute.xlu0 %5321
      %5323 = vrot.lane.b32.xlu0 %v5210, 110
      %v5324 = vpop.permute.xlu0 %5323
      %5325 = vrot.lane.b32.xlu0 %v5211, 110
      %v5326 = vpop.permute.xlu0 %5325
      %5327 = vrot.lane.b32.xlu0 %v5212, 110
      %v5328 = vpop.permute.xlu0 %5327
      %5329 = vrot.lane.b32.xlu0 %v5213, 110
      %v5330 = vpop.permute.xlu0 %5329
      %5331 = vrot.lane.b32.xlu0 %v5214, 110
      %v5332 = vpop.permute.xlu0 %5331
      %5333 = vrot.lane.b32.xlu0 %v5215, 110
      %v5334 = vpop.permute.xlu0 %5333
      %5335 = vrot.lane.b32.xlu0 %v5216, 110
      %v5336 = vpop.permute.xlu0 %5335
      %5337 = vrot.lane.b32.xlu0 %v5217, 110
      %v5338 = vpop.permute.xlu0 %5337
      %5339 = vrot.lane.b32.xlu0 %v5218, 110
      %v5340 = vpop.permute.xlu0 %5339
      %5341 = vrot.lane.b32.xlu0 %v5219, 110
      %v5342 = vpop.permute.xlu0 %5341
      %5343 = vrot.lane.b32.xlu0 %v5220, 110
      %v5344 = vpop.permute.xlu0 %5343
      %5345 = vrot.lane.b32.xlu0 %v5221, 110
      %v5346 = vpop.permute.xlu0 %5345
      %5347 = vrot.lane.b32.xlu0 %v5222, 110
      %v5348 = vpop.permute.xlu0 %5347
      %5349 = vrot.lane.b32.xlu0 %v5223, 110
      %v5350 = vpop.permute.xlu0 %5349
      %5351 = vrot.lane.b32.xlu0 %v5224, 110
      %v5352 = vpop.permute.xlu0 %5351
      %5353 = vrot.lane.b32.xlu0 %v5225, 110
      %v5354 = vpop.permute.xlu0 %5353
      %5355 = vrot.lane.b32.xlu0 %v5226, 110
      %v5356 = vpop.permute.xlu0 %5355
      %5357 = vrot.lane.b32.xlu0 %v5227, 110
      %v5358 = vpop.permute.xlu0 %5357
      %5359 = vrot.lane.b32.xlu0 %v5228, 110
      %v5360 = vpop.permute.xlu0 %5359
      %5361 = vrot.lane.b32.xlu0 %v5229, 110
      %v5362 = vpop.permute.xlu0 %5361
      %5363 = vrot.lane.b32.xlu0 %v5230, 110
      %v5364 = vpop.permute.xlu0 %5363
      %5365 = vrot.lane.b32.xlu0 %v5231, 110
      %v5366 = vpop.permute.xlu0 %5365
      %5367 = vrot.lane.b32.xlu0 %v5232, 110
      %v5368 = vpop.permute.xlu0 %5367
      %5369 = vrot.lane.b32.xlu0 %v5233, 110
      %v5370 = vpop.permute.xlu0 %5369
      %5371 = vrot.lane.b32.xlu0 %v5234, 110
      %v5372 = vpop.permute.xlu0 %5371
      %5373 = vrot.lane.b32.xlu0 %v5235, 110
      %v5374 = vpop.permute.xlu0 %5373
      %5375 = vrot.lane.b32.xlu0 %v5236, 110
      %v5376 = vpop.permute.xlu0 %5375
      %5377 = vrot.lane.b32.xlu0 %v5237, 110
      %v5378 = vpop.permute.xlu0 %5377
      %5379 = vrot.lane.b32.xlu0 %v5238, 110
      %v5380 = vpop.permute.xlu0 %5379
      %5381 = vrot.lane.b32.xlu0 %v5239, 110
      %v5382 = vpop.permute.xlu0 %5381
      %5383 = vrot.lane.b32.xlu0 %v5240, 110
      %v5384 = vpop.permute.xlu0 %5383
      %5385 = vrot.lane.b32.xlu0 %v5241, 110
      %v5386 = vpop.permute.xlu0 %5385
      %5387 = vrot.lane.b32.xlu0 %v5242, 110
      %v5388 = vpop.permute.xlu0 %5387
      %5389 = vrot.lane.b32.xlu0 %v5243, 110
      %v5390 = vpop.permute.xlu0 %5389
      %5391 = vrot.lane.b32.xlu0 %v5244, 110
      %v5392 = vpop.permute.xlu0 %5391
      %5393 = vrot.lane.b32.xlu0 %v5245, 110
      %v5394 = vpop.permute.xlu0 %5393
      %5395 = vrot.lane.b32.xlu0 %v5246, 110
      %v5396 = vpop.permute.xlu0 %5395
      %5397 = vrot.lane.b32.xlu0 %v5247, 110
      %v5398 = vpop.permute.xlu0 %5397
      %5399 = vrot.lane.b32.xlu0 %v5248, 110
      %v5400 = vpop.permute.xlu0 %5399
      %5401 = vrot.lane.b32.xlu0 %v5249, 110
      %v5402 = vpop.permute.xlu0 %5401
      %5403 = vrot.lane.b32.xlu0 %v5250, 110
      %v5404 = vpop.permute.xlu0 %5403
      %5405 = vrot.lane.b32.xlu0 %v5251, 110
      %v5406 = vpop.permute.xlu0 %5405
      %5407 = vrot.lane.b32.xlu0 %v5252, 110
      %v5408 = vpop.permute.xlu0 %5407
      %5409 = vrot.lane.b32.xlu0 %v5253, 110
      %v5410 = vpop.permute.xlu0 %5409
      %5411 = vrot.lane.b32.xlu0 %v5254, 110
      %v5412 = vpop.permute.xlu0 %5411
      %5413 = vrot.lane.b32.xlu0 %v5255, 110
      %v5414 = vpop.permute.xlu0 %5413
      %5415 = vrot.lane.b32.xlu0 %v5256, 110
      %v5416 = vpop.permute.xlu0 %5415
      %5417 = vrot.lane.b32.xlu0 %v5257, 110
      %v5418 = vpop.permute.xlu0 %5417
      %5419 = vrot.lane.b32.xlu0 %v5258, 110
      %v5420 = vpop.permute.xlu0 %5419
      %5421 = vrot.lane.b32.xlu0 %v5259, 110
      %v5422 = vpop.permute.xlu0 %5421
      %5423 = vrot.lane.b32.xlu0 %v5260, 110
      %v5424 = vpop.permute.xlu0 %5423
      %5425 = vrot.lane.b32.xlu0 %v5261, 110
      %v5426 = vpop.permute.xlu0 %5425
      %5427 = vrot.lane.b32.xlu0 %v5262, 110
      %v5428 = vpop.permute.xlu0 %5427
      %5429 = vrot.lane.b32.xlu0 %v5263, 110
      %v5430 = vpop.permute.xlu0 %5429
      %5431 = vrot.lane.b32.xlu0 %v5264, 110
      %v5432 = vpop.permute.xlu0 %5431
      %v5433 = vsel %vm1004, %v5322, %v5324
      %v5434 = vsel %vm1004, %v5324, %v5326
      %v5435 = vsel %vm1004, %v5326, %v5328
      %v5436 = vsel %vm1004, %v5328, %v5330
      %v5437 = vsel %vm1004, %v5330, %v5332
      %v5438 = vsel %vm1004, %v5332, %v5334
      %v5439 = vsel %vm1004, %v5336, %v5338
      %v5440 = vsel %vm1004, %v5338, %v5340
      %v5441 = vsel %vm1004, %v5340, %v5342
      %v5442 = vsel %vm1004, %v5342, %v5344
      %v5443 = vsel %vm1004, %v5344, %v5346
      %v5444 = vsel %vm1004, %v5346, %v5348
      %v5445 = vsel %vm1004, %v5350, %v5352
      %v5446 = vsel %vm1004, %v5352, %v5354
      %v5447 = vsel %vm1004, %v5354, %v5356
      %v5448 = vsel %vm1004, %v5356, %v5358
      %v5449 = vsel %vm1004, %v5358, %v5360
      %v5450 = vsel %vm1004, %v5360, %v5362
      %v5451 = vsel %vm1004, %v5364, %v5366
      %v5452 = vsel %vm1004, %v5366, %v5368
      %v5453 = vsel %vm1004, %v5368, %v5370
      %v5454 = vsel %vm1004, %v5370, %v5372
      %v5455 = vsel %vm1004, %v5372, %v5374
      %v5456 = vsel %vm1004, %v5374, %v5376
      %v5457 = vsel %vm1004, %v5378, %v5380
      %v5458 = vsel %vm1004, %v5380, %v5382
      %v5459 = vsel %vm1004, %v5382, %v5384
      %v5460 = vsel %vm1004, %v5384, %v5386
      %v5461 = vsel %vm1004, %v5386, %v5388
      %v5462 = vsel %vm1004, %v5388, %v5390
      %v5463 = vsel %vm1004, %v5392, %v5394
      %v5464 = vsel %vm1004, %v5394, %v5396
      %v5465 = vsel %vm1004, %v5396, %v5398
      %v5466 = vsel %vm1004, %v5398, %v5400
      %v5467 = vsel %vm1004, %v5400, %v5402
      %v5468 = vsel %vm1004, %v5402, %v5404
      %v5469 = vsel %vm1004, %v5406, %v5408
      %v5470 = vsel %vm1004, %v5408, %v5410
      %v5471 = vsel %vm1004, %v5410, %v5412
      %v5472 = vsel %vm1004, %v5412, %v5414
      %v5473 = vsel %vm1004, %v5414, %v5416
      %v5474 = vsel %vm1004, %v5416, %v5418
      %v5475 = vsel %vm1004, %v5420, %v5422
      %v5476 = vsel %vm1004, %v5422, %v5424
      %v5477 = vsel %vm1004, %v5424, %v5426
      %v5478 = vsel %vm1004, %v5426, %v5428
      %v5479 = vsel %vm1004, %v5428, %v5430
      %v5480 = vsel %vm1004, %v5430, %v5432
      %v5529 = vmax.f32 %v5153, %v5433
      %v5530 = vmax.f32 %v5154, %v5434
      %v5531 = vmax.f32 %v5155, %v5435
      %v5532 = vmax.f32 %v5156, %v5436
      %v5533 = vmax.f32 %v5157, %v5437
      %v5534 = vmax.f32 %v5158, %v5438
      %v5535 = vmax.f32 %v5159, %v5439
      %v5536 = vmax.f32 %v5160, %v5440
      %v5537 = vmax.f32 %v5161, %v5441
      %v5538 = vmax.f32 %v5162, %v5442
      %v5539 = vmax.f32 %v5163, %v5443
      %v5540 = vmax.f32 %v5164, %v5444
      %v5541 = vmax.f32 %v5165, %v5445
      %v5542 = vmax.f32 %v5166, %v5446
      %v5543 = vmax.f32 %v5167, %v5447
      %v5544 = vmax.f32 %v5168, %v5448
      %v5545 = vmax.f32 %v5169, %v5449
      %v5546 = vmax.f32 %v5170, %v5450
      %v5547 = vmax.f32 %v5171, %v5451
      %v5548 = vmax.f32 %v5172, %v5452
      %v5549 = vmax.f32 %v5173, %v5453
      %v5550 = vmax.f32 %v5174, %v5454
      %v5551 = vmax.f32 %v5175, %v5455
      %v5552 = vmax.f32 %v5176, %v5456
      %v5553 = vmax.f32 %v5177, %v5457
      %v5554 = vmax.f32 %v5178, %v5458
      %v5555 = vmax.f32 %v5179, %v5459
      %v5556 = vmax.f32 %v5180, %v5460
      %v5557 = vmax.f32 %v5181, %v5461
      %v5558 = vmax.f32 %v5182, %v5462
      %v5559 = vmax.f32 %v5183, %v5463
      %v5560 = vmax.f32 %v5184, %v5464
      %v5561 = vmax.f32 %v5185, %v5465
      %v5562 = vmax.f32 %v5186, %v5466
      %v5563 = vmax.f32 %v5187, %v5467
      %v5564 = vmax.f32 %v5188, %v5468
      %v5565 = vmax.f32 %v5189, %v5469
      %v5566 = vmax.f32 %v5190, %v5470
      %v5567 = vmax.f32 %v5191, %v5471
      %v5568 = vmax.f32 %v5192, %v5472
      %v5569 = vmax.f32 %v5193, %v5473
      %v5570 = vmax.f32 %v5194, %v5474
      %v5571 = vmax.f32 %v5195, %v5475
      %v5572 = vmax.f32 %v5196, %v5476
      %v5573 = vmax.f32 %v5197, %v5477
      %v5574 = vmax.f32 %v5198, %v5478
      %v5575 = vmax.f32 %v5199, %v5479
      %v5576 = vmax.f32 %v5200, %v5480
      %v5577 = vpack.c.bf16 %v5535, %v5529
      %v5578 = vpack.c.bf16 %v5536, %v5530
      %v5579 = vpack.c.bf16 %v5537, %v5531
      %v5580 = vpack.c.bf16 %v5538, %v5532
      %v5581 = vpack.c.bf16 %v5539, %v5533
      %v5582 = vpack.c.bf16 %v5540, %v5534
      %v5583 = vpack.c.bf16 %v5547, %v5541
      %v5584 = vpack.c.bf16 %v5548, %v5542
      %v5585 = vpack.c.bf16 %v5549, %v5543
      %v5586 = vpack.c.bf16 %v5550, %v5544
      %v5587 = vpack.c.bf16 %v5551, %v5545
      %v5588 = vpack.c.bf16 %v5552, %v5546
      %v5589 = vpack.c.bf16 %v5559, %v5553
      %v5590 = vpack.c.bf16 %v5560, %v5554
      %v5591 = vpack.c.bf16 %v5561, %v5555
      %v5592 = vpack.c.bf16 %v5562, %v5556
      %v5593 = vpack.c.bf16 %v5563, %v5557
      %v5594 = vpack.c.bf16 %v5564, %v5558
      %v5595 = vpack.c.bf16 %v5571, %v5565
      %v5596 = vpack.c.bf16 %v5572, %v5566
      %v5597 = vpack.c.bf16 %v5573, %v5567
      %v5598 = vpack.c.bf16 %v5574, %v5568
      %v5599 = vpack.c.bf16 %v5575, %v5569
      %v5600 = vpack.c.bf16 %v5576, %v5570
      %v5601 = vld [vmem:[%s2] sm:$0xf]
      %v5602 = vld [vmem:[%s2 + $0x4] sm:$0xf]
      %v5603 = vld [vmem:[%s2 + $0x8] sm:$0xf]
      %v5604 = vld [vmem:[%s2 + $0xc] sm:$0xf]
      %v5605 = vld [vmem:[%s2 + $0x10] sm:$0xf]
      %v5606 = vld [vmem:[%s2 + $0x14] sm:$0xf]
      %v5607 = vld [vmem:[%s2 + $0x18] sm:$0xf]
      %v5608 = vld [vmem:[%s2 + $0x1c] sm:$0xf]
      %v5609 = vld [vmem:[%s2 + $0x20] sm:$0xf]
      %v5610 = vld [vmem:[%s2 + $0x24] sm:$0xf]
      %v5611 = vld [vmem:[%s2 + $0x28] sm:$0xf]
      %v5612 = vld [vmem:[%s2 + $0x2c] sm:$0xf]
      %v5613 = vld [vmem:[%s2 + $0x30] sm:$0xf]
      %v5614 = vld [vmem:[%s2 + $0x34] sm:$0xf]
      %v5615 = vld [vmem:[%s2 + $0x38] sm:$0xf]
      %v5616 = vld [vmem:[%s2 + $0x3c] sm:$0xf]
      %v5617 = vld [vmem:[%s2 + $0x40] sm:$0xf]
      %v5618 = vld [vmem:[%s2 + $0x44] sm:$0xf]
      %v5619 = vld [vmem:[%s2 + $0x48] sm:$0xf]
      %v5620 = vld [vmem:[%s2 + $0x4c] sm:$0xf]
      %v5621 = vld [vmem:[%s2 + $0x50] sm:$0xf]
      %v5622 = vld [vmem:[%s2 + $0x54] sm:$0xf]
      %v5623 = vld [vmem:[%s2 + $0x58] sm:$0xf]
      %v5624 = vld [vmem:[%s2 + $0x5c] sm:$0xf]
      %v5625 = vld [vmem:[%s2 + $0x60] sm:$0xf]
      %v5626 = vld [vmem:[%s2 + $0x64] sm:$0xf]
      %v5627 = vld [vmem:[%s2 + $0x68] sm:$0xf]
      %v5628 = vld [vmem:[%s2 + $0x6c] sm:$0xf]
      %v5629 = vld [vmem:[%s2 + $0x70] sm:$0xf]
      %v5630 = vld [vmem:[%s2 + $0x74] sm:$0xf]
      %v5631 = vld [vmem:[%s2 + $0x78] sm:$0xf]
      %v5632 = vld [vmem:[%s2 + $0x7c] sm:$0xf]
      %v5633 = vld [vmem:[%s2 + $0x80] sm:$0xf]
      %v5634 = vld [vmem:[%s2 + $0x84] sm:$0xf]
      %v5635 = vld [vmem:[%s2 + $0x88] sm:$0xf]
      %v5636 = vld [vmem:[%s2 + $0x8c] sm:$0xf]
      %v5637 = vld [vmem:[%s2 + $0x90] sm:$0xf]
      %v5638 = vld [vmem:[%s2 + $0x94] sm:$0xf]
      %v5639 = vld [vmem:[%s2 + $0x98] sm:$0xf]
      %v5640 = vld [vmem:[%s2 + $0x9c] sm:$0xf]
      %v5641 = vld [vmem:[%s2 + $0xa0] sm:$0xf]
      %v5642 = vld [vmem:[%s2 + $0xa4] sm:$0xf]
      %v5643 = vld [vmem:[%s2 + $0xa8] sm:$0xf]
      %v5644 = vld [vmem:[%s2 + $0xac] sm:$0xf]
      %v5645 = vld [vmem:[%s2 + $0xb0] sm:$0xf]
      %v5646 = vld [vmem:[%s2 + $0xb4] sm:$0xf]
      %v5647 = vld [vmem:[%s2 + $0xb8] sm:$0xf]
      %v5648 = vld [vmem:[%s2 + $0xbc] sm:$0xf]
      %v5649 = vld [vmem:[%s2 + $0xc0] sm:$0xf]
      %v5650 = vld [vmem:[%s2 + $0xc4] sm:$0xf]
      %v5651 = vld [vmem:[%s2 + $0xc8] sm:$0xf]
      %v5652 = vld [vmem:[%s2 + $0xcc] sm:$0xf]
      %v5653 = vld [vmem:[%s2 + $0xd0] sm:$0xf]
      %v5654 = vld [vmem:[%s2 + $0xd4] sm:$0xf]
      %v5655 = vld [vmem:[%s2 + $0xd8] sm:$0xf]
      %v5656 = vld [vmem:[%s2 + $0xdc] sm:$0xf]
      %v5657 = vld [vmem:[%s2 + $0xe0] sm:$0xf]
      %v5658 = vld [vmem:[%s2 + $0xe4] sm:$0xf]
      %v5659 = vld [vmem:[%s2 + $0xe8] sm:$0xf]
      %v5660 = vld [vmem:[%s2 + $0xec] sm:$0xf]
      %v5661 = vld [vmem:[%s2 + $0xf0] sm:$0xf]
      %v5662 = vld [vmem:[%s2 + $0xf4] sm:$0xf]
      %v5663 = vld [vmem:[%s2 + $0xf8] sm:$0xf]
      %v5664 = vld [vmem:[%s2 + $0xfc] sm:$0xf]
      %v5665 = vld [vmem:[%s2 + $0x100] sm:$0xf]
      %v5666 = vld [vmem:[%s2 + $0x104] sm:$0xf]
      %v5667 = vld [vmem:[%s2 + $0x108] sm:$0xf]
      %v5668 = vld [vmem:[%s2 + $0x10c] sm:$0xf]
      %v5669 = vld [vmem:[%s2 + $0x110] sm:$0xf]
      %v5670 = vld [vmem:[%s2 + $0x114] sm:$0xf]
      %v5671 = vld [vmem:[%s2 + $0x118] sm:$0xf]
      %v5672 = vld [vmem:[%s2 + $0x11c] sm:$0xf]
      %v5673 = vld [vmem:[%s2 + $0x120] sm:$0xf]
      %v5674 = vld [vmem:[%s2 + $0x124] sm:$0xf]
      %v5675 = vld [vmem:[%s2 + $0x128] sm:$0xf]
      %v5676 = vld [vmem:[%s2 + $0x12c] sm:$0xf]
      %v5677 = vld [vmem:[%s2 + $0x130] sm:$0xf]
      %v5678 = vld [vmem:[%s2 + $0x134] sm:$0xf]
      %v5679 = vld [vmem:[%s2 + $0x138] sm:$0xf]
      %v5680 = vld [vmem:[%s2 + $0x13c] sm:$0xf]
      %v5681 = vld [vmem:[%s2 + $0x140] sm:$0xf]
      %v5682 = vld [vmem:[%s2 + $0x144] sm:$0xf]
      %v5683 = vld [vmem:[%s2 + $0x148] sm:$0xf]
      %v5684 = vld [vmem:[%s2 + $0x14c] sm:$0xf]
      %v5685 = vld [vmem:[%s2 + $0x150] sm:$0xf]
      %v5686 = vld [vmem:[%s2 + $0x154] sm:$0xf]
      %v5687 = vld [vmem:[%s2 + $0x158] sm:$0xf]
      %v5688 = vld [vmem:[%s2 + $0x15c] sm:$0xf]
      %v5689 = vld [vmem:[%s2 + $0x160] sm:$0xf]
      %v5690 = vld [vmem:[%s2 + $0x164] sm:$0xf]
      %v5691 = vld [vmem:[%s2 + $0x168] sm:$0xf]
      %v5692 = vld [vmem:[%s2 + $0x16c] sm:$0xf]
      %v5693 = vld [vmem:[%s2 + $0x170] sm:$0xf]
      %v5694 = vld [vmem:[%s2 + $0x174] sm:$0xf]
      %v5695 = vld [vmem:[%s2 + $0x178] sm:$0xf]
      %v5696 = vld [vmem:[%s2 + $0x17c] sm:$0xf]
      %v5793 = vunpack.c.l.b16 %v5601
      %v5794 = vunpack.c.l.b16 %v5602
      %v5795 = vunpack.c.l.b16 %v5603
      %v5796 = vunpack.c.l.b16 %v5604
      %v5797 = vunpack.c.l.b16 %v5605
      %v5798 = vunpack.c.l.b16 %v5606
      %v5799 = vunpack.c.l.b16 %v5607
      %v5800 = vunpack.c.l.b16 %v5608
      %v5801 = vunpack.c.l.b16 %v5609
      %v5802 = vunpack.c.l.b16 %v5610
      %v5803 = vunpack.c.l.b16 %v5611
      %v5804 = vunpack.c.l.b16 %v5612
      %v5805 = vunpack.c.l.b16 %v5613
      %v5806 = vunpack.c.l.b16 %v5614
      %v5807 = vunpack.c.l.b16 %v5615
      %v5808 = vunpack.c.l.b16 %v5616
      %v5809 = vunpack.c.l.b16 %v5617
      %v5810 = vunpack.c.l.b16 %v5618
      %v5811 = vunpack.c.l.b16 %v5619
      %v5812 = vunpack.c.l.b16 %v5620
      %v5813 = vunpack.c.l.b16 %v5621
      %v5814 = vunpack.c.l.b16 %v5622
      %v5815 = vunpack.c.l.b16 %v5623
      %v5816 = vunpack.c.l.b16 %v5624
      %v5817 = vunpack.c.l.b16 %v5625
      %v5818 = vunpack.c.l.b16 %v5626
      %v5819 = vunpack.c.l.b16 %v5627
      %v5820 = vunpack.c.l.b16 %v5628
      %v5821 = vunpack.c.l.b16 %v5629
      %v5822 = vunpack.c.l.b16 %v5630
      %v5823 = vunpack.c.l.b16 %v5631
      %v5824 = vunpack.c.l.b16 %v5632
      %v5825 = vunpack.c.l.b16 %v5633
      %v5826 = vunpack.c.l.b16 %v5634
      %v5827 = vunpack.c.l.b16 %v5635
      %v5828 = vunpack.c.l.b16 %v5636
      %v5829 = vunpack.c.l.b16 %v5637
      %v5830 = vunpack.c.l.b16 %v5638
      %v5831 = vunpack.c.l.b16 %v5639
      %v5832 = vunpack.c.l.b16 %v5640
      %v5833 = vunpack.c.l.b16 %v5641
      %v5834 = vunpack.c.l.b16 %v5642
      %v5835 = vunpack.c.l.b16 %v5643
      %v5836 = vunpack.c.l.b16 %v5644
      %v5837 = vunpack.c.l.b16 %v5645
      %v5838 = vunpack.c.l.b16 %v5646
      %v5839 = vunpack.c.l.b16 %v5647
      %v5840 = vunpack.c.l.b16 %v5648
      %v5841 = vunpack.c.l.b16 %v5649
      %v5842 = vunpack.c.l.b16 %v5650
      %v5843 = vunpack.c.l.b16 %v5651
      %v5844 = vunpack.c.l.b16 %v5652
      %v5845 = vunpack.c.l.b16 %v5653
      %v5846 = vunpack.c.l.b16 %v5654
      %v5847 = vunpack.c.l.b16 %v5655
      %v5848 = vunpack.c.l.b16 %v5656
      %v5849 = vunpack.c.l.b16 %v5657
      %v5850 = vunpack.c.l.b16 %v5658
      %v5851 = vunpack.c.l.b16 %v5659
      %v5852 = vunpack.c.l.b16 %v5660
      %v5853 = vunpack.c.l.b16 %v5661
      %v5854 = vunpack.c.l.b16 %v5662
      %v5855 = vunpack.c.l.b16 %v5663
      %v5856 = vunpack.c.l.b16 %v5664
      %v5857 = vunpack.c.l.b16 %v5665
      %v5858 = vunpack.c.l.b16 %v5666
      %v5859 = vunpack.c.l.b16 %v5667
      %v5860 = vunpack.c.l.b16 %v5668
      %v5861 = vunpack.c.l.b16 %v5669
      %v5862 = vunpack.c.l.b16 %v5670
      %v5863 = vunpack.c.l.b16 %v5671
      %v5864 = vunpack.c.l.b16 %v5672
      %v5865 = vunpack.c.l.b16 %v5673
      %v5866 = vunpack.c.l.b16 %v5674
      %v5867 = vunpack.c.l.b16 %v5675
      %v5868 = vunpack.c.l.b16 %v5676
      %v5869 = vunpack.c.l.b16 %v5677
      %v5870 = vunpack.c.l.b16 %v5678
      %v5871 = vunpack.c.l.b16 %v5679
      %v5872 = vunpack.c.l.b16 %v5680
      %v5873 = vunpack.c.l.b16 %v5681
      %v5874 = vunpack.c.l.b16 %v5682
      %v5875 = vunpack.c.l.b16 %v5683
      %v5876 = vunpack.c.l.b16 %v5684
      %v5877 = vunpack.c.l.b16 %v5685
      %v5878 = vunpack.c.l.b16 %v5686
      %v5879 = vunpack.c.l.b16 %v5687
      %v5880 = vunpack.c.l.b16 %v5688
      %v5881 = vunpack.c.l.b16 %v5689
      %v5882 = vunpack.c.l.b16 %v5690
      %v5883 = vunpack.c.l.b16 %v5691
      %v5884 = vunpack.c.l.b16 %v5692
      %v5885 = vunpack.c.l.b16 %v5693
      %v5886 = vunpack.c.l.b16 %v5694
      %v5887 = vunpack.c.l.b16 %v5695
      %v5888 = vunpack.c.l.b16 %v5696
      %v5889 = vpack.c.b16 %v5794, %v5793
      %v5890 = vpack.c.b16 %v5796, %v5795
      %v5891 = vpack.c.b16 %v5798, %v5797
      %v5892 = vpack.c.b16 %v5800, %v5799
      %v5893 = vpack.c.b16 %v5802, %v5801
      %v5894 = vpack.c.b16 %v5804, %v5803
      %v5895 = vpack.c.b16 %v5806, %v5805
      %v5896 = vpack.c.b16 %v5808, %v5807
      %v5897 = vpack.c.b16 %v5810, %v5809
      %v5898 = vpack.c.b16 %v5812, %v5811
      %v5899 = vpack.c.b16 %v5814, %v5813
      %v5900 = vpack.c.b16 %v5816, %v5815
      %v5901 = vpack.c.b16 %v5818, %v5817
      %v5902 = vpack.c.b16 %v5820, %v5819
      %v5903 = vpack.c.b16 %v5822, %v5821
      %v5904 = vpack.c.b16 %v5824, %v5823
      %v5905 = vpack.c.b16 %v5826, %v5825
      %v5906 = vpack.c.b16 %v5828, %v5827
      %v5907 = vpack.c.b16 %v5830, %v5829
      %v5908 = vpack.c.b16 %v5832, %v5831
      %v5909 = vpack.c.b16 %v5834, %v5833
      %v5910 = vpack.c.b16 %v5836, %v5835
      %v5911 = vpack.c.b16 %v5838, %v5837
      %v5912 = vpack.c.b16 %v5840, %v5839
      %v5913 = vpack.c.b16 %v5842, %v5841
      %v5914 = vpack.c.b16 %v5844, %v5843
      %v5915 = vpack.c.b16 %v5846, %v5845
      %v5916 = vpack.c.b16 %v5848, %v5847
      %v5917 = vpack.c.b16 %v5850, %v5849
      %v5918 = vpack.c.b16 %v5852, %v5851
      %v5919 = vpack.c.b16 %v5854, %v5853
      %v5920 = vpack.c.b16 %v5856, %v5855
      %v5921 = vpack.c.b16 %v5858, %v5857
      %v5922 = vpack.c.b16 %v5860, %v5859
      %v5923 = vpack.c.b16 %v5862, %v5861
      %v5924 = vpack.c.b16 %v5864, %v5863
      %v5925 = vpack.c.b16 %v5866, %v5865
      %v5926 = vpack.c.b16 %v5868, %v5867
      %v5927 = vpack.c.b16 %v5870, %v5869
      %v5928 = vpack.c.b16 %v5872, %v5871
      %v5929 = vpack.c.b16 %v5874, %v5873
      %v5930 = vpack.c.b16 %v5876, %v5875
      %v5931 = vpack.c.b16 %v5878, %v5877
      %v5932 = vpack.c.b16 %v5880, %v5879
      %v5933 = vpack.c.b16 %v5882, %v5881
      %v5934 = vpack.c.b16 %v5884, %v5883
      %v5935 = vpack.c.b16 %v5886, %v5885
      %v5936 = vpack.c.b16 %v5888, %v5887
      %5985 = vmatpush.bf16.msra.mxu0 %v5896
      %5986 = vmatpush.bf16.msra.mxu0 %v5895
      %5987 = vmatpush.bf16.msra.mxu0 %v5894
      %5988 = vmatpush.bf16.msra.mxu0 %v5893
      %5989 = vmatpush.bf16.msra.mxu0 %v5892
      %5990 = vmatpush.bf16.msra.mxu0 %v5891
      %5991 = vmatpush.bf16.msra.mxu0 %v5890
      %5992 = vmatpush.bf16.msra.mxu0 %v5889
      %5993 = vmatmul.bf16.gmra.mxu0 %v5577
      %v5994 = vpop.f32.mrf.mxu0
      %v5995 = vadd.f32 0.0, %v5994
      %v5996 = vpop.f32.mrf.mxu0
      %v5997 = vadd.f32 0.0, %v5996
      %5998 = vmatmul.bf16.gmra.mxu0 %v5583
      %v5999 = vpop.f32.mrf.mxu0
      %v6000 = vadd.f32 0.0, %v5999
      %v6001 = vpop.f32.mrf.mxu0
      %v6002 = vadd.f32 0.0, %v6001
      %6003 = vmatmul.bf16.gmra.mxu0 %v5589
      %v6004 = vpop.f32.mrf.mxu0
      %v6005 = vadd.f32 0.0, %v6004
      %v6006 = vpop.f32.mrf.mxu0
      %v6007 = vadd.f32 0.0, %v6006
      %6008 = vmatmul.bf16.gmra.mxu0 %v5595
      %v6009 = vpop.f32.mrf.mxu0
      %v6010 = vadd.f32 0.0, %v6009
      %v6011 = vpop.f32.mrf.mxu0
      %v6012 = vadd.f32 0.0, %v6011
      %6013 = vdwg.mxu0
      %6014 = vmatpush.bf16.msra.mxu0 %v5904
      %6015 = vmatpush.bf16.msra.mxu0 %v5903
      %6016 = vmatpush.bf16.msra.mxu0 %v5902
      %6017 = vmatpush.bf16.msra.mxu0 %v5901
      %6018 = vmatpush.bf16.msra.mxu0 %v5900
      %6019 = vmatpush.bf16.msra.mxu0 %v5899
      %6020 = vmatpush.bf16.msra.mxu0 %v5898
      %6021 = vmatpush.bf16.msra.mxu0 %v5897
      %6022 = vmatmul.bf16.gmra.mxu0 %v5578
      %v6023 = vpop.f32.mrf.mxu0
      %v6024 = vadd.f32 %v5995, %v6023
      %v6025 = vpop.f32.mrf.mxu0
      %v6026 = vadd.f32 %v5997, %v6025
      %6027 = vmatmul.bf16.gmra.mxu0 %v5584
      %v6028 = vpop.f32.mrf.mxu0
      %v6029 = vadd.f32 %v6000, %v6028
      %v6030 = vpop.f32.mrf.mxu0
      %v6031 = vadd.f32 %v6002, %v6030
      %6032 = vmatmul.bf16.gmra.mxu0 %v5590
      %v6033 = vpop.f32.mrf.mxu0
      %v6034 = vadd.f32 %v6005, %v6033
      %v6035 = vpop.f32.mrf.mxu0
      %v6036 = vadd.f32 %v6007, %v6035
      %6037 = vmatmul.bf16.gmra.mxu0 %v5596
      %v6038 = vpop.f32.mrf.mxu0
      %v6039 = vadd.f32 %v6010, %v6038
      %v6040 = vpop.f32.mrf.mxu0
      %v6041 = vadd.f32 %v6012, %v6040
      %6042 = vdwg.mxu0
      %6043 = vmatpush.bf16.msra.mxu0 %v5912
      %6044 = vmatpush.bf16.msra.mxu0 %v5911
      %6045 = vmatpush.bf16.msra.mxu0 %v5910
      %6046 = vmatpush.bf16.msra.mxu0 %v5909
      %6047 = vmatpush.bf16.msra.mxu0 %v5908
      %6048 = vmatpush.bf16.msra.mxu0 %v5907
      %6049 = vmatpush.bf16.msra.mxu0 %v5906
      %6050 = vmatpush.bf16.msra.mxu0 %v5905
      %6051 = vmatmul.bf16.gmra.mxu0 %v5579
      %v6052 = vpop.f32.mrf.mxu0
      %v6053 = vadd.f32 %v6024, %v6052
      %v6054 = vpop.f32.mrf.mxu0
      %v6055 = vadd.f32 %v6026, %v6054
      %6056 = vmatmul.bf16.gmra.mxu0 %v5585
      %v6057 = vpop.f32.mrf.mxu0
      %v6058 = vadd.f32 %v6029, %v6057
      %v6059 = vpop.f32.mrf.mxu0
      %v6060 = vadd.f32 %v6031, %v6059
      %6061 = vmatmul.bf16.gmra.mxu0 %v5591
      %v6062 = vpop.f32.mrf.mxu0
      %v6063 = vadd.f32 %v6034, %v6062
      %v6064 = vpop.f32.mrf.mxu0
      %v6065 = vadd.f32 %v6036, %v6064
      %6066 = vmatmul.bf16.gmra.mxu0 %v5597
      %v6067 = vpop.f32.mrf.mxu0
      %v6068 = vadd.f32 %v6039, %v6067
      %v6069 = vpop.f32.mrf.mxu0
      %v6070 = vadd.f32 %v6041, %v6069
      %6071 = vdwg.mxu0
      %6072 = vmatpush.bf16.msra.mxu0 %v5920
      %6073 = vmatpush.bf16.msra.mxu0 %v5919
      %6074 = vmatpush.bf16.msra.mxu0 %v5918
      %6075 = vmatpush.bf16.msra.mxu0 %v5917
      %6076 = vmatpush.bf16.msra.mxu0 %v5916
      %6077 = vmatpush.bf16.msra.mxu0 %v5915
      %6078 = vmatpush.bf16.msra.mxu0 %v5914
      %6079 = vmatpush.bf16.msra.mxu0 %v5913
      %6080 = vmatmul.bf16.gmra.mxu0 %v5580
      %v6081 = vpop.f32.mrf.mxu0
      %v6082 = vadd.f32 %v6053, %v6081
      %v6083 = vpop.f32.mrf.mxu0
      %v6084 = vadd.f32 %v6055, %v6083
      %6085 = vmatmul.bf16.gmra.mxu0 %v5586
      %v6086 = vpop.f32.mrf.mxu0
      %v6087 = vadd.f32 %v6058, %v6086
      %v6088 = vpop.f32.mrf.mxu0
      %v6089 = vadd.f32 %v6060, %v6088
      %6090 = vmatmul.bf16.gmra.mxu0 %v5592
      %v6091 = vpop.f32.mrf.mxu0
      %v6092 = vadd.f32 %v6063, %v6091
      %v6093 = vpop.f32.mrf.mxu0
      %v6094 = vadd.f32 %v6065, %v6093
      %6095 = vmatmul.bf16.gmra.mxu0 %v5598
      %v6096 = vpop.f32.mrf.mxu0
      %v6097 = vadd.f32 %v6068, %v6096
      %v6098 = vpop.f32.mrf.mxu0
      %v6099 = vadd.f32 %v6070, %v6098
      %6100 = vdwg.mxu0
      %6101 = vmatpush.bf16.msra.mxu0 %v5928
      %6102 = vmatpush.bf16.msra.mxu0 %v5927
      %6103 = vmatpush.bf16.msra.mxu0 %v5926
      %6104 = vmatpush.bf16.msra.mxu0 %v5925
      %6105 = vmatpush.bf16.msra.mxu0 %v5924
      %6106 = vmatpush.bf16.msra.mxu0 %v5923
      %6107 = vmatpush.bf16.msra.mxu0 %v5922
      %6108 = vmatpush.bf16.msra.mxu0 %v5921
      %6109 = vmatmul.bf16.gmra.mxu0 %v5581
      %v6110 = vpop.f32.mrf.mxu0
      %v6111 = vadd.f32 %v6082, %v6110
      %v6112 = vpop.f32.mrf.mxu0
      %v6113 = vadd.f32 %v6084, %v6112
      %6114 = vmatmul.bf16.gmra.mxu0 %v5587
      %v6115 = vpop.f32.mrf.mxu0
      %v6116 = vadd.f32 %v6087, %v6115
      %v6117 = vpop.f32.mrf.mxu0
      %v6118 = vadd.f32 %v6089, %v6117
      %6119 = vmatmul.bf16.gmra.mxu0 %v5593
      %v6120 = vpop.f32.mrf.mxu0
      %v6121 = vadd.f32 %v6092, %v6120
      %v6122 = vpop.f32.mrf.mxu0
      %v6123 = vadd.f32 %v6094, %v6122
      %6124 = vmatmul.bf16.gmra.mxu0 %v5599
      %v6125 = vpop.f32.mrf.mxu0
      %v6126 = vadd.f32 %v6097, %v6125
      %v6127 = vpop.f32.mrf.mxu0
      %v6128 = vadd.f32 %v6099, %v6127
      %6129 = vdwg.mxu0
      %6130 = vmatpush.bf16.msra.mxu0 %v5936
      %6131 = vmatpush.bf16.msra.mxu0 %v5935
      %6132 = vmatpush.bf16.msra.mxu0 %v5934
      %6133 = vmatpush.bf16.msra.mxu0 %v5933
      %6134 = vmatpush.bf16.msra.mxu0 %v5932
      %6135 = vmatpush.bf16.msra.mxu0 %v5931
      %6136 = vmatpush.bf16.msra.mxu0 %v5930
      %6137 = vmatpush.bf16.msra.mxu0 %v5929
      %6138 = vmatmul.bf16.gmra.mxu0 %v5582
      %v6139 = vpop.f32.mrf.mxu0
      %v6140 = vadd.f32 %v6111, %v6139
      %v6141 = vpop.f32.mrf.mxu0
      %v6142 = vadd.f32 %v6113, %v6141
      %6143 = vmatmul.bf16.gmra.mxu0 %v5588
      %v6144 = vpop.f32.mrf.mxu0
      %v6145 = vadd.f32 %v6116, %v6144
      %v6146 = vpop.f32.mrf.mxu0
      %v6147 = vadd.f32 %v6118, %v6146
      %6148 = vmatmul.bf16.gmra.mxu0 %v5594
      %v6149 = vpop.f32.mrf.mxu0
      %v6150 = vadd.f32 %v6121, %v6149
      %v6151 = vpop.f32.mrf.mxu0
      %v6152 = vadd.f32 %v6123, %v6151
      %6153 = vmatmul.bf16.gmra.mxu0 %v5600
      %v6154 = vpop.f32.mrf.mxu0
      %v6155 = vadd.f32 %v6126, %v6154
      %v6156 = vpop.f32.mrf.mxu0
      %v6157 = vadd.f32 %v6128, %v6156
      %6158 = vdwg.mxu0
      %6167 = vrot.lane.b32.xlu0 %v6140, 126
      %v6168 = vpop.permute.xlu0 %6167
      %6169 = vrot.lane.b32.xlu0 %v6142, 126
      %v6170 = vpop.permute.xlu0 %6169
      %6171 = vrot.lane.b32.xlu0 %v6145, 126
      %v6172 = vpop.permute.xlu0 %6171
      %6173 = vrot.lane.b32.xlu0 %v6147, 126
      %v6174 = vpop.permute.xlu0 %6173
      %6175 = vrot.lane.b32.xlu0 %v6150, 126
      %v6176 = vpop.permute.xlu0 %6175
      %6177 = vrot.lane.b32.xlu0 %v6152, 126
      %v6178 = vpop.permute.xlu0 %6177
      %6179 = vrot.lane.b32.xlu0 %v6155, 126
      %v6180 = vpop.permute.xlu0 %6179
      %6181 = vrot.lane.b32.xlu0 %v6157, 126
      %v6182 = vpop.permute.xlu0 %6181
      %6191 = vrot.lane.b32.xlu0 %v6140, 124
      %v6192 = vpop.permute.xlu0 %6191
      %6193 = vrot.lane.b32.xlu0 %v6142, 124
      %v6194 = vpop.permute.xlu0 %6193
      %6195 = vrot.lane.b32.xlu0 %v6145, 124
      %v6196 = vpop.permute.xlu0 %6195
      %6197 = vrot.lane.b32.xlu0 %v6147, 124
      %v6198 = vpop.permute.xlu0 %6197
      %6199 = vrot.lane.b32.xlu0 %v6150, 124
      %v6200 = vpop.permute.xlu0 %6199
      %6201 = vrot.lane.b32.xlu0 %v6152, 124
      %v6202 = vpop.permute.xlu0 %6201
      %6203 = vrot.lane.b32.xlu0 %v6155, 124
      %v6204 = vpop.permute.xlu0 %6203
      %6205 = vrot.lane.b32.xlu0 %v6157, 124
      %v6206 = vpop.permute.xlu0 %6205
      %6215 = vrot.lane.b32.xlu0 %v6140, 122
      %v6216 = vpop.permute.xlu0 %6215
      %6217 = vrot.lane.b32.xlu0 %v6142, 122
      %v6218 = vpop.permute.xlu0 %6217
      %6219 = vrot.lane.b32.xlu0 %v6145, 122
      %v6220 = vpop.permute.xlu0 %6219
      %6221 = vrot.lane.b32.xlu0 %v6147, 122
      %v6222 = vpop.permute.xlu0 %6221
      %6223 = vrot.lane.b32.xlu0 %v6150, 122
      %v6224 = vpop.permute.xlu0 %6223
      %6225 = vrot.lane.b32.xlu0 %v6152, 122
      %v6226 = vpop.permute.xlu0 %6225
      %6227 = vrot.lane.b32.xlu0 %v6155, 122
      %v6228 = vpop.permute.xlu0 %6227
      %6229 = vrot.lane.b32.xlu0 %v6157, 122
      %v6230 = vpop.permute.xlu0 %6229
      %v6239 = vld [vmem:[%s7] sm:$0xff]
      %v6240 = vld [vmem:[%s7 + $0x8] sm:$0xff]
      %v6241 = vld [vmem:[%s7 + $0x10] sm:$0xff]
      %v6242 = vld [vmem:[%s7 + $0x18] sm:$0xff]
      %v6243 = vld [vmem:[%s7 + $0x20] sm:$0xff]
      %v6244 = vld [vmem:[%s7 + $0x28] sm:$0xff]
      %v6245 = vld [vmem:[%s7 + $0x30] sm:$0xff]
      %v6246 = vld [vmem:[%s7 + $0x38] sm:$0xff]
      %v6247 = vld [vmem:[%s7 + $0x40] sm:$0xff]
      %v6248 = vld [vmem:[%s7 + $0x48] sm:$0xff]
      %v6249 = vld [vmem:[%s7 + $0x50] sm:$0xff]
      %v6250 = vld [vmem:[%s7 + $0x58] sm:$0xff]
      %v6251 = vld [vmem:[%s7 + $0x60] sm:$0xff]
      %v6252 = vld [vmem:[%s7 + $0x68] sm:$0xff]
      %v6253 = vld [vmem:[%s7 + $0x70] sm:$0xff]
      %v6254 = vld [vmem:[%s7 + $0x78] sm:$0xff]
      %v6255 = vpack.c.bf16 %v6142, %v6140
      %v6256 = vpack.c.bf16 %v6147, %v6145
      %v6257 = vpack.c.bf16 %v6152, %v6150
      %v6258 = vpack.c.bf16 %v6157, %v6155
      %v6259 = vpack.c.bf16 %v6170, %v6168
      %v6260 = vpack.c.bf16 %v6174, %v6172
      %v6261 = vpack.c.bf16 %v6178, %v6176
      %v6262 = vpack.c.bf16 %v6182, %v6180
      %v6263 = vpack.c.bf16 %v6194, %v6192
      %v6264 = vpack.c.bf16 %v6198, %v6196
      %v6265 = vpack.c.bf16 %v6202, %v6200
      %v6266 = vpack.c.bf16 %v6206, %v6204
      %v6267 = vpack.c.bf16 %v6218, %v6216
      %v6268 = vpack.c.bf16 %v6222, %v6220
      %v6269 = vpack.c.bf16 %v6226, %v6224
      %v6270 = vpack.c.bf16 %v6230, %v6228
      %v6271 = vld [vmem:[%s8] sm:$0xff]
      %v6272 = vld [vmem:[%s8 + $0x8] sm:$0xff]
      %v6273 = vld [vmem:[%s8 + $0x10] sm:$0xff]
      %v6274 = vld [vmem:[%s8 + $0x18] sm:$0xff]
      %v6275 = vld [vmem:[%s8 + $0x20] sm:$0xff]
      %v6276 = vld [vmem:[%s8 + $0x28] sm:$0xff]
      %v6277 = vld [vmem:[%s8 + $0x30] sm:$0xff]
      %v6278 = vld [vmem:[%s8 + $0x38] sm:$0xff]
      %v6279 = vld [vmem:[%s8 + $0x40] sm:$0xff]
      %v6280 = vld [vmem:[%s8 + $0x48] sm:$0xff]
      %v6281 = vld [vmem:[%s8 + $0x50] sm:$0xff]
      %v6282 = vld [vmem:[%s8 + $0x58] sm:$0xff]
      %v6283 = vld [vmem:[%s8 + $0x60] sm:$0xff]
      %v6284 = vld [vmem:[%s8 + $0x68] sm:$0xff]
      %v6285 = vld [vmem:[%s8 + $0x70] sm:$0xff]
      %v6286 = vld [vmem:[%s8 + $0x78] sm:$0xff]
      %6288 = vset.pattern.permute.xlu0 0
      %6289 = vperm.xlu0 %6288, %v6271
      %v6290 = vpop.permute.xlu0 %6289
      %6293 = vset.pattern.permute.xlu0 0
      %6294 = vperm.xlu0 %6293, %v6272
      %v6295 = vpop.permute.xlu0 %6294
      %6298 = vset.pattern.permute.xlu0 0
      %6299 = vperm.xlu0 %6298, %v6273
      %v6300 = vpop.permute.xlu0 %6299
      %6303 = vset.pattern.permute.xlu0 0
      %6304 = vperm.xlu0 %6303, %v6274
      %v6305 = vpop.permute.xlu0 %6304
      %6308 = vset.pattern.permute.xlu0 0
      %6309 = vperm.xlu0 %6308, %v6275
      %v6310 = vpop.permute.xlu0 %6309
      %6313 = vset.pattern.permute.xlu0 0
      %6314 = vperm.xlu0 %6313, %v6276
      %v6315 = vpop.permute.xlu0 %6314
      %6318 = vset.pattern.permute.xlu0 0
      %6319 = vperm.xlu0 %6318, %v6277
      %v6320 = vpop.permute.xlu0 %6319
      %6323 = vset.pattern.permute.xlu0 0
      %6324 = vperm.xlu0 %6323, %v6278
      %v6325 = vpop.permute.xlu0 %6324
      %6328 = vset.pattern.permute.xlu0 0
      %6329 = vperm.xlu0 %6328, %v6279
      %v6330 = vpop.permute.xlu0 %6329
      %6333 = vset.pattern.permute.xlu0 0
      %6334 = vperm.xlu0 %6333, %v6280
      %v6335 = vpop.permute.xlu0 %6334
      %6338 = vset.pattern.permute.xlu0 0
      %6339 = vperm.xlu0 %6338, %v6281
      %v6340 = vpop.permute.xlu0 %6339
      %6343 = vset.pattern.permute.xlu0 0
      %6344 = vperm.xlu0 %6343, %v6282
      %v6345 = vpop.permute.xlu0 %6344
      %6348 = vset.pattern.permute.xlu0 0
      %6349 = vperm.xlu0 %6348, %v6283
      %v6350 = vpop.permute.xlu0 %6349
      %6353 = vset.pattern.permute.xlu0 0
      %6354 = vperm.xlu0 %6353, %v6284
      %v6355 = vpop.permute.xlu0 %6354
      %6358 = vset.pattern.permute.xlu0 0
      %6359 = vperm.xlu0 %6358, %v6285
      %v6360 = vpop.permute.xlu0 %6359
      %6363 = vset.pattern.permute.xlu0 0
      %6364 = vperm.xlu0 %6363, %v6286
      %v6365 = vpop.permute.xlu0 %6364
      %v6383 = vunpack.c.l.b16 %v6239
      %v6384 = vunpack.c.h.b16 %v6239
      %v6385 = vunpack.c.l.b16 %v6240
      %v6386 = vunpack.c.h.b16 %v6240
      %v6387 = vunpack.c.l.b16 %v6241
      %v6388 = vunpack.c.h.b16 %v6241
      %v6389 = vunpack.c.l.b16 %v6242
      %v6390 = vunpack.c.h.b16 %v6242
      %v6391 = vunpack.c.l.b16 %v6243
      %v6392 = vunpack.c.h.b16 %v6243
      %v6393 = vunpack.c.l.b16 %v6244
      %v6394 = vunpack.c.h.b16 %v6244
      %v6395 = vunpack.c.l.b16 %v6245
      %v6396 = vunpack.c.h.b16 %v6245
      %v6397 = vunpack.c.l.b16 %v6246
      %v6398 = vunpack.c.h.b16 %v6246
      %v6399 = vunpack.c.l.b16 %v6247
      %v6400 = vunpack.c.h.b16 %v6247
      %v6401 = vunpack.c.l.b16 %v6248
      %v6402 = vunpack.c.h.b16 %v6248
      %v6403 = vunpack.c.l.b16 %v6249
      %v6404 = vunpack.c.h.b16 %v6249
      %v6405 = vunpack.c.l.b16 %v6250
      %v6406 = vunpack.c.h.b16 %v6250
      %v6407 = vunpack.c.l.b16 %v6251
      %v6408 = vunpack.c.h.b16 %v6251
      %v6409 = vunpack.c.l.b16 %v6252
      %v6410 = vunpack.c.h.b16 %v6252
      %v6411 = vunpack.c.l.b16 %v6253
      %v6412 = vunpack.c.h.b16 %v6253
      %v6413 = vunpack.c.l.b16 %v6254
      %v6414 = vunpack.c.h.b16 %v6254
      %v6415 = vpack.c.b16 %v6385, %v6383
      %v6416 = vpack.c.b16 %v6386, %v6384
      %v6417 = vpack.c.b16 %v6389, %v6387
      %v6418 = vpack.c.b16 %v6390, %v6388
      %v6419 = vpack.c.b16 %v6393, %v6391
      %v6420 = vpack.c.b16 %v6394, %v6392
      %v6421 = vpack.c.b16 %v6397, %v6395
      %v6422 = vpack.c.b16 %v6398, %v6396
      %v6423 = vpack.c.b16 %v6401, %v6399
      %v6424 = vpack.c.b16 %v6402, %v6400
      %v6425 = vpack.c.b16 %v6405, %v6403
      %v6426 = vpack.c.b16 %v6406, %v6404
      %v6427 = vpack.c.b16 %v6409, %v6407
      %v6428 = vpack.c.b16 %v6410, %v6408
      %v6429 = vpack.c.b16 %v6413, %v6411
      %v6430 = vpack.c.b16 %v6414, %v6412
      %6447 = vmatpush.bf16.msra.mxu0 %v6262
      %6448 = vmatpush.bf16.msra.mxu0 %v6261
      %6449 = vmatpush.bf16.msra.mxu0 %v6260
      %6450 = vmatpush.bf16.msra.mxu0 %v6259
      %6451 = vmatpush.bf16.msra.mxu0 %v6258
      %6452 = vmatpush.bf16.msra.mxu0 %v6257
      %6453 = vmatpush.bf16.msra.mxu0 %v6256
      %6454 = vmatpush.bf16.msra.mxu0 %v6255
      %6455 = vmatmul.bf16.gmra.mxu0 %v6415
      %v6456 = vpop.f32.mrf.mxu0
      %v6457 = vadd.f32 %v6290, %v6456
      %v6458 = vpop.f32.mrf.mxu0
      %v6459 = vadd.f32 %v6295, %v6458
      %6460 = vmatmul.bf16.gmra.mxu0 %v6417
      %v6461 = vpop.f32.mrf.mxu0
      %v6462 = vadd.f32 %v6300, %v6461
      %v6463 = vpop.f32.mrf.mxu0
      %v6464 = vadd.f32 %v6305, %v6463
      %6465 = vmatmul.bf16.gmra.mxu0 %v6419
      %v6466 = vpop.f32.mrf.mxu0
      %v6467 = vadd.f32 %v6310, %v6466
      %v6468 = vpop.f32.mrf.mxu0
      %v6469 = vadd.f32 %v6315, %v6468
      %6470 = vmatmul.bf16.gmra.mxu0 %v6421
      %v6471 = vpop.f32.mrf.mxu0
      %v6472 = vadd.f32 %v6320, %v6471
      %v6473 = vpop.f32.mrf.mxu0
      %v6474 = vadd.f32 %v6325, %v6473
      %6475 = vmatmul.bf16.gmra.mxu0 %v6423
      %v6476 = vpop.f32.mrf.mxu0
      %v6477 = vadd.f32 %v6330, %v6476
      %v6478 = vpop.f32.mrf.mxu0
      %v6479 = vadd.f32 %v6335, %v6478
      %6480 = vmatmul.bf16.gmra.mxu0 %v6425
      %v6481 = vpop.f32.mrf.mxu0
      %v6482 = vadd.f32 %v6340, %v6481
      %v6483 = vpop.f32.mrf.mxu0
      %v6484 = vadd.f32 %v6345, %v6483
      %6485 = vmatmul.bf16.gmra.mxu0 %v6427
      %v6486 = vpop.f32.mrf.mxu0
      %v6487 = vadd.f32 %v6350, %v6486
      %v6488 = vpop.f32.mrf.mxu0
      %v6489 = vadd.f32 %v6355, %v6488
      %6490 = vmatmul.bf16.gmra.mxu0 %v6429
      %v6491 = vpop.f32.mrf.mxu0
      %v6492 = vadd.f32 %v6360, %v6491
      %v6493 = vpop.f32.mrf.mxu0
      %v6494 = vadd.f32 %v6365, %v6493
      %6495 = vdwg.mxu0
      %6496 = vmatpush.bf16.msra.mxu0 %v6270
      %6497 = vmatpush.bf16.msra.mxu0 %v6269
      %6498 = vmatpush.bf16.msra.mxu0 %v6268
      %6499 = vmatpush.bf16.msra.mxu0 %v6267
      %6500 = vmatpush.bf16.msra.mxu0 %v6266
      %6501 = vmatpush.bf16.msra.mxu0 %v6265
      %6502 = vmatpush.bf16.msra.mxu0 %v6264
      %6503 = vmatpush.bf16.msra.mxu0 %v6263
      %6504 = vmatmul.bf16.gmra.mxu0 %v6416
      %v6505 = vpop.f32.mrf.mxu0
      %v6506 = vadd.f32 %v6457, %v6505
      %v6507 = vpop.f32.mrf.mxu0
      %v6508 = vadd.f32 %v6459, %v6507
      %6509 = vmatmul.bf16.gmra.mxu0 %v6418
      %v6510 = vpop.f32.mrf.mxu0
      %v6511 = vadd.f32 %v6462, %v6510
      %v6512 = vpop.f32.mrf.mxu0
      %v6513 = vadd.f32 %v6464, %v6512
      %6514 = vmatmul.bf16.gmra.mxu0 %v6420
      %v6515 = vpop.f32.mrf.mxu0
      %v6516 = vadd.f32 %v6467, %v6515
      %v6517 = vpop.f32.mrf.mxu0
      %v6518 = vadd.f32 %v6469, %v6517
      %6519 = vmatmul.bf16.gmra.mxu0 %v6422
      %v6520 = vpop.f32.mrf.mxu0
      %v6521 = vadd.f32 %v6472, %v6520
      %v6522 = vpop.f32.mrf.mxu0
      %v6523 = vadd.f32 %v6474, %v6522
      %6524 = vmatmul.bf16.gmra.mxu0 %v6424
      %v6525 = vpop.f32.mrf.mxu0
      %v6526 = vadd.f32 %v6477, %v6525
      %v6527 = vpop.f32.mrf.mxu0
      %v6528 = vadd.f32 %v6479, %v6527
      %6529 = vmatmul.bf16.gmra.mxu0 %v6426
      %v6530 = vpop.f32.mrf.mxu0
      %v6531 = vadd.f32 %v6482, %v6530
      %v6532 = vpop.f32.mrf.mxu0
      %v6533 = vadd.f32 %v6484, %v6532
      %6534 = vmatmul.bf16.gmra.mxu0 %v6428
      %v6535 = vpop.f32.mrf.mxu0
      %v6536 = vadd.f32 %v6487, %v6535
      %v6537 = vpop.f32.mrf.mxu0
      %v6538 = vadd.f32 %v6489, %v6537
      %6539 = vmatmul.bf16.gmra.mxu0 %v6430
      %v6540 = vpop.f32.mrf.mxu0
      %v6541 = vadd.f32 %v6492, %v6540
      %v6542 = vpop.f32.mrf.mxu0
      %v6543 = vadd.f32 %v6494, %v6542
      %6544 = vdwg.mxu0
      %v6545 = vmax.f32 %v6506, 0.0
      %v6546 = vmax.f32 %v6508, 0.0
      %v6547 = vmax.f32 %v6511, 0.0
      %v6548 = vmax.f32 %v6513, 0.0
      %v6549 = vmax.f32 %v6516, 0.0
      %v6550 = vmax.f32 %v6518, 0.0
      %v6551 = vmax.f32 %v6521, 0.0
      %v6552 = vmax.f32 %v6523, 0.0
      %v6553 = vmax.f32 %v6526, 0.0
      %v6554 = vmax.f32 %v6528, 0.0
      %v6555 = vmax.f32 %v6531, 0.0
      %v6556 = vmax.f32 %v6533, 0.0
      %v6557 = vmax.f32 %v6536, 0.0
      %v6558 = vmax.f32 %v6538, 0.0
      %v6559 = vmax.f32 %v6541, 0.0
      %v6560 = vmax.f32 %v6543, 0.0
      %v6561 = vld [vmem:[%s9] sm:$0xf]
      %v6562 = vld [vmem:[%s9 + $0x4] sm:$0x1]
      %v6563 = vpack.c.bf16 %v6546, %v6545
      %v6564 = vpack.c.bf16 %v6548, %v6547
      %v6565 = vpack.c.bf16 %v6550, %v6549
      %v6566 = vpack.c.bf16 %v6552, %v6551
      %v6567 = vpack.c.bf16 %v6554, %v6553
      %v6568 = vpack.c.bf16 %v6556, %v6555
      %v6569 = vpack.c.bf16 %v6558, %v6557
      %v6570 = vpack.c.bf16 %v6560, %v6559
      %v6571 = vld [vmem:[%s10] sm:$0xff]
      %v6572 = vld [vmem:[%s10 + $0x8] sm:$0x3]
      %6574 = vset.pattern.permute.xlu0 0
      %6575 = vperm.xlu0 %6574, %v6571
      %v6576 = vpop.permute.xlu0 %6575
      %6579 = vset.pattern.permute.xlu0 0
      %6580 = vperm.xlu0 %6579, %v6572
      %v6581 = vpop.permute.xlu0 %6580
      %v6585 = vunpack.c.l.b16 %v6561
      %v6586 = vunpack.c.l.b16 %v6562
      %v6587 = vpack.c.b16 %v6586, %v6585
      %6589 = vmatpush.bf16.msra.mxu0 %v6570
      %6590 = vmatpush.bf16.msra.mxu0 %v6569
      %6591 = vmatpush.bf16.msra.mxu0 %v6568
      %6592 = vmatpush.bf16.msra.mxu0 %v6567
      %6593 = vmatpush.bf16.msra.mxu0 %v6566
      %6594 = vmatpush.bf16.msra.mxu0 %v6565
      %6595 = vmatpush.bf16.msra.mxu0 %v6564
      %6596 = vmatpush.bf16.msra.mxu0 %v6563
      %6597 = vmatmul.bf16.gmra.mxu0 %v6587
      %v6598 = vpop.f32.mrf.mxu0
      %v6599 = vadd.f32 %v6576, %v6598
      %v6600 = vpop.f32.mrf.mxu0
      %v6601 = vadd.f32 %v6581, %v6600
      %6602 = vdwg.mxu0
      %vm6603 = vcmask 15360
      %6604 = vst.msk [vmem:[%s385] sm:$0xff] %vm6603, %v6599
      %vm6605 = vcmask 9216
      %6606 = vst.msk [vmem:[%s385 + $0x8] sm:$0x3] %vm6605, %v6601
      %p6607 = scmp.lt.s32.totalorder %s22, 1
      %s6608 = scalar_select %p6607, %s22, 1
      %s6609 = smul.addr %s6608, 2
      %s6610 = smul.addr %s6609, 8
      %s6611 = scalar_lea.vmem %s11, %s6610
      // Predicated region
      $region65: #{cnn_forward.1} parent=63 // pred_check
        %p6612 = pneg %p276
      $region66: #{cnn_forward.1} parent=63 // pred_check_branch
        %6614 = sbr.rel (%p6612) target = $region68
      $region67: #{cnn_forward.1} parent=63 // pred_region
        _
      $region68: #{cnn_forward.1} parent=63 // pred_fallthru
        _
    $region64: #{cnn_forward.1} parent=5 // pred_fallthru
      _
    %p6615 = scmp.le.s32.totalorder 2, %s17
    // Predicated region
    $region69: #{cnn_forward.1} parent=5 // pred_check
      %p6616 = pneg %p6615
    $region70: #{cnn_forward.1} parent=5 // pred_check_branch
      %6618 = sbr.rel (%p6616) target = $region72
    $region71: #{cnn_forward.1} parent=5 // pred_region
      %s6619 = ssub.s32 %s17, 2
      // Predicated region
      $region73: #{cnn_forward.1} parent=71 // pred_check
        %p6620 = pneg %p282
      $region74: #{cnn_forward.1} parent=71 // pred_check_branch
        %6622 = sbr.rel (%p6620) target = $region76
      $region75: #{cnn_forward.1} parent=71 // pred_region
        %p6623 = scmp.lt.s32.totalorder %s23, 1
        %s6624 = scalar_select %p6623, %s23, 1
        %s6625 = smul.addr %s6624, 2
        %s6626 = smul.addr %s6625, 8
        %s6627 = scalar_lea.vmem %s11, %s6626
      $region76: #{cnn_forward.1} parent=71 // pred_fallthru
        _
    $region72: #{cnn_forward.1} parent=5 // pred_fallthru
      _
  $region6: #{cnn_forward.1} parent=0 // loop_footer
    %s21 = sadd.s32 1, %s17
  $region7: #{cnn_forward.1} parent=0 // loop_footer_branch
    %16 = sbr.rel target = $region3
  $region8: #{cnn_forward.1} parent=0 // loop_exit
    _

</llo_original>
